<compile_context>
chip_gen: v7x
topology: tpu7x:2x2x1
jax: 0.10.0
libtpu: 0.0.40
codegen_flags: <defaults>
</compile_context>

<pallas_src>
import functools

import jax
import jax.numpy as jnp
from jax.experimental import pallas as pl
from jax.experimental.pallas import tpu as pltpu

NUM_CLASSES = 8  # det head emits 4 box + 1 obj + NUM_CLASSES channels
HEAD_PAD = 128   # lane-dense packed width of the fused det+seg head output


def _round_up(x, m):
    return (x + m - 1) // m * m


# ----------------------------------------------------------------------------
# Pallas kernels: tiled matmul + bias + SiLU, optionally chained with a
# second (1x1-conv) matmul on the VMEM-resident intermediate.
# ----------------------------------------------------------------------------
def _mm1_kernel(x_ref, w1_ref, b1_ref, o_ref, *, act1):
    # x:(tm,K) bf16, w1:(K,N) bf16, b1:(1,N) f32 -> o:(tm,N)
    acc = jnp.dot(x_ref[...], w1_ref[...], preferred_element_type=jnp.float32)
    acc = acc + b1_ref[...]
    if act1 == "silu":
        acc = acc * jax.nn.sigmoid(acc)
    o_ref[...] = acc.astype(o_ref.dtype)


def _mm2_kernel(x_ref, w1_ref, b1_ref, w2_ref, b2_ref, o_ref, *, act1, act2):
    # Fused: o = act2( act1(x @ w1 + b1) @ w2 + b2 ); intermediate stays in VMEM.
    h = jnp.dot(x_ref[...], w1_ref[...], preferred_element_type=jnp.float32)
    h = h + b1_ref[...]
    if act1 == "silu":
        h = h * jax.nn.sigmoid(h)
    h = h.astype(w2_ref.dtype)  # bf16 operands for the second MXU pass
    acc = jnp.dot(h, w2_ref[...], preferred_element_type=jnp.float32)
    acc = acc + b2_ref[...]
    if act2 == "silu":
        acc = acc * jax.nn.sigmoid(acc)
    o_ref[...] = acc.astype(o_ref.dtype)


def _chained_matmul(x, layers, out_dtype=jnp.bfloat16):
    """x:(M,K). layers = [(w,b,act)] or [(w1,b1,act1),(w2,b2,act2)].

    Runs one pallas_call with an M-tiled parallel grid.  Weights/bias are
    small and kept fully resident (full-extent blocks); activations are bf16,
    accumulation is f32.
    """
    x = x.astype(jnp.bfloat16)
    M, K = x.shape

    tile_m = 512 if M >= 512 else _round_up(M, 64)
    M_pad = _round_up(M, tile_m)
    if M_pad != M:
        x = jnp.pad(x, ((0, M_pad - M), (0, 0)))
    grid = (M_pad // tile_m,)

    n_out = layers[-1][0].shape[-1]

    in_specs = [pl.BlockSpec((tile_m, K), lambda i: (i, 0))]
    operands = [x]
    for (w, b, _act) in layers:
        kin, kout = w.shape
        in_specs.append(pl.BlockSpec((kin, kout), lambda i: (0, 0)))
        in_specs.append(pl.BlockSpec((1, kout), lambda i: (0, 0)))
        operands.append(w.astype(jnp.bfloat16))
        operands.append(jnp.asarray(b, jnp.float32).reshape(1, kout))

    if len(layers) == 1:
        kernel = functools.partial(_mm1_kernel, act1=layers[0][2])
    else:
        kernel = functools.partial(_mm2_kernel, act1=layers[0][2], act2=layers[1][2])

    grid_spec = pltpu.PrefetchScalarGridSpec(
        num_scalar_prefetch=0,
        grid=grid,
        in_specs=in_specs,
        out_specs=pl.BlockSpec((tile_m, n_out), lambda i: (i, 0)),
    )
    out = pl.pallas_call(
        kernel,
        out_shape=jax.ShapeDtypeStruct((M_pad, n_out), out_dtype),
        grid_spec=grid_spec,
        compiler_params=pltpu.CompilerParams(
            dimension_semantics=("parallel",),
            vmem_limit_bytes=32 * 1024 * 1024,
        ),
    )(*operands)
    return out[:M]


# ----------------------------------------------------------------------------
# Conv glue: patch extraction in plain JAX (bf16), matmul hot path in Pallas.
# ----------------------------------------------------------------------------
def _im2col_3x3(x, stride):
    # x: NHWC, 'same'-style padding of 1, 3x3 kernel, bf16.
    n, h, w, c = x.shape
    xp = jnp.pad(x, ((0, 0), (1, 1), (1, 1), (0, 0)))
    ho = (h + 2 - 3) // stride + 1
    wo = (w + 2 - 3) // stride + 1
    patches = []
    for dh in range(3):
        for dw in range(3):
            patches.append(
                xp[:, dh:dh + stride * ho:stride, dw:dw + stride * wo:stride, :]
            )
    cols = jnp.concatenate(patches, axis=-1)  # (n, ho, wo, 9*c), (dh,dw,cin) order
    return cols.reshape(n * ho * wo, 9 * c), (n, ho, wo)


def upsample_nearest(x, factor):
    # TODO(synk): could be folded into the head kernel's output BlockSpec.
    x = jnp.repeat(x, factor, axis=1)
    x = jnp.repeat(x, factor, axis=2)
    return x


# ----------------------------------------------------------------------------
# Parameter init (deterministic, synthetic).  Weights are HWIO / (Cin,Cout);
# loading real PyTorch OIHW weights would require a transpose.
# ----------------------------------------------------------------------------
def _init_conv(key, kh, kw, cin, cout):
    kw_, kb_ = jax.random.split(key)
    fan_in = kh * kw * cin
    scale = 1.0 / jnp.sqrt(fan_in)
    if kh == 1 and kw == 1:
        w = jax.random.uniform(kw_, (cin, cout), jnp.float32, -scale, scale)
    else:
        w = jax.random.uniform(kw_, (kh, kw, cin, cout), jnp.float32, -scale, scale)
    b = jax.random.uniform(kb_, (cout,), jnp.float32, -scale, scale)
    return w, b


def init_params(in_ch=3, seed=0):
    keys = jax.random.split(jax.random.PRNGKey(seed), 9)
    p = {}
    p["bb1"] = _init_conv(keys[0], 3, 3, in_ch, 16)
    p["bb2"] = _init_conv(keys[1], 3, 3, 16, 32)
    p["bb3"] = _init_conv(keys[2], 3, 3, 32, 64)
    p["neck1"] = _init_conv(keys[3], 1, 1, 64, 64)
    p["neck2"] = _init_conv(keys[4], 3, 3, 64, 64)
    p["det1"] = _init_conv(keys[5], 3, 3, 64, 64)
    p["det2"] = _init_conv(keys[6], 1, 1, 64, 4 + 1 + NUM_CLASSES)
    p["seg1"] = _init_conv(keys[7], 3, 3, 64, 32)
    p["seg2"] = _init_conv(keys[8], 1, 1, 32, 1)
    return p


# ----------------------------------------------------------------------------
# Forward pass
# ----------------------------------------------------------------------------
def yolo_multitask_forward(params, x_nchw):
    """x_nchw: (N, C, H, W) float32 -> (det NCHW f32, seg NCHW f32)."""
    ndet = 4 + 1 + NUM_CLASSES
    x = jnp.transpose(x_nchw, (0, 2, 3, 1)).astype(jnp.bfloat16)  # -> NHWC bf16

    # ---- backbone (stride 8 total) ----
    p, (n, h1, w1) = _im2col_3x3(x, 2)
    a1 = _chained_matmul(
        p, [(params["bb1"][0].reshape(-1, 16), params["bb1"][1], "silu")]
    ).reshape(n, h1, w1, 16)

    p, (n, h2, w2) = _im2col_3x3(a1, 2)
    a2 = _chained_matmul(
        p, [(params["bb2"][0].reshape(-1, 32), params["bb2"][1], "silu")]
    ).reshape(n, h2, w2, 32)

    # bb3 (3x3 s2) + neck1 (1x1) fused into one kernel (VMEM intermediate)
    p, (n, h3, w3) = _im2col_3x3(a2, 2)
    f0 = _chained_matmul(
        p,
        [(params["bb3"][0].reshape(-1, 64), params["bb3"][1], "silu"),
         (params["neck1"][0], params["neck1"][1], "silu")],
    ).reshape(n, h3, w3, 64)

    # neck2 (3x3 s1)
    p, _ = _im2col_3x3(f0, 1)
    f = _chained_matmul(
        p, [(params["neck2"][0].reshape(-1, 64), params["neck2"][1], "silu")]
    ).reshape(n, h3, w3, 64)

    # ---- fused detection + segmentation heads ----
    # Stage 1: [det1 | seg1] share the same 3x3 patches of f (read once).
    w1h = jnp.concatenate(
        [params["det1"][0].reshape(-1, 64), params["seg1"][0].reshape(-1, 32)],
        axis=-1)                                                # (576, 96)
    b1h = jnp.concatenate([params["det1"][1], params["seg1"][1]])  # (96,)
    # Stage 2: block-diagonal [det2 | seg2] packed into one lane-dense 128-wide
    # output (det channels 0:13, seg channel at 13, rest zero padding).
    w2h = jnp.zeros((96, HEAD_PAD), jnp.float32)
    w2h = w2h.at[:64, :ndet].set(params["det2"][0])
    w2h = w2h.at[64:, ndet:ndet + 1].set(params["seg2"][0])
    b2h = jnp.zeros((HEAD_PAD,), jnp.float32)
    b2h = b2h.at[:ndet].set(params["det2"][1])
    b2h = b2h.at[ndet:ndet + 1].set(params["seg2"][1])

    p, _ = _im2col_3x3(f, 1)
    head = _chained_matmul(
        p, [(w1h, b1h, "silu"), (w2h, b2h, "none")], out_dtype=jnp.float32
    ).reshape(n, h3, w3, HEAD_PAD)

    d = head[..., :ndet]                       # (n, h3, w3, 13) f32
    s = head[..., ndet:ndet + 1]               # (n, h3, w3, 1)  f32
    s = upsample_nearest(s, 8)                 # back to input resolution

    det_out = jnp.transpose(d, (0, 3, 1, 2)).astype(jnp.float32)  # NCHW
    seg_out = jnp.transpose(s, (0, 3, 1, 2)).astype(jnp.float32)  # NCHW
    return det_out, seg_out


if __name__ == "__main__":
    batch, in_ch, input_size = 2, 3, 32  # small stand-in for (3, 256)
    key = jax.random.PRNGKey(0)
    x = jax.random.normal(key, (batch, in_ch, input_size, input_size), jnp.float32)

    params = init_params(in_ch=in_ch, seed=0)
    fwd = jax.jit(functools.partial(yolo_multitask_forward, params))
    det_out, seg_out = fwd(x)
    jax.block_until_ready((det_out, seg_out))

    assert det_out.shape == (batch, 4 + 1 + NUM_CLASSES, input_size // 8, input_size // 8)
    assert seg_out.shape == (batch, 1, input_size, input_size)
    assert det_out.dtype == jnp.float32 and seg_out.dtype == jnp.float32
    print("KERNEL_OK")
</pallas_src>

<mosaic_0001>
module attributes {stable_mosaic.version = 11 : i64} {
  func.func @_mm1_kernel(%arg0: i32, %arg1: memref<512x27xbf16, #tpu.memory_space<vmem>>, %arg2: memref<27x16xbf16, #tpu.memory_space<vmem>>, %arg3: memref<1x16xf32, #tpu.memory_space<vmem>>, %arg4: memref<512x16xbf16, #tpu.memory_space<vmem>>) attributes {dimension_semantics = [#tpu.dimension_semantics<parallel>], iteration_bounds = array<i64: 1>, scalar_prefetch = 0 : i64, scratch_operands = 0 : i64, tpu.core_type = #tpu.core_type<tc>, window_params = [{transform_indices = @transform_0, window_bounds = array<i64: 512, 27>}, {pipeline_mode = #tpu.pipeline_mode<synchronous>, transform_indices = @transform_1, window_bounds = array<i64: 27, 16>}, {pipeline_mode = #tpu.pipeline_mode<synchronous>, transform_indices = @transform_2, window_bounds = array<i64: 1, 16>}, {transform_indices = @transform_3, window_bounds = array<i64: 512, 16>}]} {
    %c0 = arith.constant 0 : index
    %c0_0 = arith.constant 0 : index
    %0 = vector.load %arg1[%c0, %c0_0] : memref<512x27xbf16, #tpu.memory_space<vmem>>, vector<512x27xbf16>
    %c0_1 = arith.constant 0 : index
    %c0_2 = arith.constant 0 : index
    %1 = vector.load %arg2[%c0_1, %c0_2] : memref<27x16xbf16, #tpu.memory_space<vmem>>, vector<27x16xbf16>
    %cst = arith.constant dense<0.000000e+00> : vector<512x16xf32>
    %2 = tpu.matmul %0, %1, %cst {dimension_numbers = #tpu.dot_dimension_numbers<[1], [0], [0], [1], [0, 0, 1, 1], [], []>} : vector<512x27xbf16>, vector<27x16xbf16>, vector<512x16xf32> -> vector<512x16xf32>
    %c0_3 = arith.constant 0 : index
    %c0_4 = arith.constant 0 : index
    %3 = vector.load %arg3[%c0_3, %c0_4] : memref<1x16xf32, #tpu.memory_space<vmem>>, vector<1x16xf32>
    %4 = vector.broadcast %3 : vector<1x16xf32> to vector<512x16xf32>
    %5 = arith.addf %2, %4 : vector<512x16xf32>
    %6 = arith.negf %5 : vector<512x16xf32>
    %7 = math.exp %6 : vector<512x16xf32>
    %cst_5 = arith.constant 1.000000e+00 : f32
    %8 = vector.broadcast %cst_5 : f32 to vector<512x16xf32>
    %9 = arith.addf %8, %7 : vector<512x16xf32>
    %10 = arith.divf %8, %9 : vector<512x16xf32>
    %11 = arith.mulf %5, %10 : vector<512x16xf32>
    %12 = arith.truncf %11 : vector<512x16xf32> to vector<512x16xbf16>
    %c0_6 = arith.constant 0 : index
    %c0_7 = arith.constant 0 : index
    %13 = vector.load %arg4[%c0_6, %c0_7] : memref<512x16xbf16, #tpu.memory_space<vmem>>, vector<512x16xbf16>
    tpu.vector_store %arg4[%c0_6, %c0_7], %12 {strides = array<i32>} : memref<512x16xbf16, #tpu.memory_space<vmem>>, vector<512x16xbf16>,
    return
  }
  func.func @transform_0(%arg0: i32) -> (i32, i32) {
    %c0_i32 = arith.constant 0 : i32
    %c0_i32_0 = arith.constant 0 : i32
    return %arg0, %c0_i32 : i32, i32
  }
  func.func @transform_1(%arg0: i32) -> (i32, i32) {
    %c0_i32 = arith.constant 0 : i32
    %c0_i32_0 = arith.constant 0 : i32
    %c0_i32_1 = arith.constant 0 : i32
    return %c0_i32, %c0_i32_0 : i32, i32
  }
  func.func @transform_2(%arg0: i32) -> (i32, i32) {
    %c0_i32 = arith.constant 0 : i32
    %c0_i32_0 = arith.constant 0 : i32
    %c0_i32_1 = arith.constant 0 : i32
    return %c0_i32, %c0_i32_0 : i32, i32
  }
  func.func @transform_3(%arg0: i32) -> (i32, i32) {
    %c0_i32 = arith.constant 0 : i32
    %c0_i32_0 = arith.constant 0 : i32
    return %arg0, %c0_i32 : i32, i32
  }
}

module attributes {stable_mosaic.version = 11 : i64} {
  func.func @_mm1_kernel(%arg0: i32, %arg1: memref<128x144xbf16, #tpu.memory_space<vmem>>, %arg2: memref<144x32xbf16, #tpu.memory_space<vmem>>, %arg3: memref<1x32xf32, #tpu.memory_space<vmem>>, %arg4: memref<128x32xbf16, #tpu.memory_space<vmem>>) attributes {dimension_semantics = [#tpu.dimension_semantics<parallel>], iteration_bounds = array<i64: 1>, scalar_prefetch = 0 : i64, scratch_operands = 0 : i64, tpu.core_type = #tpu.core_type<tc>, window_params = [{transform_indices = @transform_0, window_bounds = array<i64: 128, 144>}, {pipeline_mode = #tpu.pipeline_mode<synchronous>, transform_indices = @transform_1, window_bounds = array<i64: 144, 32>}, {pipeline_mode = #tpu.pipeline_mode<synchronous>, transform_indices = @transform_2, window_bounds = array<i64: 1, 32>}, {transform_indices = @transform_3, window_bounds = array<i64: 128, 32>}]} {
    %c0 = arith.constant 0 : index
    %c0_0 = arith.constant 0 : index
    %0 = vector.load %arg1[%c0, %c0_0] : memref<128x144xbf16, #tpu.memory_space<vmem>>, vector<128x144xbf16>
    %c0_1 = arith.constant 0 : index
    %c0_2 = arith.constant 0 : index
    %1 = vector.load %arg2[%c0_1, %c0_2] : memref<144x32xbf16, #tpu.memory_space<vmem>>, vector<144x32xbf16>
    %cst = arith.constant dense<0.000000e+00> : vector<128x32xf32>
    %2 = tpu.matmul %0, %1, %cst {dimension_numbers = #tpu.dot_dimension_numbers<[1], [0], [0], [1], [0, 0, 1, 1], [], []>} : vector<128x144xbf16>, vector<144x32xbf16>, vector<128x32xf32> -> vector<128x32xf32>
    %c0_3 = arith.constant 0 : index
    %c0_4 = arith.constant 0 : index
    %3 = vector.load %arg3[%c0_3, %c0_4] : memref<1x32xf32, #tpu.memory_space<vmem>>, vector<1x32xf32>
    %4 = vector.broadcast %3 : vector<1x32xf32> to vector<128x32xf32>
    %5 = arith.addf %2, %4 : vector<128x32xf32>
    %6 = arith.negf %5 : vector<128x32xf32>
    %7 = math.exp %6 : vector<128x32xf32>
    %cst_5 = arith.constant 1.000000e+00 : f32
    %8 = vector.broadcast %cst_5 : f32 to vector<128x32xf32>
    %9 = arith.addf %8, %7 : vector<128x32xf32>
    %10 = arith.divf %8, %9 : vector<128x32xf32>
    %11 = arith.mulf %5, %10 : vector<128x32xf32>
    %12 = arith.truncf %11 : vector<128x32xf32> to vector<128x32xbf16>
    %c0_6 = arith.constant 0 : index
    %c0_7 = arith.constant 0 : index
    %13 = vector.load %arg4[%c0_6, %c0_7] : memref<128x32xbf16, #tpu.memory_space<vmem>>, vector<128x32xbf16>
    tpu.vector_store %arg4[%c0_6, %c0_7], %12 {strides = array<i32>} : memref<128x32xbf16, #tpu.memory_space<vmem>>, vector<128x32xbf16>,
    return
  }
  func.func @transform_0(%arg0: i32) -> (i32, i32) {
    %c0_i32 = arith.constant 0 : i32
    %c0_i32_0 = arith.constant 0 : i32
    return %arg0, %c0_i32 : i32, i32
  }
  func.func @transform_1(%arg0: i32) -> (i32, i32) {
    %c0_i32 = arith.constant 0 : i32
    %c0_i32_0 = arith.constant 0 : i32
    %c0_i32_1 = arith.constant 0 : i32
    return %c0_i32, %c0_i32_0 : i32, i32
  }
  func.func @transform_2(%arg0: i32) -> (i32, i32) {
    %c0_i32 = arith.constant 0 : i32
    %c0_i32_0 = arith.constant 0 : i32
    %c0_i32_1 = arith.constant 0 : i32
    return %c0_i32, %c0_i32_0 : i32, i32
  }
  func.func @transform_3(%arg0: i32) -> (i32, i32) {
    %c0_i32 = arith.constant 0 : i32
    %c0_i32_0 = arith.constant 0 : i32
    return %arg0, %c0_i32 : i32, i32
  }
}

module attributes {stable_mosaic.version = 11 : i64} {
  func.func @_mm2_kernel(%arg0: i32, %arg1: memref<64x288xbf16, #tpu.memory_space<vmem>>, %arg2: memref<288x64xbf16, #tpu.memory_space<vmem>>, %arg3: memref<1x64xf32, #tpu.memory_space<vmem>>, %arg4: memref<64x64xbf16, #tpu.memory_space<vmem>>, %arg5: memref<1x64xf32, #tpu.memory_space<vmem>>, %arg6: memref<64x64xbf16, #tpu.memory_space<vmem>>) attributes {dimension_semantics = [#tpu.dimension_semantics<parallel>], iteration_bounds = array<i64: 1>, scalar_prefetch = 0 : i64, scratch_operands = 0 : i64, tpu.core_type = #tpu.core_type<tc>, window_params = [{transform_indices = @transform_0, window_bounds = array<i64: 64, 288>}, {pipeline_mode = #tpu.pipeline_mode<synchronous>, transform_indices = @transform_1, window_bounds = array<i64: 288, 64>}, {pipeline_mode = #tpu.pipeline_mode<synchronous>, transform_indices = @transform_2, window_bounds = array<i64: 1, 64>}, {pipeline_mode = #tpu.pipeline_mode<synchronous>, transform_indices = @transform_3, window_bounds = array<i64: 64, 64>}, {pipeline_mode = #tpu.pipeline_mode<synchronous>, transform_indices = @transform_4, window_bounds = array<i64: 1, 64>}, {transform_indices = @transform_5, window_bounds = array<i64: 64, 64>}]} {
    %c0 = arith.constant 0 : index
    %c0_0 = arith.constant 0 : index
    %0 = vector.load %arg1[%c0, %c0_0] : memref<64x288xbf16, #tpu.memory_space<vmem>>, vector<64x288xbf16>
    %c0_1 = arith.constant 0 : index
    %c0_2 = arith.constant 0 : index
    %1 = vector.load %arg2[%c0_1, %c0_2] : memref<288x64xbf16, #tpu.memory_space<vmem>>, vector<288x64xbf16>
    %cst = arith.constant dense<0.000000e+00> : vector<64x64xf32>
    %2 = tpu.matmul %0, %1, %cst {dimension_numbers = #tpu.dot_dimension_numbers<[1], [0], [0], [1], [0, 0, 1, 1], [], []>} : vector<64x288xbf16>, vector<288x64xbf16>, vector<64x64xf32> -> vector<64x64xf32>
    %c0_3 = arith.constant 0 : index
    %c0_4 = arith.constant 0 : index
    %3 = vector.load %arg3[%c0_3, %c0_4] : memref<1x64xf32, #tpu.memory_space<vmem>>, vector<1x64xf32>
    %4 = vector.broadcast %3 : vector<1x64xf32> to vector<64x64xf32>
    %5 = arith.addf %2, %4 : vector<64x64xf32>
    %6 = arith.negf %5 : vector<64x64xf32>
    %7 = math.exp %6 : vector<64x64xf32>
    %cst_5 = arith.constant 1.000000e+00 : f32
    %8 = vector.broadcast %cst_5 : f32 to vector<64x64xf32>
    %9 = arith.addf %8, %7 : vector<64x64xf32>
    %10 = arith.divf %8, %9 : vector<64x64xf32>
    %11 = arith.mulf %5, %10 : vector<64x64xf32>
    %12 = arith.truncf %11 : vector<64x64xf32> to vector<64x64xbf16>
    %c0_6 = arith.constant 0 : index
    %c0_7 = arith.constant 0 : index
    %13 = vector.load %arg4[%c0_6, %c0_7] : memref<64x64xbf16, #tpu.memory_space<vmem>>, vector<64x64xbf16>
    %cst_8 = arith.constant dense<0.000000e+00> : vector<64x64xf32>
    %14 = tpu.matmul %12, %13, %cst_8 {dimension_numbers = #tpu.dot_dimension_numbers<[1], [0], [0], [1], [0, 0, 1, 1], [], []>} : vector<64x64xbf16>, vector<64x64xbf16>, vector<64x64xf32> -> vector<64x64xf32>
    %c0_9 = arith.constant 0 : index
    %c0_10 = arith.constant 0 : index
    %15 = vector.load %arg5[%c0_9, %c0_10] : memref<1x64xf32, #tpu.memory_space<vmem>>, vector<1x64xf32>
    %16 = vector.broadcast %15 : vector<1x64xf32> to vector<64x64xf32>
    %17 = arith.addf %14, %16 : vector<64x64xf32>
    %18 = arith.negf %17 : vector<64x64xf32>
    %19 = math.exp %18 : vector<64x64xf32>
    %cst_11 = arith.constant 1.000000e+00 : f32
    %20 = vector.broadcast %cst_11 : f32 to vector<64x64xf32>
    %21 = arith.addf %20, %19 : vector<64x64xf32>
    %22 = arith.divf %20, %21 : vector<64x64xf32>
    %23 = arith.mulf %17, %22 : vector<64x64xf32>
    %24 = arith.truncf %23 : vector<64x64xf32> to vector<64x64xbf16>
    %c0_12 = arith.constant 0 : index
    %c0_13 = arith.constant 0 : index
    %25 = vector.load %arg6[%c0_12, %c0_13] : memref<64x64xbf16, #tpu.memory_space<vmem>>, vector<64x64xbf16>
    tpu.vector_store %arg6[%c0_12, %c0_13], %24 {strides = array<i32>} : memref<64x64xbf16, #tpu.memory_space<vmem>>, vector<64x64xbf16>,
    return
  }
  func.func @transform_0(%arg0: i32) -> (i32, i32) {
    %c0_i32 = arith.constant 0 : i32
    %c0_i32_0 = arith.constant 0 : i32
    return %arg0, %c0_i32 : i32, i32
  }
  func.func @transform_1(%arg0: i32) -> (i32, i32) {
    %c0_i32 = arith.constant 0 : i32
    %c0_i32_0 = arith.constant 0 : i32
    %c0_i32_1 = arith.constant 0 : i32
    return %c0_i32, %c0_i32_0 : i32, i32
  }
  func.func @transform_2(%arg0: i32) -> (i32, i32) {
    %c0_i32 = arith.constant 0 : i32
    %c0_i32_0 = arith.constant 0 : i32
    %c0_i32_1 = arith.constant 0 : i32
    return %c0_i32, %c0_i32_0 : i32, i32
  }
  func.func @transform_3(%arg0: i32) -> (i32, i32) {
    %c0_i32 = arith.constant 0 : i32
    %c0_i32_0 = arith.constant 0 : i32
    %c0_i32_1 = arith.constant 0 : i32
    return %c0_i32, %c0_i32_0 : i32, i32
  }
  func.func @transform_4(%arg0: i32) -> (i32, i32) {
    %c0_i32 = arith.constant 0 : i32
    %c0_i32_0 = arith.constant 0 : i32
    %c0_i32_1 = arith.constant 0 : i32
    return %c0_i32, %c0_i32_0 : i32, i32
  }
  func.func @transform_5(%arg0: i32) -> (i32, i32) {
    %c0_i32 = arith.constant 0 : i32
    %c0_i32_0 = arith.constant 0 : i32
    return %arg0, %c0_i32 : i32, i32
  }
}

module attributes {stable_mosaic.version = 11 : i64} {
  func.func @_mm2_kernel(%arg0: i32, %arg1: memref<64x576xbf16, #tpu.memory_space<vmem>>, %arg2: memref<576x96xbf16, #tpu.memory_space<vmem>>, %arg3: memref<1x96xf32, #tpu.memory_space<vmem>>, %arg4: memref<96x128xbf16, #tpu.memory_space<vmem>>, %arg5: memref<1x128xf32, #tpu.memory_space<vmem>>, %arg6: memref<64x128xf32, #tpu.memory_space<vmem>>) attributes {dimension_semantics = [#tpu.dimension_semantics<parallel>], iteration_bounds = array<i64: 1>, scalar_prefetch = 0 : i64, scratch_operands = 0 : i64, tpu.core_type = #tpu.core_type<tc>, window_params = [{transform_indices = @transform_0, window_bounds = array<i64: 64, 576>}, {pipeline_mode = #tpu.pipeline_mode<synchronous>, transform_indices = @transform_1, window_bounds = array<i64: 576, 96>}, {pipeline_mode = #tpu.pipeline_mode<synchronous>, transform_indices = @transform_2, window_bounds = array<i64: 1, 96>}, {pipeline_mode = #tpu.pipeline_mode<synchronous>, transform_indices = @transform_3, window_bounds = array<i64: 96, 128>}, {pipeline_mode = #tpu.pipeline_mode<synchronous>, transform_indices = @transform_4, window_bounds = array<i64: 1, 128>}, {transform_indices = @transform_5, window_bounds = array<i64: 64, 128>}]} {
    %c0 = arith.constant 0 : index
    %c0_0 = arith.constant 0 : index
    %0 = vector.load %arg1[%c0, %c0_0] : memref<64x576xbf16, #tpu.memory_space<vmem>>, vector<64x576xbf16>
    %c0_1 = arith.constant 0 : index
    %c0_2 = arith.constant 0 : index
    %1 = vector.load %arg2[%c0_1, %c0_2] : memref<576x96xbf16, #tpu.memory_space<vmem>>, vector<576x96xbf16>
    %cst = arith.constant dense<0.000000e+00> : vector<64x96xf32>
    %2 = tpu.matmul %0, %1, %cst {dimension_numbers = #tpu.dot_dimension_numbers<[1], [0], [0], [1], [0, 0, 1, 1], [], []>} : vector<64x576xbf16>, vector<576x96xbf16>, vector<64x96xf32> -> vector<64x96xf32>
    %c0_3 = arith.constant 0 : index
    %c0_4 = arith.constant 0 : index
    %3 = vector.load %arg3[%c0_3, %c0_4] : memref<1x96xf32, #tpu.memory_space<vmem>>, vector<1x96xf32>
    %4 = vector.broadcast %3 : vector<1x96xf32> to vector<64x96xf32>
    %5 = arith.addf %2, %4 : vector<64x96xf32>
    %6 = arith.negf %5 : vector<64x96xf32>
    %7 = math.exp %6 : vector<64x96xf32>
    %cst_5 = arith.constant 1.000000e+00 : f32
    %8 = vector.broadcast %cst_5 : f32 to vector<64x96xf32>
    %9 = arith.addf %8, %7 : vector<64x96xf32>
    %10 = arith.divf %8, %9 : vector<64x96xf32>
    %11 = arith.mulf %5, %10 : vector<64x96xf32>
    %12 = arith.truncf %11 : vector<64x96xf32> to vector<64x96xbf16>
    %c0_6 = arith.constant 0 : index
    %c0_7 = arith.constant 0 : index
    %13 = vector.load %arg4[%c0_6, %c0_7] : memref<96x128xbf16, #tpu.memory_space<vmem>>, vector<96x128xbf16>
    %cst_8 = arith.constant dense<0.000000e+00> : vector<64x128xf32>
    %14 = tpu.matmul %12, %13, %cst_8 {dimension_numbers = #tpu.dot_dimension_numbers<[1], [0], [0], [1], [0, 0, 1, 1], [], []>} : vector<64x96xbf16>, vector<96x128xbf16>, vector<64x128xf32> -> vector<64x128xf32>
    %c0_9 = arith.constant 0 : index
    %c0_10 = arith.constant 0 : index
    %15 = vector.load %arg5[%c0_9, %c0_10] : memref<1x128xf32, #tpu.memory_space<vmem>>, vector<1x128xf32>
    %16 = vector.broadcast %15 : vector<1x128xf32> to vector<64x128xf32>
    %17 = arith.addf %14, %16 : vector<64x128xf32>
    %c0_11 = arith.constant 0 : index
    %c0_12 = arith.constant 0 : index
    %18 = vector.load %arg6[%c0_11, %c0_12] : memref<64x128xf32, #tpu.memory_space<vmem>>, vector<64x128xf32>
    tpu.vector_store %arg6[%c0_11, %c0_12], %17 {strides = array<i32>} : memref<64x128xf32, #tpu.memory_space<vmem>>, vector<64x128xf32>,
    return
  }
  func.func @transform_0(%arg0: i32) -> (i32, i32) {
    %c0_i32 = arith.constant 0 : i32
    %c0_i32_0 = arith.constant 0 : i32
    return %arg0, %c0_i32 : i32, i32
  }
  func.func @transform_1(%arg0: i32) -> (i32, i32) {
    %c0_i32 = arith.constant 0 : i32
    %c0_i32_0 = arith.constant 0 : i32
    %c0_i32_1 = arith.constant 0 : i32
    return %c0_i32, %c0_i32_0 : i32, i32
  }
  func.func @transform_2(%arg0: i32) -> (i32, i32) {
    %c0_i32 = arith.constant 0 : i32
    %c0_i32_0 = arith.constant 0 : i32
    %c0_i32_1 = arith.constant 0 : i32
    return %c0_i32, %c0_i32_0 : i32, i32
  }
  func.func @transform_3(%arg0: i32) -> (i32, i32) {
    %c0_i32 = arith.constant 0 : i32
    %c0_i32_0 = arith.constant 0 : i32
    %c0_i32_1 = arith.constant 0 : i32
    return %c0_i32, %c0_i32_0 : i32, i32
  }
  func.func @transform_4(%arg0: i32) -> (i32, i32) {
    %c0_i32 = arith.constant 0 : i32
    %c0_i32_0 = arith.constant 0 : i32
    %c0_i32_1 = arith.constant 0 : i32
    return %c0_i32, %c0_i32_0 : i32, i32
  }
  func.func @transform_5(%arg0: i32) -> (i32, i32) {
    %c0_i32 = arith.constant 0 : i32
    %c0_i32_0 = arith.constant 0 : i32
    return %arg0, %c0_i32 : i32, i32
  }
}

module attributes {stable_mosaic.version = 11 : i64} {
  func.func @_mm1_kernel(%arg0: i32, %arg1: memref<64x576xbf16, #tpu.memory_space<vmem>>, %arg2: memref<576x64xbf16, #tpu.memory_space<vmem>>, %arg3: memref<1x64xf32, #tpu.memory_space<vmem>>, %arg4: memref<64x64xbf16, #tpu.memory_space<vmem>>) attributes {dimension_semantics = [#tpu.dimension_semantics<parallel>], iteration_bounds = array<i64: 1>, scalar_prefetch = 0 : i64, scratch_operands = 0 : i64, tpu.core_type = #tpu.core_type<tc>, window_params = [{transform_indices = @transform_0, window_bounds = array<i64: 64, 576>}, {pipeline_mode = #tpu.pipeline_mode<synchronous>, transform_indices = @transform_1, window_bounds = array<i64: 576, 64>}, {pipeline_mode = #tpu.pipeline_mode<synchronous>, transform_indices = @transform_2, window_bounds = array<i64: 1, 64>}, {transform_indices = @transform_3, window_bounds = array<i64: 64, 64>}]} {
    %c0 = arith.constant 0 : index
    %c0_0 = arith.constant 0 : index
    %0 = vector.load %arg1[%c0, %c0_0] : memref<64x576xbf16, #tpu.memory_space<vmem>>, vector<64x576xbf16>
    %c0_1 = arith.constant 0 : index
    %c0_2 = arith.constant 0 : index
    %1 = vector.load %arg2[%c0_1, %c0_2] : memref<576x64xbf16, #tpu.memory_space<vmem>>, vector<576x64xbf16>
    %cst = arith.constant dense<0.000000e+00> : vector<64x64xf32>
    %2 = tpu.matmul %0, %1, %cst {dimension_numbers = #tpu.dot_dimension_numbers<[1], [0], [0], [1], [0, 0, 1, 1], [], []>} : vector<64x576xbf16>, vector<576x64xbf16>, vector<64x64xf32> -> vector<64x64xf32>
    %c0_3 = arith.constant 0 : index
    %c0_4 = arith.constant 0 : index
    %3 = vector.load %arg3[%c0_3, %c0_4] : memref<1x64xf32, #tpu.memory_space<vmem>>, vector<1x64xf32>
    %4 = vector.broadcast %3 : vector<1x64xf32> to vector<64x64xf32>
    %5 = arith.addf %2, %4 : vector<64x64xf32>
    %6 = arith.negf %5 : vector<64x64xf32>
    %7 = math.exp %6 : vector<64x64xf32>
    %cst_5 = arith.constant 1.000000e+00 : f32
    %8 = vector.broadcast %cst_5 : f32 to vector<64x64xf32>
    %9 = arith.addf %8, %7 : vector<64x64xf32>
    %10 = arith.divf %8, %9 : vector<64x64xf32>
    %11 = arith.mulf %5, %10 : vector<64x64xf32>
    %12 = arith.truncf %11 : vector<64x64xf32> to vector<64x64xbf16>
    %c0_6 = arith.constant 0 : index
    %c0_7 = arith.constant 0 : index
    %13 = vector.load %arg4[%c0_6, %c0_7] : memref<64x64xbf16, #tpu.memory_space<vmem>>, vector<64x64xbf16>
    tpu.vector_store %arg4[%c0_6, %c0_7], %12 {strides = array<i32>} : memref<64x64xbf16, #tpu.memory_space<vmem>>, vector<64x64xbf16>,
    return
  }
  func.func @transform_0(%arg0: i32) -> (i32, i32) {
    %c0_i32 = arith.constant 0 : i32
    %c0_i32_0 = arith.constant 0 : i32
    return %arg0, %c0_i32 : i32, i32
  }
  func.func @transform_1(%arg0: i32) -> (i32, i32) {
    %c0_i32 = arith.constant 0 : i32
    %c0_i32_0 = arith.constant 0 : i32
    %c0_i32_1 = arith.constant 0 : i32
    return %c0_i32, %c0_i32_0 : i32, i32
  }
  func.func @transform_2(%arg0: i32) -> (i32, i32) {
    %c0_i32 = arith.constant 0 : i32
    %c0_i32_0 = arith.constant 0 : i32
    %c0_i32_1 = arith.constant 0 : i32
    return %c0_i32, %c0_i32_0 : i32, i32
  }
  func.func @transform_3(%arg0: i32) -> (i32, i32) {
    %c0_i32 = arith.constant 0 : i32
    %c0_i32_0 = arith.constant 0 : i32
    return %arg0, %c0_i32 : i32, i32
  }
}

</mosaic_0001>

<llo_original>
// kernel: yolo_multitask_forward.6
$region0: #{yolo_multitask_forward.6}
  #allocation0 [shape = 'u32[]', space=smem, size = 0x4, offset = 0x4, fixed_abs, tag = 'smem constant byte address 0x4 - core index']
  #allocation1 [shape = 'u32[144,128]{1,0:T(1,128)}', space=vmem, size = 0x12000, scoped, tag = 'internal scratch']
  %s0 = inlined_call_operand.vmem [shape: bf16[128,144], index: 0, kind: input, shape index: {}]
  %s1 = inlined_call_operand.vmem [shape: bf16[144,32], index: 1, kind: input, shape index: {}]
  %s2 = inlined_call_operand.vmem [shape: f32[1,32], index: 2, kind: input, shape index: {}]
  %s3 = inlined_call_operand.vmem [shape: bf16[128,32], index: 3, kind: output, shape index: {}]
  %s4 = sld [smem:[#allocation0]]
  $region22: #{yolo_multitask_forward.6} parent=0
    _
  %s6 = ssub.s32 1, %s4
  %s7 = scalar_select 0, %s6, %s4
  // Predicated region
  $region2: #{yolo_multitask_forward.6} parent=0 // pred_check
    _
  $region3: #{yolo_multitask_forward.6} parent=0 // pred_check_branch
    %9 = sbr.rel (0) target = $region5
  $region4: #{yolo_multitask_forward.6} parent=0 // pred_region
    _
  $region5: #{yolo_multitask_forward.6} parent=0 // pred_fallthru
    _
  // Predicated region
  $region6: #{yolo_multitask_forward.6} parent=0 // pred_check
    _
  $region7: #{yolo_multitask_forward.6} parent=0 // pred_check_branch
    %11 = sbr.rel (0) target = $region9
  $region8: #{yolo_multitask_forward.6} parent=0 // pred_region
    _
  $region9: #{yolo_multitask_forward.6} parent=0 // pred_fallthru
    _
  // Predicated region
  $region10: #{yolo_multitask_forward.6} parent=0 // pred_check
    _
  $region11: #{yolo_multitask_forward.6} parent=0 // pred_check_branch
    %13 = sbr.rel (0) target = $region13
  $region12: #{yolo_multitask_forward.6} parent=0 // pred_region
    _
  $region13: #{yolo_multitask_forward.6} parent=0 // pred_fallthru
    _
  %v15 = vld [vmem:[%s0] sm:$0xff]
  %v16 = vld [vmem:[%s0 + $0x8] sm:$0xff]
  %v17 = vld [vmem:[%s0 + $0x10] sm:$0xff]
  %v18 = vld [vmem:[%s0 + $0x18] sm:$0xff]
  %v19 = vld [vmem:[%s0 + $0x20] sm:$0xff]
  %v20 = vld [vmem:[%s0 + $0x28] sm:$0xff]
  %v21 = vld [vmem:[%s0 + $0x30] sm:$0xff]
  %v22 = vld [vmem:[%s0 + $0x38] sm:$0xff]
  %v23 = vld [vmem:[%s0 + $0x40] sm:$0xff]
  %v24 = vld [vmem:[%s0 + $0x48] sm:$0xff]
  %v25 = vld [vmem:[%s0 + $0x50] sm:$0xff]
  %v26 = vld [vmem:[%s0 + $0x58] sm:$0xff]
  %v27 = vld [vmem:[%s0 + $0x60] sm:$0xff]
  %v28 = vld [vmem:[%s0 + $0x68] sm:$0xff]
  %v29 = vld [vmem:[%s0 + $0x70] sm:$0xff]
  %v30 = vld [vmem:[%s0 + $0x78] sm:$0xff]
  %v31 = vld [vmem:[%s1] sm:$0xf]
  %v32 = vld [vmem:[%s1 + $0x4] sm:$0xf]
  %v33 = vld [vmem:[%s1 + $0x8] sm:$0xf]
  %v34 = vld [vmem:[%s1 + $0xc] sm:$0xf]
  %v35 = vld [vmem:[%s1 + $0x10] sm:$0xf]
  %v36 = vld [vmem:[%s1 + $0x14] sm:$0xf]
  %v37 = vld [vmem:[%s1 + $0x18] sm:$0xf]
  %v38 = vld [vmem:[%s1 + $0x1c] sm:$0xf]
  %v39 = vld [vmem:[%s1 + $0x20] sm:$0xf]
  %v40 = vld [vmem:[%s1 + $0x24] sm:$0xf]
  %v41 = vld [vmem:[%s1 + $0x28] sm:$0xf]
  %v42 = vld [vmem:[%s1 + $0x2c] sm:$0xf]
  %v43 = vld [vmem:[%s1 + $0x30] sm:$0xf]
  %v44 = vld [vmem:[%s1 + $0x34] sm:$0xf]
  %v45 = vld [vmem:[%s1 + $0x38] sm:$0xf]
  %v46 = vld [vmem:[%s1 + $0x3c] sm:$0xf]
  %v47 = vld [vmem:[%s1 + $0x40] sm:$0xf]
  %v48 = vld [vmem:[%s1 + $0x44] sm:$0xf]
  %v49 = vld [vmem:[%s2] sm:$0x1]
  %v51 = vlaneseq
  %v52 = vshrl.u32 %v51, 7
  %v53 = vsub.s32 0, %v52
  %v54 = vrot.slane %v49, %v53
  %v72 = vunpack.c.l.b16 %v15
  %v73 = vunpack.c.h.b16 %v15
  %v74 = vunpack.c.l.b16 %v16
  %v75 = vunpack.c.h.b16 %v16
  %v76 = vunpack.c.l.b16 %v17
  %v77 = vunpack.c.h.b16 %v17
  %v78 = vunpack.c.l.b16 %v18
  %v79 = vunpack.c.h.b16 %v18
  %v80 = vunpack.c.l.b16 %v19
  %v81 = vunpack.c.h.b16 %v19
  %v82 = vunpack.c.l.b16 %v20
  %v83 = vunpack.c.h.b16 %v20
  %v84 = vunpack.c.l.b16 %v21
  %v85 = vunpack.c.h.b16 %v21
  %v86 = vunpack.c.l.b16 %v22
  %v87 = vunpack.c.h.b16 %v22
  %v88 = vunpack.c.l.b16 %v23
  %v89 = vunpack.c.h.b16 %v23
  %v90 = vunpack.c.l.b16 %v24
  %v91 = vunpack.c.h.b16 %v24
  %v92 = vunpack.c.l.b16 %v25
  %v93 = vunpack.c.h.b16 %v25
  %v94 = vunpack.c.l.b16 %v26
  %v95 = vunpack.c.h.b16 %v26
  %v96 = vunpack.c.l.b16 %v27
  %v97 = vunpack.c.h.b16 %v27
  %v98 = vunpack.c.l.b16 %v28
  %v99 = vunpack.c.h.b16 %v28
  %v100 = vunpack.c.l.b16 %v29
  %v101 = vunpack.c.h.b16 %v29
  %v102 = vunpack.c.l.b16 %v30
  %v103 = vunpack.c.h.b16 %v30
  %v104 = vpack.c.b16 %v74, %v72
  %v105 = vpack.c.b16 %v75, %v73
  %v106 = vpack.c.b16 %v78, %v76
  %v107 = vpack.c.b16 %v79, %v77
  %v108 = vpack.c.b16 %v82, %v80
  %v109 = vpack.c.b16 %v83, %v81
  %v110 = vpack.c.b16 %v86, %v84
  %v111 = vpack.c.b16 %v87, %v85
  %v112 = vpack.c.b16 %v90, %v88
  %v113 = vpack.c.b16 %v91, %v89
  %v114 = vpack.c.b16 %v94, %v92
  %v115 = vpack.c.b16 %v95, %v93
  %v116 = vpack.c.b16 %v98, %v96
  %v117 = vpack.c.b16 %v99, %v97
  %v118 = vpack.c.b16 %v102, %v100
  %v119 = vpack.c.b16 %v103, %v101
  %v146 = vunpack.c.l.b16 %v31
  %v147 = vunpack.c.l.b16 %v32
  %v148 = vunpack.c.l.b16 %v33
  %v149 = vunpack.c.l.b16 %v34
  %v150 = vunpack.c.l.b16 %v35
  %v151 = vunpack.c.l.b16 %v36
  %v152 = vunpack.c.l.b16 %v37
  %v153 = vunpack.c.l.b16 %v38
  %v154 = vunpack.c.l.b16 %v39
  %v155 = vunpack.c.l.b16 %v40
  %v156 = vunpack.c.l.b16 %v41
  %v157 = vunpack.c.l.b16 %v42
  %v158 = vunpack.c.l.b16 %v43
  %v159 = vunpack.c.l.b16 %v44
  %v160 = vunpack.c.l.b16 %v45
  %v161 = vunpack.c.l.b16 %v46
  %v162 = vunpack.c.l.b16 %v47
  %v163 = vunpack.c.l.b16 %v48
  %v164 = vpack.c.b16 %v147, %v146
  %v165 = vpack.c.b16 %v149, %v148
  %v166 = vpack.c.b16 %v151, %v150
  %v167 = vpack.c.b16 %v153, %v152
  %v168 = vpack.c.b16 %v155, %v154
  %v169 = vpack.c.b16 %v157, %v156
  %v170 = vpack.c.b16 %v159, %v158
  %v171 = vpack.c.b16 %v161, %v160
  %v172 = vpack.c.b16 %v163, %v162
  %vm182 = vcmask 130048
  %v184 = vsel %vm182, %v105, 0
  %v187 = vsel %vm182, %v107, 0
  %v190 = vsel %vm182, %v109, 0
  %v193 = vsel %vm182, %v111, 0
  %v196 = vsel %vm182, %v113, 0
  %v199 = vsel %vm182, %v115, 0
  %v202 = vsel %vm182, %v117, 0
  %v205 = vsel %vm182, %v119, 0
  %207 = vmatprep.subr.bf16.mxu0 0
  %208 = vmatpush1.bf16.msra.mxu0 %v164
  %209 = vmatprep.subr.bf16.mxu0 0
  %210 = vmatpush1.bf16.msra.mxu0 %v165
  %211 = vmatprep.subr.bf16.mxu0 0
  %212 = vmatpush1.bf16.msra.mxu0 %v166
  %213 = vmatprep.subr.bf16.mxu0 0
  %214 = vmatpush1.bf16.msra.mxu0 %v167
  %215 = vmatprep.subr.bf16.mxu0 0
  %216 = vmatpush1.bf16.msra.mxu0 %v168
  %217 = vmatprep.subr.bf16.mxu0 0
  %218 = vmatpush1.bf16.msra.mxu0 %v169
  %219 = vmatprep.subr.bf16.mxu0 0
  %220 = vmatpush1.bf16.msra.mxu0 %v170
  %221 = vmatprep.subr.bf16.mxu0 0
  %222 = vmatpush1.bf16.msra.mxu0 %v171
  %223 = vmatprep.subr.bf16.mxu0 0
  %224 = vmatpush1.bf16.msra.mxu0 %v172
  %225 = vmatprep.subr.bf16.mxu0 0
  %226 = vmatpush1.bf16.msra.mxu0 0
  %227 = vmatprep.subr.bf16.mxu0 0
  %228 = vmatpush1.bf16.msra.mxu0 0
  %229 = vmatprep.subr.bf16.mxu0 0
  %230 = vmatpush1.bf16.msra.mxu0 0
  %231 = vmatprep.subr.bf16.mxu0 0
  %232 = vmatpush1.bf16.msra.mxu0 0
  %233 = vmatprep.subr.bf16.mxu0 0
  %234 = vmatpush1.bf16.msra.mxu0 0
  %235 = vmatprep.subr.bf16.mxu0 0
  %236 = vmatpush1.bf16.msra.mxu0 0
  %237 = vmatprep.subr.bf16.mxu0 0
  %238 = vmatpush1.bf16.msra.mxu0 0
  %239 = vmatprep.mubr.bf16.mxu0 %v184
  %240 = vmatmul.mubr.bf16.gmra.mrb[0].mxu0 %v104
  %v241 = vpop.f32.mrb[0].mxu0
  %v242 = vadd.f32 %v54, %v241
  %v243 = vpop.f32.mrb[0].mxu0
  %v244 = vpop.f32.mrb[0].mxu0
  %v245 = vadd.f32 %v54, %v244
  %v246 = vpop.f32.mrb[0].mxu0
  %247 = vmatprep.mubr.bf16.mxu0 %v187
  %248 = vmatmul.mubr.bf16.gmra.mrb[0].mxu0 %v106
  %v249 = vpop.f32.mrb[0].mxu0
  %v250 = vadd.f32 %v54, %v249
  %v251 = vpop.f32.mrb[0].mxu0
  %v252 = vpop.f32.mrb[0].mxu0
  %v253 = vadd.f32 %v54, %v252
  %v254 = vpop.f32.mrb[0].mxu0
  %255 = vmatprep.mubr.bf16.mxu0 %v190
  %256 = vmatmul.mubr.bf16.gmra.mrb[0].mxu0 %v108
  %v257 = vpop.f32.mrb[0].mxu0
  %v258 = vadd.f32 %v54, %v257
  %v259 = vpop.f32.mrb[0].mxu0
  %v260 = vpop.f32.mrb[0].mxu0
  %v261 = vadd.f32 %v54, %v260
  %v262 = vpop.f32.mrb[0].mxu0
  %263 = vmatprep.mubr.bf16.mxu0 %v193
  %264 = vmatmul.mubr.bf16.gmra.mrb[0].mxu0 %v110
  %v265 = vpop.f32.mrb[0].mxu0
  %v266 = vadd.f32 %v54, %v265
  %v267 = vpop.f32.mrb[0].mxu0
  %v268 = vpop.f32.mrb[0].mxu0
  %v269 = vadd.f32 %v54, %v268
  %v270 = vpop.f32.mrb[0].mxu0
  %271 = vmatprep.mubr.bf16.mxu0 %v196
  %272 = vmatmul.mubr.bf16.gmra.mrb[0].mxu0 %v112
  %v273 = vpop.f32.mrb[0].mxu0
  %v274 = vadd.f32 %v54, %v273
  %v275 = vpop.f32.mrb[0].mxu0
  %v276 = vpop.f32.mrb[0].mxu0
  %v277 = vadd.f32 %v54, %v276
  %v278 = vpop.f32.mrb[0].mxu0
  %279 = vmatprep.mubr.bf16.mxu0 %v199
  %280 = vmatmul.mubr.bf16.gmra.mrb[0].mxu0 %v114
  %v281 = vpop.f32.mrb[0].mxu0
  %v282 = vadd.f32 %v54, %v281
  %v283 = vpop.f32.mrb[0].mxu0
  %v284 = vpop.f32.mrb[0].mxu0
  %v285 = vadd.f32 %v54, %v284
  %v286 = vpop.f32.mrb[0].mxu0
  %287 = vmatprep.mubr.bf16.mxu0 %v202
  %288 = vmatmul.mubr.bf16.gmra.mrb[0].mxu0 %v116
  %v289 = vpop.f32.mrb[0].mxu0
  %v290 = vadd.f32 %v54, %v289
  %v291 = vpop.f32.mrb[0].mxu0
  %v292 = vpop.f32.mrb[0].mxu0
  %v293 = vadd.f32 %v54, %v292
  %v294 = vpop.f32.mrb[0].mxu0
  %295 = vmatprep.mubr.bf16.mxu0 %v205
  %296 = vmatmul.mubr.bf16.gmra.mrb[0].mxu0 %v118
  %v297 = vpop.f32.mrb[0].mxu0
  %v298 = vadd.f32 %v54, %v297
  %v299 = vpop.f32.mrb[0].mxu0
  %v300 = vpop.f32.mrb[0].mxu0
  %v301 = vadd.f32 %v54, %v300
  %v302 = vpop.f32.mrb[0].mxu0
  %303 = vdwg.mxu0
  %v304 = vxor.u32 %v242, 2147483648
  %v305 = vxor.u32 %v245, 2147483648
  %v306 = vxor.u32 %v250, 2147483648
  %v307 = vxor.u32 %v253, 2147483648
  %v308 = vxor.u32 %v258, 2147483648
  %v309 = vxor.u32 %v261, 2147483648
  %v310 = vxor.u32 %v266, 2147483648
  %v311 = vxor.u32 %v269, 2147483648
  %v312 = vxor.u32 %v274, 2147483648
  %v313 = vxor.u32 %v277, 2147483648
  %v314 = vxor.u32 %v282, 2147483648
  %v315 = vxor.u32 %v285, 2147483648
  %v316 = vxor.u32 %v290, 2147483648
  %v317 = vxor.u32 %v293, 2147483648
  %v318 = vxor.u32 %v298, 2147483648
  %v319 = vxor.u32 %v301, 2147483648
  %v320 = vmul.f32 %v304, 1.442695
  %v321 = vpow.pop %v320
  %v322 = vmul.f32 %v305, 1.442695
  %v323 = vpow.pop %v322
  %v324 = vmul.f32 %v306, 1.442695
  %v325 = vpow.pop %v324
  %v326 = vmul.f32 %v307, 1.442695
  %v327 = vpow.pop %v326
  %v328 = vmul.f32 %v308, 1.442695
  %v329 = vpow.pop %v328
  %v330 = vmul.f32 %v309, 1.442695
  %v331 = vpow.pop %v330
  %v332 = vmul.f32 %v310, 1.442695
  %v333 = vpow.pop %v332
  %v334 = vmul.f32 %v311, 1.442695
  %v335 = vpow.pop %v334
  %v336 = vmul.f32 %v312, 1.442695
  %v337 = vpow.pop %v336
  %v338 = vmul.f32 %v313, 1.442695
  %v339 = vpow.pop %v338
  %v340 = vmul.f32 %v314, 1.442695
  %v341 = vpow.pop %v340
  %v342 = vmul.f32 %v315, 1.442695
  %v343 = vpow.pop %v342
  %v344 = vmul.f32 %v316, 1.442695
  %v345 = vpow.pop %v344
  %v346 = vmul.f32 %v317, 1.442695
  %v347 = vpow.pop %v346
  %v348 = vmul.f32 %v318, 1.442695
  %v349 = vpow.pop %v348
  %v350 = vmul.f32 %v319, 1.442695
  %v351 = vpow.pop %v350
  %v352 = vadd.f32 %v321, 1.0
  %v353 = vadd.f32 %v323, 1.0
  %v354 = vadd.f32 %v325, 1.0
  %v355 = vadd.f32 %v327, 1.0
  %v356 = vadd.f32 %v329, 1.0
  %v357 = vadd.f32 %v331, 1.0
  %v358 = vadd.f32 %v333, 1.0
  %v359 = vadd.f32 %v335, 1.0
  %v360 = vadd.f32 %v337, 1.0
  %v361 = vadd.f32 %v339, 1.0
  %v362 = vadd.f32 %v341, 1.0
  %v363 = vadd.f32 %v343, 1.0
  %v364 = vadd.f32 %v345, 1.0
  %v365 = vadd.f32 %v347, 1.0
  %v366 = vadd.f32 %v349, 1.0
  %v367 = vadd.f32 %v351, 1.0
  %v368 = vrcp.pop %v352
  %v369 = vmul.f32 1.0, %v368
  %v370 = vrcp.pop %v353
  %v371 = vmul.f32 1.0, %v370
  %v372 = vrcp.pop %v354
  %v373 = vmul.f32 1.0, %v372
  %v374 = vrcp.pop %v355
  %v375 = vmul.f32 1.0, %v374
  %v376 = vrcp.pop %v356
  %v377 = vmul.f32 1.0, %v376
  %v378 = vrcp.pop %v357
  %v379 = vmul.f32 1.0, %v378
  %v380 = vrcp.pop %v358
  %v381 = vmul.f32 1.0, %v380
  %v382 = vrcp.pop %v359
  %v383 = vmul.f32 1.0, %v382
  %v384 = vrcp.pop %v360
  %v385 = vmul.f32 1.0, %v384
  %v386 = vrcp.pop %v361
  %v387 = vmul.f32 1.0, %v386
  %v388 = vrcp.pop %v362
  %v389 = vmul.f32 1.0, %v388
  %v390 = vrcp.pop %v363
  %v391 = vmul.f32 1.0, %v390
  %v392 = vrcp.pop %v364
  %v393 = vmul.f32 1.0, %v392
  %v394 = vrcp.pop %v365
  %v395 = vmul.f32 1.0, %v394
  %v396 = vrcp.pop %v366
  %v397 = vmul.f32 1.0, %v396
  %v398 = vrcp.pop %v367
  %v399 = vmul.f32 1.0, %v398
  %v400 = vmul.f32 %v242, %v369
  %v401 = vmul.f32 %v245, %v371
  %v402 = vmul.f32 %v250, %v373
  %v403 = vmul.f32 %v253, %v375
  %v404 = vmul.f32 %v258, %v377
  %v405 = vmul.f32 %v261, %v379
  %v406 = vmul.f32 %v266, %v381
  %v407 = vmul.f32 %v269, %v383
  %v408 = vmul.f32 %v274, %v385
  %v409 = vmul.f32 %v277, %v387
  %v410 = vmul.f32 %v282, %v389
  %v411 = vmul.f32 %v285, %v391
  %v412 = vmul.f32 %v290, %v393
  %v413 = vmul.f32 %v293, %v395
  %v414 = vmul.f32 %v298, %v397
  %v415 = vmul.f32 %v301, %v399
  %v416 = vpack.c.bf16 %v401, %v400
  %v417 = vpack.c.bf16 %v403, %v402
  %v418 = vpack.c.bf16 %v405, %v404
  %v419 = vpack.c.bf16 %v407, %v406
  %v420 = vpack.c.bf16 %v409, %v408
  %v421 = vpack.c.bf16 %v411, %v410
  %v422 = vpack.c.bf16 %v413, %v412
  %v423 = vpack.c.bf16 %v415, %v414
  %v432 = vunpack.c.l.b16 %v416
  %v433 = vunpack.c.h.b16 %v416
  %v434 = vunpack.c.l.b16 %v417
  %v435 = vunpack.c.h.b16 %v417
  %v436 = vunpack.c.l.b16 %v418
  %v437 = vunpack.c.h.b16 %v418
  %v438 = vunpack.c.l.b16 %v419
  %v439 = vunpack.c.h.b16 %v419
  %v440 = vunpack.c.l.b16 %v420
  %v441 = vunpack.c.h.b16 %v420
  %v442 = vunpack.c.l.b16 %v421
  %v443 = vunpack.c.h.b16 %v421
  %v444 = vunpack.c.l.b16 %v422
  %v445 = vunpack.c.h.b16 %v422
  %v446 = vunpack.c.l.b16 %v423
  %v447 = vunpack.c.h.b16 %v423
  %v448 = vpack.c.b16 %v432, %v432
  %v449 = vpack.c.b16 %v433, %v433
  %v450 = vpack.c.b16 %v434, %v434
  %v451 = vpack.c.b16 %v435, %v435
  %v452 = vpack.c.b16 %v436, %v436
  %v453 = vpack.c.b16 %v437, %v437
  %v454 = vpack.c.b16 %v438, %v438
  %v455 = vpack.c.b16 %v439, %v439
  %v456 = vpack.c.b16 %v440, %v440
  %v457 = vpack.c.b16 %v441, %v441
  %v458 = vpack.c.b16 %v442, %v442
  %v459 = vpack.c.b16 %v443, %v443
  %v460 = vpack.c.b16 %v444, %v444
  %v461 = vpack.c.b16 %v445, %v445
  %v462 = vpack.c.b16 %v446, %v446
  %v463 = vpack.c.b16 %v447, %v447
  %vm480 = vcmask 257024
  %481 = vst.msk [vmem:[%s3] sm:$0xf] %vm480, %v448
  %482 = vst.msk [vmem:[%s3 + $0x4] sm:$0xf] %vm480, %v449
  %483 = vst.msk [vmem:[%s3 + $0x8] sm:$0xf] %vm480, %v450
  %484 = vst.msk [vmem:[%s3 + $0xc] sm:$0xf] %vm480, %v451
  %485 = vst.msk [vmem:[%s3 + $0x10] sm:$0xf] %vm480, %v452
  %486 = vst.msk [vmem:[%s3 + $0x14] sm:$0xf] %vm480, %v453
  %487 = vst.msk [vmem:[%s3 + $0x18] sm:$0xf] %vm480, %v454
  %488 = vst.msk [vmem:[%s3 + $0x1c] sm:$0xf] %vm480, %v455
  %489 = vst.msk [vmem:[%s3 + $0x20] sm:$0xf] %vm480, %v456
  %490 = vst.msk [vmem:[%s3 + $0x24] sm:$0xf] %vm480, %v457
  %491 = vst.msk [vmem:[%s3 + $0x28] sm:$0xf] %vm480, %v458
  %492 = vst.msk [vmem:[%s3 + $0x2c] sm:$0xf] %vm480, %v459
  %493 = vst.msk [vmem:[%s3 + $0x30] sm:$0xf] %vm480, %v460
  %494 = vst.msk [vmem:[%s3 + $0x34] sm:$0xf] %vm480, %v461
  %495 = vst.msk [vmem:[%s3 + $0x38] sm:$0xf] %vm480, %v462
  %496 = vst.msk [vmem:[%s3 + $0x3c] sm:$0xf] %vm480, %v463
  // Predicated region
  $region14: #{yolo_multitask_forward.6} parent=0 // pred_check
    _
  $region15: #{yolo_multitask_forward.6} parent=0 // pred_check_branch
    %498 = sbr.rel (0) target = $region17
  $region16: #{yolo_multitask_forward.6} parent=0 // pred_region
    _
  $region17: #{yolo_multitask_forward.6} parent=0 // pred_fallthru
    _
  // Predicated region
  $region18: #{yolo_multitask_forward.6} parent=0 // pred_check
    _
  $region19: #{yolo_multitask_forward.6} parent=0 // pred_check_branch
    %500 = sbr.rel (0) target = $region21
  $region20: #{yolo_multitask_forward.6} parent=0 // pred_region
    _
  $region21: #{yolo_multitask_forward.6} parent=0 // pred_fallthru
    _

// kernel: yolo_multitask_forward.5
$region0: #{yolo_multitask_forward.5}
  #allocation0 [shape = 'u32[]', space=smem, size = 0x4, offset = 0x4, fixed_abs, tag = 'smem constant byte address 0x4 - core index']
  #allocation1 [shape = 'u32[144,128]{1,0:T(1,128)}', space=vmem, size = 0x12000, scoped, tag = 'internal scratch']
  %s0 = inlined_call_operand.vmem [shape: bf16[512,27], index: 0, kind: input, shape index: {}]
  %s1 = inlined_call_operand.vmem [shape: bf16[27,16], index: 1, kind: input, shape index: {}]
  %s2 = inlined_call_operand.vmem [shape: f32[1,16], index: 2, kind: input, shape index: {}]
  %s3 = inlined_call_operand.vmem [shape: bf16[512,16], index: 3, kind: output, shape index: {}]
  %s4 = sld [smem:[#allocation0]]
  $region22: #{yolo_multitask_forward.5} parent=0
    _
  %s6 = ssub.s32 1, %s4
  %s7 = scalar_select 0, %s6, %s4
  // Predicated region
  $region2: #{yolo_multitask_forward.5} parent=0 // pred_check
    _
  $region3: #{yolo_multitask_forward.5} parent=0 // pred_check_branch
    %9 = sbr.rel (0) target = $region5
  $region4: #{yolo_multitask_forward.5} parent=0 // pred_region
    _
  $region5: #{yolo_multitask_forward.5} parent=0 // pred_fallthru
    _
  // Predicated region
  $region6: #{yolo_multitask_forward.5} parent=0 // pred_check
    _
  $region7: #{yolo_multitask_forward.5} parent=0 // pred_check_branch
    %11 = sbr.rel (0) target = $region9
  $region8: #{yolo_multitask_forward.5} parent=0 // pred_region
    _
  $region9: #{yolo_multitask_forward.5} parent=0 // pred_fallthru
    _
  // Predicated region
  $region10: #{yolo_multitask_forward.5} parent=0 // pred_check
    _
  $region11: #{yolo_multitask_forward.5} parent=0 // pred_check_branch
    %13 = sbr.rel (0) target = $region13
  $region12: #{yolo_multitask_forward.5} parent=0 // pred_region
    _
  $region13: #{yolo_multitask_forward.5} parent=0 // pred_fallthru
    _
  %v15 = vld [vmem:[%s0] sm:$0xf]
  %v16 = vld [vmem:[%s0 + $0x4] sm:$0xf]
  %v17 = vld [vmem:[%s0 + $0x8] sm:$0xf]
  %v18 = vld [vmem:[%s0 + $0xc] sm:$0xf]
  %v19 = vld [vmem:[%s0 + $0x10] sm:$0xf]
  %v20 = vld [vmem:[%s0 + $0x14] sm:$0xf]
  %v21 = vld [vmem:[%s0 + $0x18] sm:$0xf]
  %v22 = vld [vmem:[%s0 + $0x1c] sm:$0xf]
  %v23 = vld [vmem:[%s0 + $0x20] sm:$0xf]
  %v24 = vld [vmem:[%s0 + $0x24] sm:$0xf]
  %v25 = vld [vmem:[%s0 + $0x28] sm:$0xf]
  %v26 = vld [vmem:[%s0 + $0x2c] sm:$0xf]
  %v27 = vld [vmem:[%s0 + $0x30] sm:$0xf]
  %v28 = vld [vmem:[%s0 + $0x34] sm:$0xf]
  %v29 = vld [vmem:[%s0 + $0x38] sm:$0xf]
  %v30 = vld [vmem:[%s0 + $0x3c] sm:$0xf]
  %v31 = vld [vmem:[%s0 + $0x40] sm:$0xf]
  %v32 = vld [vmem:[%s0 + $0x44] sm:$0xf]
  %v33 = vld [vmem:[%s0 + $0x48] sm:$0xf]
  %v34 = vld [vmem:[%s0 + $0x4c] sm:$0xf]
  %v35 = vld [vmem:[%s0 + $0x50] sm:$0xf]
  %v36 = vld [vmem:[%s0 + $0x54] sm:$0xf]
  %v37 = vld [vmem:[%s0 + $0x58] sm:$0xf]
  %v38 = vld [vmem:[%s0 + $0x5c] sm:$0xf]
  %v39 = vld [vmem:[%s0 + $0x60] sm:$0xf]
  %v40 = vld [vmem:[%s0 + $0x64] sm:$0xf]
  %v41 = vld [vmem:[%s0 + $0x68] sm:$0xf]
  %v42 = vld [vmem:[%s0 + $0x6c] sm:$0xf]
  %v43 = vld [vmem:[%s0 + $0x70] sm:$0xf]
  %v44 = vld [vmem:[%s0 + $0x74] sm:$0xf]
  %v45 = vld [vmem:[%s0 + $0x78] sm:$0xf]
  %v46 = vld [vmem:[%s0 + $0x7c] sm:$0xf]
  %v47 = vld [vmem:[%s0 + $0x80] sm:$0xf]
  %v48 = vld [vmem:[%s0 + $0x84] sm:$0xf]
  %v49 = vld [vmem:[%s0 + $0x88] sm:$0xf]
  %v50 = vld [vmem:[%s0 + $0x8c] sm:$0xf]
  %v51 = vld [vmem:[%s0 + $0x90] sm:$0xf]
  %v52 = vld [vmem:[%s0 + $0x94] sm:$0xf]
  %v53 = vld [vmem:[%s0 + $0x98] sm:$0xf]
  %v54 = vld [vmem:[%s0 + $0x9c] sm:$0xf]
  %v55 = vld [vmem:[%s0 + $0xa0] sm:$0xf]
  %v56 = vld [vmem:[%s0 + $0xa4] sm:$0xf]
  %v57 = vld [vmem:[%s0 + $0xa8] sm:$0xf]
  %v58 = vld [vmem:[%s0 + $0xac] sm:$0xf]
  %v59 = vld [vmem:[%s0 + $0xb0] sm:$0xf]
  %v60 = vld [vmem:[%s0 + $0xb4] sm:$0xf]
  %v61 = vld [vmem:[%s0 + $0xb8] sm:$0xf]
  %v62 = vld [vmem:[%s0 + $0xbc] sm:$0xf]
  %v63 = vld [vmem:[%s0 + $0xc0] sm:$0xf]
  %v64 = vld [vmem:[%s0 + $0xc4] sm:$0xf]
  %v65 = vld [vmem:[%s0 + $0xc8] sm:$0xf]
  %v66 = vld [vmem:[%s0 + $0xcc] sm:$0xf]
  %v67 = vld [vmem:[%s0 + $0xd0] sm:$0xf]
  %v68 = vld [vmem:[%s0 + $0xd4] sm:$0xf]
  %v69 = vld [vmem:[%s0 + $0xd8] sm:$0xf]
  %v70 = vld [vmem:[%s0 + $0xdc] sm:$0xf]
  %v71 = vld [vmem:[%s0 + $0xe0] sm:$0xf]
  %v72 = vld [vmem:[%s0 + $0xe4] sm:$0xf]
  %v73 = vld [vmem:[%s0 + $0xe8] sm:$0xf]
  %v74 = vld [vmem:[%s0 + $0xec] sm:$0xf]
  %v75 = vld [vmem:[%s0 + $0xf0] sm:$0xf]
  %v76 = vld [vmem:[%s0 + $0xf4] sm:$0xf]
  %v77 = vld [vmem:[%s0 + $0xf8] sm:$0xf]
  %v78 = vld [vmem:[%s0 + $0xfc] sm:$0xf]
  %v79 = vld [vmem:[%s1] sm:$0xf]
  %v80 = vld [vmem:[%s1 + $0x4] sm:$0xf]
  %v81 = vld [vmem:[%s1 + $0x8] sm:$0xf]
  %v82 = vld [vmem:[%s1 + $0xc] sm:$0x3]
  %v83 = vld [vmem:[%s2] sm:$0x1]
  %v85 = vlaneseq
  %v86 = vshrl.u32 %v85, 7
  %v87 = vsub.s32 0, %v86
  %v88 = vrot.slane %v83, %v87
  %v154 = vunpack.c.l.b16 %v15
  %v155 = vunpack.c.l.b16 %v16
  %v156 = vunpack.c.l.b16 %v17
  %v157 = vunpack.c.l.b16 %v18
  %v158 = vunpack.c.l.b16 %v19
  %v159 = vunpack.c.l.b16 %v20
  %v160 = vunpack.c.l.b16 %v21
  %v161 = vunpack.c.l.b16 %v22
  %v162 = vunpack.c.l.b16 %v23
  %v163 = vunpack.c.l.b16 %v24
  %v164 = vunpack.c.l.b16 %v25
  %v165 = vunpack.c.l.b16 %v26
  %v166 = vunpack.c.l.b16 %v27
  %v167 = vunpack.c.l.b16 %v28
  %v168 = vunpack.c.l.b16 %v29
  %v169 = vunpack.c.l.b16 %v30
  %v170 = vunpack.c.l.b16 %v31
  %v171 = vunpack.c.l.b16 %v32
  %v172 = vunpack.c.l.b16 %v33
  %v173 = vunpack.c.l.b16 %v34
  %v174 = vunpack.c.l.b16 %v35
  %v175 = vunpack.c.l.b16 %v36
  %v176 = vunpack.c.l.b16 %v37
  %v177 = vunpack.c.l.b16 %v38
  %v178 = vunpack.c.l.b16 %v39
  %v179 = vunpack.c.l.b16 %v40
  %v180 = vunpack.c.l.b16 %v41
  %v181 = vunpack.c.l.b16 %v42
  %v182 = vunpack.c.l.b16 %v43
  %v183 = vunpack.c.l.b16 %v44
  %v184 = vunpack.c.l.b16 %v45
  %v185 = vunpack.c.l.b16 %v46
  %v186 = vunpack.c.l.b16 %v47
  %v187 = vunpack.c.l.b16 %v48
  %v188 = vunpack.c.l.b16 %v49
  %v189 = vunpack.c.l.b16 %v50
  %v190 = vunpack.c.l.b16 %v51
  %v191 = vunpack.c.l.b16 %v52
  %v192 = vunpack.c.l.b16 %v53
  %v193 = vunpack.c.l.b16 %v54
  %v194 = vunpack.c.l.b16 %v55
  %v195 = vunpack.c.l.b16 %v56
  %v196 = vunpack.c.l.b16 %v57
  %v197 = vunpack.c.l.b16 %v58
  %v198 = vunpack.c.l.b16 %v59
  %v199 = vunpack.c.l.b16 %v60
  %v200 = vunpack.c.l.b16 %v61
  %v201 = vunpack.c.l.b16 %v62
  %v202 = vunpack.c.l.b16 %v63
  %v203 = vunpack.c.l.b16 %v64
  %v204 = vunpack.c.l.b16 %v65
  %v205 = vunpack.c.l.b16 %v66
  %v206 = vunpack.c.l.b16 %v67
  %v207 = vunpack.c.l.b16 %v68
  %v208 = vunpack.c.l.b16 %v69
  %v209 = vunpack.c.l.b16 %v70
  %v210 = vunpack.c.l.b16 %v71
  %v211 = vunpack.c.l.b16 %v72
  %v212 = vunpack.c.l.b16 %v73
  %v213 = vunpack.c.l.b16 %v74
  %v214 = vunpack.c.l.b16 %v75
  %v215 = vunpack.c.l.b16 %v76
  %v216 = vunpack.c.l.b16 %v77
  %v217 = vunpack.c.l.b16 %v78
  %v218 = vpack.c.b16 %v155, %v154
  %v219 = vpack.c.b16 %v157, %v156
  %v220 = vpack.c.b16 %v159, %v158
  %v221 = vpack.c.b16 %v161, %v160
  %v222 = vpack.c.b16 %v163, %v162
  %v223 = vpack.c.b16 %v165, %v164
  %v224 = vpack.c.b16 %v167, %v166
  %v225 = vpack.c.b16 %v169, %v168
  %v226 = vpack.c.b16 %v171, %v170
  %v227 = vpack.c.b16 %v173, %v172
  %v228 = vpack.c.b16 %v175, %v174
  %v229 = vpack.c.b16 %v177, %v176
  %v230 = vpack.c.b16 %v179, %v178
  %v231 = vpack.c.b16 %v181, %v180
  %v232 = vpack.c.b16 %v183, %v182
  %v233 = vpack.c.b16 %v185, %v184
  %v234 = vpack.c.b16 %v187, %v186
  %v235 = vpack.c.b16 %v189, %v188
  %v236 = vpack.c.b16 %v191, %v190
  %v237 = vpack.c.b16 %v193, %v192
  %v238 = vpack.c.b16 %v195, %v194
  %v239 = vpack.c.b16 %v197, %v196
  %v240 = vpack.c.b16 %v199, %v198
  %v241 = vpack.c.b16 %v201, %v200
  %v242 = vpack.c.b16 %v203, %v202
  %v243 = vpack.c.b16 %v205, %v204
  %v244 = vpack.c.b16 %v207, %v206
  %v245 = vpack.c.b16 %v209, %v208
  %v246 = vpack.c.b16 %v211, %v210
  %v247 = vpack.c.b16 %v213, %v212
  %v248 = vpack.c.b16 %v215, %v214
  %v249 = vpack.c.b16 %v217, %v216
  %v254 = vunpack.c.l.b16 %v79
  %v255 = vunpack.c.l.b16 %v80
  %v256 = vunpack.c.l.b16 %v81
  %v257 = vunpack.c.l.b16 %v82
  %v258 = vpack.c.b16 %v255, %v254
  %v259 = vpack.c.b16 %v257, %v256
  %vm261 = vcmask 220160
  %v263 = vsel %vm261, %v218, 0
  %v266 = vsel %vm261, %v219, 0
  %v269 = vsel %vm261, %v220, 0
  %v272 = vsel %vm261, %v221, 0
  %v275 = vsel %vm261, %v222, 0
  %v278 = vsel %vm261, %v223, 0
  %v281 = vsel %vm261, %v224, 0
  %v284 = vsel %vm261, %v225, 0
  %v287 = vsel %vm261, %v226, 0
  %v290 = vsel %vm261, %v227, 0
  %v293 = vsel %vm261, %v228, 0
  %v296 = vsel %vm261, %v229, 0
  %v299 = vsel %vm261, %v230, 0
  %v302 = vsel %vm261, %v231, 0
  %v305 = vsel %vm261, %v232, 0
  %v308 = vsel %vm261, %v233, 0
  %v311 = vsel %vm261, %v234, 0
  %v314 = vsel %vm261, %v235, 0
  %v317 = vsel %vm261, %v236, 0
  %v320 = vsel %vm261, %v237, 0
  %v323 = vsel %vm261, %v238, 0
  %v326 = vsel %vm261, %v239, 0
  %v329 = vsel %vm261, %v240, 0
  %v332 = vsel %vm261, %v241, 0
  %v335 = vsel %vm261, %v242, 0
  %v338 = vsel %vm261, %v243, 0
  %v341 = vsel %vm261, %v244, 0
  %v344 = vsel %vm261, %v245, 0
  %v347 = vsel %vm261, %v246, 0
  %v350 = vsel %vm261, %v247, 0
  %v353 = vsel %vm261, %v248, 0
  %v356 = vsel %vm261, %v249, 0
  %vm358 = vcmask 1044480
  %vm359 = vcmask 1045504
  %v360 = vsel %vm358, 4294967295, 65535
  %v361 = vsel %vm359, %v360, 0
  %v363 = vand.u32 %v259, %v361
  %365 = vmatprep.subr.bf16.mxu0 0
  %366 = vmatpush1.bf16.msra.mxu0 %v258
  %367 = vmatprep.subr.bf16.mxu0 0
  %368 = vmatpush1.bf16.msra.mxu0 %v363
  %369 = vmatprep.subr.bf16.mxu0 0
  %370 = vmatpush1.bf16.msra.mxu0 0
  %371 = vmatprep.subr.bf16.mxu0 0
  %372 = vmatpush1.bf16.msra.mxu0 0
  %373 = vmatprep.subr.bf16.mxu0 0
  %374 = vmatpush1.bf16.msra.mxu0 0
  %375 = vmatprep.subr.bf16.mxu0 0
  %376 = vmatpush1.bf16.msra.mxu0 0
  %377 = vmatprep.subr.bf16.mxu0 0
  %378 = vmatpush1.bf16.msra.mxu0 0
  %379 = vmatprep.subr.bf16.mxu0 0
  %380 = vmatpush1.bf16.msra.mxu0 0
  %381 = vmatprep.subr.bf16.mxu0 0
  %382 = vmatpush1.bf16.msra.mxu0 0
  %383 = vmatprep.subr.bf16.mxu0 0
  %384 = vmatpush1.bf16.msra.mxu0 0
  %385 = vmatprep.subr.bf16.mxu0 0
  %386 = vmatpush1.bf16.msra.mxu0 0
  %387 = vmatprep.subr.bf16.mxu0 0
  %388 = vmatpush1.bf16.msra.mxu0 0
  %389 = vmatprep.subr.bf16.mxu0 0
  %390 = vmatpush1.bf16.msra.mxu0 0
  %391 = vmatprep.subr.bf16.mxu0 0
  %392 = vmatpush1.bf16.msra.mxu0 0
  %393 = vmatprep.subr.bf16.mxu0 0
  %394 = vmatpush1.bf16.msra.mxu0 0
  %395 = vmatprep.subr.bf16.mxu0 0
  %396 = vmatpush1.bf16.msra.mxu0 0
  %397 = vmatprep.mubr.bf16.mxu0 0
  %398 = vmatmul.mubr.bf16.gmra.mrb[0].mxu0 %v263
  %v399 = vpop.f32.mrb[0].mxu0
  %v400 = vadd.f32 %v88, %v399
  %v401 = vpop.f32.mrb[0].mxu0
  %v402 = vpop.f32.mrb[0].mxu0
  %v403 = vadd.f32 %v88, %v402
  %v404 = vpop.f32.mrb[0].mxu0
  %405 = vmatprep.mubr.bf16.mxu0 0
  %406 = vmatmul.mubr.bf16.gmra.mrb[0].mxu0 %v266
  %v407 = vpop.f32.mrb[0].mxu0
  %v408 = vadd.f32 %v88, %v407
  %v409 = vpop.f32.mrb[0].mxu0
  %v410 = vpop.f32.mrb[0].mxu0
  %v411 = vadd.f32 %v88, %v410
  %v412 = vpop.f32.mrb[0].mxu0
  %413 = vmatprep.mubr.bf16.mxu0 0
  %414 = vmatmul.mubr.bf16.gmra.mrb[0].mxu0 %v269
  %v415 = vpop.f32.mrb[0].mxu0
  %v416 = vadd.f32 %v88, %v415
  %v417 = vpop.f32.mrb[0].mxu0
  %v418 = vpop.f32.mrb[0].mxu0
  %v419 = vadd.f32 %v88, %v418
  %v420 = vpop.f32.mrb[0].mxu0
  %421 = vmatprep.mubr.bf16.mxu0 0
  %422 = vmatmul.mubr.bf16.gmra.mrb[0].mxu0 %v272
  %v423 = vpop.f32.mrb[0].mxu0
  %v424 = vadd.f32 %v88, %v423
  %v425 = vpop.f32.mrb[0].mxu0
  %v426 = vpop.f32.mrb[0].mxu0
  %v427 = vadd.f32 %v88, %v426
  %v428 = vpop.f32.mrb[0].mxu0
  %429 = vmatprep.mubr.bf16.mxu0 0
  %430 = vmatmul.mubr.bf16.gmra.mrb[0].mxu0 %v275
  %v431 = vpop.f32.mrb[0].mxu0
  %v432 = vadd.f32 %v88, %v431
  %v433 = vpop.f32.mrb[0].mxu0
  %v434 = vpop.f32.mrb[0].mxu0
  %v435 = vadd.f32 %v88, %v434
  %v436 = vpop.f32.mrb[0].mxu0
  %437 = vmatprep.mubr.bf16.mxu0 0
  %438 = vmatmul.mubr.bf16.gmra.mrb[0].mxu0 %v278
  %v439 = vpop.f32.mrb[0].mxu0
  %v440 = vadd.f32 %v88, %v439
  %v441 = vpop.f32.mrb[0].mxu0
  %v442 = vpop.f32.mrb[0].mxu0
  %v443 = vadd.f32 %v88, %v442
  %v444 = vpop.f32.mrb[0].mxu0
  %445 = vmatprep.mubr.bf16.mxu0 0
  %446 = vmatmul.mubr.bf16.gmra.mrb[0].mxu0 %v281
  %v447 = vpop.f32.mrb[0].mxu0
  %v448 = vadd.f32 %v88, %v447
  %v449 = vpop.f32.mrb[0].mxu0
  %v450 = vpop.f32.mrb[0].mxu0
  %v451 = vadd.f32 %v88, %v450
  %v452 = vpop.f32.mrb[0].mxu0
  %453 = vmatprep.mubr.bf16.mxu0 0
  %454 = vmatmul.mubr.bf16.gmra.mrb[0].mxu0 %v284
  %v455 = vpop.f32.mrb[0].mxu0
  %v456 = vadd.f32 %v88, %v455
  %v457 = vpop.f32.mrb[0].mxu0
  %v458 = vpop.f32.mrb[0].mxu0
  %v459 = vadd.f32 %v88, %v458
  %v460 = vpop.f32.mrb[0].mxu0
  %461 = vmatprep.mubr.bf16.mxu0 0
  %462 = vmatmul.mubr.bf16.gmra.mrb[0].mxu0 %v287
  %v463 = vpop.f32.mrb[0].mxu0
  %v464 = vadd.f32 %v88, %v463
  %v465 = vpop.f32.mrb[0].mxu0
  %v466 = vpop.f32.mrb[0].mxu0
  %v467 = vadd.f32 %v88, %v466
  %v468 = vpop.f32.mrb[0].mxu0
  %469 = vmatprep.mubr.bf16.mxu0 0
  %470 = vmatmul.mubr.bf16.gmra.mrb[0].mxu0 %v290
  %v471 = vpop.f32.mrb[0].mxu0
  %v472 = vadd.f32 %v88, %v471
  %v473 = vpop.f32.mrb[0].mxu0
  %v474 = vpop.f32.mrb[0].mxu0
  %v475 = vadd.f32 %v88, %v474
  %v476 = vpop.f32.mrb[0].mxu0
  %477 = vmatprep.mubr.bf16.mxu0 0
  %478 = vmatmul.mubr.bf16.gmra.mrb[0].mxu0 %v293
  %v479 = vpop.f32.mrb[0].mxu0
  %v480 = vadd.f32 %v88, %v479
  %v481 = vpop.f32.mrb[0].mxu0
  %v482 = vpop.f32.mrb[0].mxu0
  %v483 = vadd.f32 %v88, %v482
  %v484 = vpop.f32.mrb[0].mxu0
  %485 = vmatprep.mubr.bf16.mxu0 0
  %486 = vmatmul.mubr.bf16.gmra.mrb[0].mxu0 %v296
  %v487 = vpop.f32.mrb[0].mxu0
  %v488 = vadd.f32 %v88, %v487
  %v489 = vpop.f32.mrb[0].mxu0
  %v490 = vpop.f32.mrb[0].mxu0
  %v491 = vadd.f32 %v88, %v490
  %v492 = vpop.f32.mrb[0].mxu0
  %493 = vmatprep.mubr.bf16.mxu0 0
  %494 = vmatmul.mubr.bf16.gmra.mrb[0].mxu0 %v299
  %v495 = vpop.f32.mrb[0].mxu0
  %v496 = vadd.f32 %v88, %v495
  %v497 = vpop.f32.mrb[0].mxu0
  %v498 = vpop.f32.mrb[0].mxu0
  %v499 = vadd.f32 %v88, %v498
  %v500 = vpop.f32.mrb[0].mxu0
  %501 = vmatprep.mubr.bf16.mxu0 0
  %502 = vmatmul.mubr.bf16.gmra.mrb[0].mxu0 %v302
  %v503 = vpop.f32.mrb[0].mxu0
  %v504 = vadd.f32 %v88, %v503
  %v505 = vpop.f32.mrb[0].mxu0
  %v506 = vpop.f32.mrb[0].mxu0
  %v507 = vadd.f32 %v88, %v506
  %v508 = vpop.f32.mrb[0].mxu0
  %509 = vmatprep.mubr.bf16.mxu0 0
  %510 = vmatmul.mubr.bf16.gmra.mrb[0].mxu0 %v305
  %v511 = vpop.f32.mrb[0].mxu0
  %v512 = vadd.f32 %v88, %v511
  %v513 = vpop.f32.mrb[0].mxu0
  %v514 = vpop.f32.mrb[0].mxu0
  %v515 = vadd.f32 %v88, %v514
  %v516 = vpop.f32.mrb[0].mxu0
  %517 = vmatprep.mubr.bf16.mxu0 0
  %518 = vmatmul.mubr.bf16.gmra.mrb[0].mxu0 %v308
  %v519 = vpop.f32.mrb[0].mxu0
  %v520 = vadd.f32 %v88, %v519
  %v521 = vpop.f32.mrb[0].mxu0
  %v522 = vpop.f32.mrb[0].mxu0
  %v523 = vadd.f32 %v88, %v522
  %v524 = vpop.f32.mrb[0].mxu0
  %525 = vmatprep.mubr.bf16.mxu0 0
  %526 = vmatmul.mubr.bf16.gmra.mrb[0].mxu0 %v311
  %v527 = vpop.f32.mrb[0].mxu0
  %v528 = vadd.f32 %v88, %v527
  %v529 = vpop.f32.mrb[0].mxu0
  %v530 = vpop.f32.mrb[0].mxu0
  %v531 = vadd.f32 %v88, %v530
  %v532 = vpop.f32.mrb[0].mxu0
  %533 = vmatprep.mubr.bf16.mxu0 0
  %534 = vmatmul.mubr.bf16.gmra.mrb[0].mxu0 %v314
  %v535 = vpop.f32.mrb[0].mxu0
  %v536 = vadd.f32 %v88, %v535
  %v537 = vpop.f32.mrb[0].mxu0
  %v538 = vpop.f32.mrb[0].mxu0
  %v539 = vadd.f32 %v88, %v538
  %v540 = vpop.f32.mrb[0].mxu0
  %541 = vmatprep.mubr.bf16.mxu0 0
  %542 = vmatmul.mubr.bf16.gmra.mrb[0].mxu0 %v317
  %v543 = vpop.f32.mrb[0].mxu0
  %v544 = vadd.f32 %v88, %v543
  %v545 = vpop.f32.mrb[0].mxu0
  %v546 = vpop.f32.mrb[0].mxu0
  %v547 = vadd.f32 %v88, %v546
  %v548 = vpop.f32.mrb[0].mxu0
  %549 = vmatprep.mubr.bf16.mxu0 0
  %550 = vmatmul.mubr.bf16.gmra.mrb[0].mxu0 %v320
  %v551 = vpop.f32.mrb[0].mxu0
  %v552 = vadd.f32 %v88, %v551
  %v553 = vpop.f32.mrb[0].mxu0
  %v554 = vpop.f32.mrb[0].mxu0
  %v555 = vadd.f32 %v88, %v554
  %v556 = vpop.f32.mrb[0].mxu0
  %557 = vmatprep.mubr.bf16.mxu0 0
  %558 = vmatmul.mubr.bf16.gmra.mrb[0].mxu0 %v323
  %v559 = vpop.f32.mrb[0].mxu0
  %v560 = vadd.f32 %v88, %v559
  %v561 = vpop.f32.mrb[0].mxu0
  %v562 = vpop.f32.mrb[0].mxu0
  %v563 = vadd.f32 %v88, %v562
  %v564 = vpop.f32.mrb[0].mxu0
  %565 = vmatprep.mubr.bf16.mxu0 0
  %566 = vmatmul.mubr.bf16.gmra.mrb[0].mxu0 %v326
  %v567 = vpop.f32.mrb[0].mxu0
  %v568 = vadd.f32 %v88, %v567
  %v569 = vpop.f32.mrb[0].mxu0
  %v570 = vpop.f32.mrb[0].mxu0
  %v571 = vadd.f32 %v88, %v570
  %v572 = vpop.f32.mrb[0].mxu0
  %573 = vmatprep.mubr.bf16.mxu0 0
  %574 = vmatmul.mubr.bf16.gmra.mrb[0].mxu0 %v329
  %v575 = vpop.f32.mrb[0].mxu0
  %v576 = vadd.f32 %v88, %v575
  %v577 = vpop.f32.mrb[0].mxu0
  %v578 = vpop.f32.mrb[0].mxu0
  %v579 = vadd.f32 %v88, %v578
  %v580 = vpop.f32.mrb[0].mxu0
  %581 = vmatprep.mubr.bf16.mxu0 0
  %582 = vmatmul.mubr.bf16.gmra.mrb[0].mxu0 %v332
  %v583 = vpop.f32.mrb[0].mxu0
  %v584 = vadd.f32 %v88, %v583
  %v585 = vpop.f32.mrb[0].mxu0
  %v586 = vpop.f32.mrb[0].mxu0
  %v587 = vadd.f32 %v88, %v586
  %v588 = vpop.f32.mrb[0].mxu0
  %589 = vmatprep.mubr.bf16.mxu0 0
  %590 = vmatmul.mubr.bf16.gmra.mrb[0].mxu0 %v335
  %v591 = vpop.f32.mrb[0].mxu0
  %v592 = vadd.f32 %v88, %v591
  %v593 = vpop.f32.mrb[0].mxu0
  %v594 = vpop.f32.mrb[0].mxu0
  %v595 = vadd.f32 %v88, %v594
  %v596 = vpop.f32.mrb[0].mxu0
  %597 = vmatprep.mubr.bf16.mxu0 0
  %598 = vmatmul.mubr.bf16.gmra.mrb[0].mxu0 %v338
  %v599 = vpop.f32.mrb[0].mxu0
  %v600 = vadd.f32 %v88, %v599
  %v601 = vpop.f32.mrb[0].mxu0
  %v602 = vpop.f32.mrb[0].mxu0
  %v603 = vadd.f32 %v88, %v602
  %v604 = vpop.f32.mrb[0].mxu0
  %605 = vmatprep.mubr.bf16.mxu0 0
  %606 = vmatmul.mubr.bf16.gmra.mrb[0].mxu0 %v341
  %v607 = vpop.f32.mrb[0].mxu0
  %v608 = vadd.f32 %v88, %v607
  %v609 = vpop.f32.mrb[0].mxu0
  %v610 = vpop.f32.mrb[0].mxu0
  %v611 = vadd.f32 %v88, %v610
  %v612 = vpop.f32.mrb[0].mxu0
  %613 = vmatprep.mubr.bf16.mxu0 0
  %614 = vmatmul.mubr.bf16.gmra.mrb[0].mxu0 %v344
  %v615 = vpop.f32.mrb[0].mxu0
  %v616 = vadd.f32 %v88, %v615
  %v617 = vpop.f32.mrb[0].mxu0
  %v618 = vpop.f32.mrb[0].mxu0
  %v619 = vadd.f32 %v88, %v618
  %v620 = vpop.f32.mrb[0].mxu0
  %621 = vmatprep.mubr.bf16.mxu0 0
  %622 = vmatmul.mubr.bf16.gmra.mrb[0].mxu0 %v347
  %v623 = vpop.f32.mrb[0].mxu0
  %v624 = vadd.f32 %v88, %v623
  %v625 = vpop.f32.mrb[0].mxu0
  %v626 = vpop.f32.mrb[0].mxu0
  %v627 = vadd.f32 %v88, %v626
  %v628 = vpop.f32.mrb[0].mxu0
  %629 = vmatprep.mubr.bf16.mxu0 0
  %630 = vmatmul.mubr.bf16.gmra.mrb[0].mxu0 %v350
  %v631 = vpop.f32.mrb[0].mxu0
  %v632 = vadd.f32 %v88, %v631
  %v633 = vpop.f32.mrb[0].mxu0
  %v634 = vpop.f32.mrb[0].mxu0
  %v635 = vadd.f32 %v88, %v634
  %v636 = vpop.f32.mrb[0].mxu0
  %637 = vmatprep.mubr.bf16.mxu0 0
  %638 = vmatmul.mubr.bf16.gmra.mrb[0].mxu0 %v353
  %v639 = vpop.f32.mrb[0].mxu0
  %v640 = vadd.f32 %v88, %v639
  %v641 = vpop.f32.mrb[0].mxu0
  %v642 = vpop.f32.mrb[0].mxu0
  %v643 = vadd.f32 %v88, %v642
  %v644 = vpop.f32.mrb[0].mxu0
  %645 = vmatprep.mubr.bf16.mxu0 0
  %646 = vmatmul.mubr.bf16.gmra.mrb[0].mxu0 %v356
  %v647 = vpop.f32.mrb[0].mxu0
  %v648 = vadd.f32 %v88, %v647
  %v649 = vpop.f32.mrb[0].mxu0
  %v650 = vpop.f32.mrb[0].mxu0
  %v651 = vadd.f32 %v88, %v650
  %v652 = vpop.f32.mrb[0].mxu0
  %653 = vdwg.mxu0
  %v654 = vxor.u32 %v400, 2147483648
  %v655 = vxor.u32 %v403, 2147483648
  %v656 = vxor.u32 %v408, 2147483648
  %v657 = vxor.u32 %v411, 2147483648
  %v658 = vxor.u32 %v416, 2147483648
  %v659 = vxor.u32 %v419, 2147483648
  %v660 = vxor.u32 %v424, 2147483648
  %v661 = vxor.u32 %v427, 2147483648
  %v662 = vxor.u32 %v432, 2147483648
  %v663 = vxor.u32 %v435, 2147483648
  %v664 = vxor.u32 %v440, 2147483648
  %v665 = vxor.u32 %v443, 2147483648
  %v666 = vxor.u32 %v448, 2147483648
  %v667 = vxor.u32 %v451, 2147483648
  %v668 = vxor.u32 %v456, 2147483648
  %v669 = vxor.u32 %v459, 2147483648
  %v670 = vxor.u32 %v464, 2147483648
  %v671 = vxor.u32 %v467, 2147483648
  %v672 = vxor.u32 %v472, 2147483648
  %v673 = vxor.u32 %v475, 2147483648
  %v674 = vxor.u32 %v480, 2147483648
  %v675 = vxor.u32 %v483, 2147483648
  %v676 = vxor.u32 %v488, 2147483648
  %v677 = vxor.u32 %v491, 2147483648
  %v678 = vxor.u32 %v496, 2147483648
  %v679 = vxor.u32 %v499, 2147483648
  %v680 = vxor.u32 %v504, 2147483648
  %v681 = vxor.u32 %v507, 2147483648
  %v682 = vxor.u32 %v512, 2147483648
  %v683 = vxor.u32 %v515, 2147483648
  %v684 = vxor.u32 %v520, 2147483648
  %v685 = vxor.u32 %v523, 2147483648
  %v686 = vxor.u32 %v528, 2147483648
  %v687 = vxor.u32 %v531, 2147483648
  %v688 = vxor.u32 %v536, 2147483648
  %v689 = vxor.u32 %v539, 2147483648
  %v690 = vxor.u32 %v544, 2147483648
  %v691 = vxor.u32 %v547, 2147483648
  %v692 = vxor.u32 %v552, 2147483648
  %v693 = vxor.u32 %v555, 2147483648
  %v694 = vxor.u32 %v560, 2147483648
  %v695 = vxor.u32 %v563, 2147483648
  %v696 = vxor.u32 %v568, 2147483648
  %v697 = vxor.u32 %v571, 2147483648
  %v698 = vxor.u32 %v576, 2147483648
  %v699 = vxor.u32 %v579, 2147483648
  %v700 = vxor.u32 %v584, 2147483648
  %v701 = vxor.u32 %v587, 2147483648
  %v702 = vxor.u32 %v592, 2147483648
  %v703 = vxor.u32 %v595, 2147483648
  %v704 = vxor.u32 %v600, 2147483648
  %v705 = vxor.u32 %v603, 2147483648
  %v706 = vxor.u32 %v608, 2147483648
  %v707 = vxor.u32 %v611, 2147483648
  %v708 = vxor.u32 %v616, 2147483648
  %v709 = vxor.u32 %v619, 2147483648
  %v710 = vxor.u32 %v624, 2147483648
  %v711 = vxor.u32 %v627, 2147483648
  %v712 = vxor.u32 %v632, 2147483648
  %v713 = vxor.u32 %v635, 2147483648
  %v714 = vxor.u32 %v640, 2147483648
  %v715 = vxor.u32 %v643, 2147483648
  %v716 = vxor.u32 %v648, 2147483648
  %v717 = vxor.u32 %v651, 2147483648
  %v718 = vmul.f32 %v654, 1.442695
  %v719 = vpow.pop %v718
  %v720 = vmul.f32 %v655, 1.442695
  %v721 = vpow.pop %v720
  %v722 = vmul.f32 %v656, 1.442695
  %v723 = vpow.pop %v722
  %v724 = vmul.f32 %v657, 1.442695
  %v725 = vpow.pop %v724
  %v726 = vmul.f32 %v658, 1.442695
  %v727 = vpow.pop %v726
  %v728 = vmul.f32 %v659, 1.442695
  %v729 = vpow.pop %v728
  %v730 = vmul.f32 %v660, 1.442695
  %v731 = vpow.pop %v730
  %v732 = vmul.f32 %v661, 1.442695
  %v733 = vpow.pop %v732
  %v734 = vmul.f32 %v662, 1.442695
  %v735 = vpow.pop %v734
  %v736 = vmul.f32 %v663, 1.442695
  %v737 = vpow.pop %v736
  %v738 = vmul.f32 %v664, 1.442695
  %v739 = vpow.pop %v738
  %v740 = vmul.f32 %v665, 1.442695
  %v741 = vpow.pop %v740
  %v742 = vmul.f32 %v666, 1.442695
  %v743 = vpow.pop %v742
  %v744 = vmul.f32 %v667, 1.442695
  %v745 = vpow.pop %v744
  %v746 = vmul.f32 %v668, 1.442695
  %v747 = vpow.pop %v746
  %v748 = vmul.f32 %v669, 1.442695
  %v749 = vpow.pop %v748
  %v750 = vmul.f32 %v670, 1.442695
  %v751 = vpow.pop %v750
  %v752 = vmul.f32 %v671, 1.442695
  %v753 = vpow.pop %v752
  %v754 = vmul.f32 %v672, 1.442695
  %v755 = vpow.pop %v754
  %v756 = vmul.f32 %v673, 1.442695
  %v757 = vpow.pop %v756
  %v758 = vmul.f32 %v674, 1.442695
  %v759 = vpow.pop %v758
  %v760 = vmul.f32 %v675, 1.442695
  %v761 = vpow.pop %v760
  %v762 = vmul.f32 %v676, 1.442695
  %v763 = vpow.pop %v762
  %v764 = vmul.f32 %v677, 1.442695
  %v765 = vpow.pop %v764
  %v766 = vmul.f32 %v678, 1.442695
  %v767 = vpow.pop %v766
  %v768 = vmul.f32 %v679, 1.442695
  %v769 = vpow.pop %v768
  %v770 = vmul.f32 %v680, 1.442695
  %v771 = vpow.pop %v770
  %v772 = vmul.f32 %v681, 1.442695
  %v773 = vpow.pop %v772
  %v774 = vmul.f32 %v682, 1.442695
  %v775 = vpow.pop %v774
  %v776 = vmul.f32 %v683, 1.442695
  %v777 = vpow.pop %v776
  %v778 = vmul.f32 %v684, 1.442695
  %v779 = vpow.pop %v778
  %v780 = vmul.f32 %v685, 1.442695
  %v781 = vpow.pop %v780
  %v782 = vmul.f32 %v686, 1.442695
  %v783 = vpow.pop %v782
  %v784 = vmul.f32 %v687, 1.442695
  %v785 = vpow.pop %v784
  %v786 = vmul.f32 %v688, 1.442695
  %v787 = vpow.pop %v786
  %v788 = vmul.f32 %v689, 1.442695
  %v789 = vpow.pop %v788
  %v790 = vmul.f32 %v690, 1.442695
  %v791 = vpow.pop %v790
  %v792 = vmul.f32 %v691, 1.442695
  %v793 = vpow.pop %v792
  %v794 = vmul.f32 %v692, 1.442695
  %v795 = vpow.pop %v794
  %v796 = vmul.f32 %v693, 1.442695
  %v797 = vpow.pop %v796
  %v798 = vmul.f32 %v694, 1.442695
  %v799 = vpow.pop %v798
  %v800 = vmul.f32 %v695, 1.442695
  %v801 = vpow.pop %v800
  %v802 = vmul.f32 %v696, 1.442695
  %v803 = vpow.pop %v802
  %v804 = vmul.f32 %v697, 1.442695
  %v805 = vpow.pop %v804
  %v806 = vmul.f32 %v698, 1.442695
  %v807 = vpow.pop %v806
  %v808 = vmul.f32 %v699, 1.442695
  %v809 = vpow.pop %v808
  %v810 = vmul.f32 %v700, 1.442695
  %v811 = vpow.pop %v810
  %v812 = vmul.f32 %v701, 1.442695
  %v813 = vpow.pop %v812
  %v814 = vmul.f32 %v702, 1.442695
  %v815 = vpow.pop %v814
  %v816 = vmul.f32 %v703, 1.442695
  %v817 = vpow.pop %v816
  %v818 = vmul.f32 %v704, 1.442695
  %v819 = vpow.pop %v818
  %v820 = vmul.f32 %v705, 1.442695
  %v821 = vpow.pop %v820
  %v822 = vmul.f32 %v706, 1.442695
  %v823 = vpow.pop %v822
  %v824 = vmul.f32 %v707, 1.442695
  %v825 = vpow.pop %v824
  %v826 = vmul.f32 %v708, 1.442695
  %v827 = vpow.pop %v826
  %v828 = vmul.f32 %v709, 1.442695
  %v829 = vpow.pop %v828
  %v830 = vmul.f32 %v710, 1.442695
  %v831 = vpow.pop %v830
  %v832 = vmul.f32 %v711, 1.442695
  %v833 = vpow.pop %v832
  %v834 = vmul.f32 %v712, 1.442695
  %v835 = vpow.pop %v834
  %v836 = vmul.f32 %v713, 1.442695
  %v837 = vpow.pop %v836
  %v838 = vmul.f32 %v714, 1.442695
  %v839 = vpow.pop %v838
  %v840 = vmul.f32 %v715, 1.442695
  %v841 = vpow.pop %v840
  %v842 = vmul.f32 %v716, 1.442695
  %v843 = vpow.pop %v842
  %v844 = vmul.f32 %v717, 1.442695
  %v845 = vpow.pop %v844
  %v846 = vadd.f32 %v719, 1.0
  %v847 = vadd.f32 %v721, 1.0
  %v848 = vadd.f32 %v723, 1.0
  %v849 = vadd.f32 %v725, 1.0
  %v850 = vadd.f32 %v727, 1.0
  %v851 = vadd.f32 %v729, 1.0
  %v852 = vadd.f32 %v731, 1.0
  %v853 = vadd.f32 %v733, 1.0
  %v854 = vadd.f32 %v735, 1.0
  %v855 = vadd.f32 %v737, 1.0
  %v856 = vadd.f32 %v739, 1.0
  %v857 = vadd.f32 %v741, 1.0
  %v858 = vadd.f32 %v743, 1.0
  %v859 = vadd.f32 %v745, 1.0
  %v860 = vadd.f32 %v747, 1.0
  %v861 = vadd.f32 %v749, 1.0
  %v862 = vadd.f32 %v751, 1.0
  %v863 = vadd.f32 %v753, 1.0
  %v864 = vadd.f32 %v755, 1.0
  %v865 = vadd.f32 %v757, 1.0
  %v866 = vadd.f32 %v759, 1.0
  %v867 = vadd.f32 %v761, 1.0
  %v868 = vadd.f32 %v763, 1.0
  %v869 = vadd.f32 %v765, 1.0
  %v870 = vadd.f32 %v767, 1.0
  %v871 = vadd.f32 %v769, 1.0
  %v872 = vadd.f32 %v771, 1.0
  %v873 = vadd.f32 %v773, 1.0
  %v874 = vadd.f32 %v775, 1.0
  %v875 = vadd.f32 %v777, 1.0
  %v876 = vadd.f32 %v779, 1.0
  %v877 = vadd.f32 %v781, 1.0
  %v878 = vadd.f32 %v783, 1.0
  %v879 = vadd.f32 %v785, 1.0
  %v880 = vadd.f32 %v787, 1.0
  %v881 = vadd.f32 %v789, 1.0
  %v882 = vadd.f32 %v791, 1.0
  %v883 = vadd.f32 %v793, 1.0
  %v884 = vadd.f32 %v795, 1.0
  %v885 = vadd.f32 %v797, 1.0
  %v886 = vadd.f32 %v799, 1.0
  %v887 = vadd.f32 %v801, 1.0
  %v888 = vadd.f32 %v803, 1.0
  %v889 = vadd.f32 %v805, 1.0
  %v890 = vadd.f32 %v807, 1.0
  %v891 = vadd.f32 %v809, 1.0
  %v892 = vadd.f32 %v811, 1.0
  %v893 = vadd.f32 %v813, 1.0
  %v894 = vadd.f32 %v815, 1.0
  %v895 = vadd.f32 %v817, 1.0
  %v896 = vadd.f32 %v819, 1.0
  %v897 = vadd.f32 %v821, 1.0
  %v898 = vadd.f32 %v823, 1.0
  %v899 = vadd.f32 %v825, 1.0
  %v900 = vadd.f32 %v827, 1.0
  %v901 = vadd.f32 %v829, 1.0
  %v902 = vadd.f32 %v831, 1.0
  %v903 = vadd.f32 %v833, 1.0
  %v904 = vadd.f32 %v835, 1.0
  %v905 = vadd.f32 %v837, 1.0
  %v906 = vadd.f32 %v839, 1.0
  %v907 = vadd.f32 %v841, 1.0
  %v908 = vadd.f32 %v843, 1.0
  %v909 = vadd.f32 %v845, 1.0
  %v910 = vrcp.pop %v846
  %v911 = vmul.f32 1.0, %v910
  %v912 = vrcp.pop %v847
  %v913 = vmul.f32 1.0, %v912
  %v914 = vrcp.pop %v848
  %v915 = vmul.f32 1.0, %v914
  %v916 = vrcp.pop %v849
  %v917 = vmul.f32 1.0, %v916
  %v918 = vrcp.pop %v850
  %v919 = vmul.f32 1.0, %v918
  %v920 = vrcp.pop %v851
  %v921 = vmul.f32 1.0, %v920
  %v922 = vrcp.pop %v852
  %v923 = vmul.f32 1.0, %v922
  %v924 = vrcp.pop %v853
  %v925 = vmul.f32 1.0, %v924
  %v926 = vrcp.pop %v854
  %v927 = vmul.f32 1.0, %v926
  %v928 = vrcp.pop %v855
  %v929 = vmul.f32 1.0, %v928
  %v930 = vrcp.pop %v856
  %v931 = vmul.f32 1.0, %v930
  %v932 = vrcp.pop %v857
  %v933 = vmul.f32 1.0, %v932
  %v934 = vrcp.pop %v858
  %v935 = vmul.f32 1.0, %v934
  %v936 = vrcp.pop %v859
  %v937 = vmul.f32 1.0, %v936
  %v938 = vrcp.pop %v860
  %v939 = vmul.f32 1.0, %v938
  %v940 = vrcp.pop %v861
  %v941 = vmul.f32 1.0, %v940
  %v942 = vrcp.pop %v862
  %v943 = vmul.f32 1.0, %v942
  %v944 = vrcp.pop %v863
  %v945 = vmul.f32 1.0, %v944
  %v946 = vrcp.pop %v864
  %v947 = vmul.f32 1.0, %v946
  %v948 = vrcp.pop %v865
  %v949 = vmul.f32 1.0, %v948
  %v950 = vrcp.pop %v866
  %v951 = vmul.f32 1.0, %v950
  %v952 = vrcp.pop %v867
  %v953 = vmul.f32 1.0, %v952
  %v954 = vrcp.pop %v868
  %v955 = vmul.f32 1.0, %v954
  %v956 = vrcp.pop %v869
  %v957 = vmul.f32 1.0, %v956
  %v958 = vrcp.pop %v870
  %v959 = vmul.f32 1.0, %v958
  %v960 = vrcp.pop %v871
  %v961 = vmul.f32 1.0, %v960
  %v962 = vrcp.pop %v872
  %v963 = vmul.f32 1.0, %v962
  %v964 = vrcp.pop %v873
  %v965 = vmul.f32 1.0, %v964
  %v966 = vrcp.pop %v874
  %v967 = vmul.f32 1.0, %v966
  %v968 = vrcp.pop %v875
  %v969 = vmul.f32 1.0, %v968
  %v970 = vrcp.pop %v876
  %v971 = vmul.f32 1.0, %v970
  %v972 = vrcp.pop %v877
  %v973 = vmul.f32 1.0, %v972
  %v974 = vrcp.pop %v878
  %v975 = vmul.f32 1.0, %v974
  %v976 = vrcp.pop %v879
  %v977 = vmul.f32 1.0, %v976
  %v978 = vrcp.pop %v880
  %v979 = vmul.f32 1.0, %v978
  %v980 = vrcp.pop %v881
  %v981 = vmul.f32 1.0, %v980
  %v982 = vrcp.pop %v882
  %v983 = vmul.f32 1.0, %v982
  %v984 = vrcp.pop %v883
  %v985 = vmul.f32 1.0, %v984
  %v986 = vrcp.pop %v884
  %v987 = vmul.f32 1.0, %v986
  %v988 = vrcp.pop %v885
  %v989 = vmul.f32 1.0, %v988
  %v990 = vrcp.pop %v886
  %v991 = vmul.f32 1.0, %v990
  %v992 = vrcp.pop %v887
  %v993 = vmul.f32 1.0, %v992
  %v994 = vrcp.pop %v888
  %v995 = vmul.f32 1.0, %v994
  %v996 = vrcp.pop %v889
  %v997 = vmul.f32 1.0, %v996
  %v998 = vrcp.pop %v890
  %v999 = vmul.f32 1.0, %v998
  %v1000 = vrcp.pop %v891
  %v1001 = vmul.f32 1.0, %v1000
  %v1002 = vrcp.pop %v892
  %v1003 = vmul.f32 1.0, %v1002
  %v1004 = vrcp.pop %v893
  %v1005 = vmul.f32 1.0, %v1004
  %v1006 = vrcp.pop %v894
  %v1007 = vmul.f32 1.0, %v1006
  %v1008 = vrcp.pop %v895
  %v1009 = vmul.f32 1.0, %v1008
  %v1010 = vrcp.pop %v896
  %v1011 = vmul.f32 1.0, %v1010
  %v1012 = vrcp.pop %v897
  %v1013 = vmul.f32 1.0, %v1012
  %v1014 = vrcp.pop %v898
  %v1015 = vmul.f32 1.0, %v1014
  %v1016 = vrcp.pop %v899
  %v1017 = vmul.f32 1.0, %v1016
  %v1018 = vrcp.pop %v900
  %v1019 = vmul.f32 1.0, %v1018
  %v1020 = vrcp.pop %v901
  %v1021 = vmul.f32 1.0, %v1020
  %v1022 = vrcp.pop %v902
  %v1023 = vmul.f32 1.0, %v1022
  %v1024 = vrcp.pop %v903
  %v1025 = vmul.f32 1.0, %v1024
  %v1026 = vrcp.pop %v904
  %v1027 = vmul.f32 1.0, %v1026
  %v1028 = vrcp.pop %v905
  %v1029 = vmul.f32 1.0, %v1028
  %v1030 = vrcp.pop %v906
  %v1031 = vmul.f32 1.0, %v1030
  %v1032 = vrcp.pop %v907
  %v1033 = vmul.f32 1.0, %v1032
  %v1034 = vrcp.pop %v908
  %v1035 = vmul.f32 1.0, %v1034
  %v1036 = vrcp.pop %v909
  %v1037 = vmul.f32 1.0, %v1036
  %v1038 = vmul.f32 %v400, %v911
  %v1039 = vmul.f32 %v403, %v913
  %v1040 = vmul.f32 %v408, %v915
  %v1041 = vmul.f32 %v411, %v917
  %v1042 = vmul.f32 %v416, %v919
  %v1043 = vmul.f32 %v419, %v921
  %v1044 = vmul.f32 %v424, %v923
  %v1045 = vmul.f32 %v427, %v925
  %v1046 = vmul.f32 %v432, %v927
  %v1047 = vmul.f32 %v435, %v929
  %v1048 = vmul.f32 %v440, %v931
  %v1049 = vmul.f32 %v443, %v933
  %v1050 = vmul.f32 %v448, %v935
  %v1051 = vmul.f32 %v451, %v937
  %v1052 = vmul.f32 %v456, %v939
  %v1053 = vmul.f32 %v459, %v941
  %v1054 = vmul.f32 %v464, %v943
  %v1055 = vmul.f32 %v467, %v945
  %v1056 = vmul.f32 %v472, %v947
  %v1057 = vmul.f32 %v475, %v949
  %v1058 = vmul.f32 %v480, %v951
  %v1059 = vmul.f32 %v483, %v953
  %v1060 = vmul.f32 %v488, %v955
  %v1061 = vmul.f32 %v491, %v957
  %v1062 = vmul.f32 %v496, %v959
  %v1063 = vmul.f32 %v499, %v961
  %v1064 = vmul.f32 %v504, %v963
  %v1065 = vmul.f32 %v507, %v965
  %v1066 = vmul.f32 %v512, %v967
  %v1067 = vmul.f32 %v515, %v969
  %v1068 = vmul.f32 %v520, %v971
  %v1069 = vmul.f32 %v523, %v973
  %v1070 = vmul.f32 %v528, %v975
  %v1071 = vmul.f32 %v531, %v977
  %v1072 = vmul.f32 %v536, %v979
  %v1073 = vmul.f32 %v539, %v981
  %v1074 = vmul.f32 %v544, %v983
  %v1075 = vmul.f32 %v547, %v985
  %v1076 = vmul.f32 %v552, %v987
  %v1077 = vmul.f32 %v555, %v989
  %v1078 = vmul.f32 %v560, %v991
  %v1079 = vmul.f32 %v563, %v993
  %v1080 = vmul.f32 %v568, %v995
  %v1081 = vmul.f32 %v571, %v997
  %v1082 = vmul.f32 %v576, %v999
  %v1083 = vmul.f32 %v579, %v1001
  %v1084 = vmul.f32 %v584, %v1003
  %v1085 = vmul.f32 %v587, %v1005
  %v1086 = vmul.f32 %v592, %v1007
  %v1087 = vmul.f32 %v595, %v1009
  %v1088 = vmul.f32 %v600, %v1011
  %v1089 = vmul.f32 %v603, %v1013
  %v1090 = vmul.f32 %v608, %v1015
  %v1091 = vmul.f32 %v611, %v1017
  %v1092 = vmul.f32 %v616, %v1019
  %v1093 = vmul.f32 %v619, %v1021
  %v1094 = vmul.f32 %v624, %v1023
  %v1095 = vmul.f32 %v627, %v1025
  %v1096 = vmul.f32 %v632, %v1027
  %v1097 = vmul.f32 %v635, %v1029
  %v1098 = vmul.f32 %v640, %v1031
  %v1099 = vmul.f32 %v643, %v1033
  %v1100 = vmul.f32 %v648, %v1035
  %v1101 = vmul.f32 %v651, %v1037
  %v1102 = vpack.c.bf16 %v1039, %v1038
  %v1103 = vpack.c.bf16 %v1041, %v1040
  %v1104 = vpack.c.bf16 %v1043, %v1042
  %v1105 = vpack.c.bf16 %v1045, %v1044
  %v1106 = vpack.c.bf16 %v1047, %v1046
  %v1107 = vpack.c.bf16 %v1049, %v1048
  %v1108 = vpack.c.bf16 %v1051, %v1050
  %v1109 = vpack.c.bf16 %v1053, %v1052
  %v1110 = vpack.c.bf16 %v1055, %v1054
  %v1111 = vpack.c.bf16 %v1057, %v1056
  %v1112 = vpack.c.bf16 %v1059, %v1058
  %v1113 = vpack.c.bf16 %v1061, %v1060
  %v1114 = vpack.c.bf16 %v1063, %v1062
  %v1115 = vpack.c.bf16 %v1065, %v1064
  %v1116 = vpack.c.bf16 %v1067, %v1066
  %v1117 = vpack.c.bf16 %v1069, %v1068
  %v1118 = vpack.c.bf16 %v1071, %v1070
  %v1119 = vpack.c.bf16 %v1073, %v1072
  %v1120 = vpack.c.bf16 %v1075, %v1074
  %v1121 = vpack.c.bf16 %v1077, %v1076
  %v1122 = vpack.c.bf16 %v1079, %v1078
  %v1123 = vpack.c.bf16 %v1081, %v1080
  %v1124 = vpack.c.bf16 %v1083, %v1082
  %v1125 = vpack.c.bf16 %v1085, %v1084
  %v1126 = vpack.c.bf16 %v1087, %v1086
  %v1127 = vpack.c.bf16 %v1089, %v1088
  %v1128 = vpack.c.bf16 %v1091, %v1090
  %v1129 = vpack.c.bf16 %v1093, %v1092
  %v1130 = vpack.c.bf16 %v1095, %v1094
  %v1131 = vpack.c.bf16 %v1097, %v1096
  %v1132 = vpack.c.bf16 %v1099, %v1098
  %v1133 = vpack.c.bf16 %v1101, %v1100
  %v1166 = vunpack.c.l.b16 %v1102
  %v1167 = vunpack.c.h.b16 %v1102
  %v1168 = vunpack.c.l.b16 %v1103
  %v1169 = vunpack.c.h.b16 %v1103
  %v1170 = vunpack.c.l.b16 %v1104
  %v1171 = vunpack.c.h.b16 %v1104
  %v1172 = vunpack.c.l.b16 %v1105
  %v1173 = vunpack.c.h.b16 %v1105
  %v1174 = vunpack.c.l.b16 %v1106
  %v1175 = vunpack.c.h.b16 %v1106
  %v1176 = vunpack.c.l.b16 %v1107
  %v1177 = vunpack.c.h.b16 %v1107
  %v1178 = vunpack.c.l.b16 %v1108
  %v1179 = vunpack.c.h.b16 %v1108
  %v1180 = vunpack.c.l.b16 %v1109
  %v1181 = vunpack.c.h.b16 %v1109
  %v1182 = vunpack.c.l.b16 %v1110
  %v1183 = vunpack.c.h.b16 %v1110
  %v1184 = vunpack.c.l.b16 %v1111
  %v1185 = vunpack.c.h.b16 %v1111
  %v1186 = vunpack.c.l.b16 %v1112
  %v1187 = vunpack.c.h.b16 %v1112
  %v1188 = vunpack.c.l.b16 %v1113
  %v1189 = vunpack.c.h.b16 %v1113
  %v1190 = vunpack.c.l.b16 %v1114
  %v1191 = vunpack.c.h.b16 %v1114
  %v1192 = vunpack.c.l.b16 %v1115
  %v1193 = vunpack.c.h.b16 %v1115
  %v1194 = vunpack.c.l.b16 %v1116
  %v1195 = vunpack.c.h.b16 %v1116
  %v1196 = vunpack.c.l.b16 %v1117
  %v1197 = vunpack.c.h.b16 %v1117
  %v1198 = vunpack.c.l.b16 %v1118
  %v1199 = vunpack.c.h.b16 %v1118
  %v1200 = vunpack.c.l.b16 %v1119
  %v1201 = vunpack.c.h.b16 %v1119
  %v1202 = vunpack.c.l.b16 %v1120
  %v1203 = vunpack.c.h.b16 %v1120
  %v1204 = vunpack.c.l.b16 %v1121
  %v1205 = vunpack.c.h.b16 %v1121
  %v1206 = vunpack.c.l.b16 %v1122
  %v1207 = vunpack.c.h.b16 %v1122
  %v1208 = vunpack.c.l.b16 %v1123
  %v1209 = vunpack.c.h.b16 %v1123
  %v1210 = vunpack.c.l.b16 %v1124
  %v1211 = vunpack.c.h.b16 %v1124
  %v1212 = vunpack.c.l.b16 %v1125
  %v1213 = vunpack.c.h.b16 %v1125
  %v1214 = vunpack.c.l.b16 %v1126
  %v1215 = vunpack.c.h.b16 %v1126
  %v1216 = vunpack.c.l.b16 %v1127
  %v1217 = vunpack.c.h.b16 %v1127
  %v1218 = vunpack.c.l.b16 %v1128
  %v1219 = vunpack.c.h.b16 %v1128
  %v1220 = vunpack.c.l.b16 %v1129
  %v1221 = vunpack.c.h.b16 %v1129
  %v1222 = vunpack.c.l.b16 %v1130
  %v1223 = vunpack.c.h.b16 %v1130
  %v1224 = vunpack.c.l.b16 %v1131
  %v1225 = vunpack.c.h.b16 %v1131
  %v1226 = vunpack.c.l.b16 %v1132
  %v1227 = vunpack.c.h.b16 %v1132
  %v1228 = vunpack.c.l.b16 %v1133
  %v1229 = vunpack.c.h.b16 %v1133
  %v1230 = vpack.c.b16 %v1166, %v1166
  %v1231 = vpack.c.b16 %v1167, %v1167
  %v1232 = vpack.c.b16 %v1168, %v1168
  %v1233 = vpack.c.b16 %v1169, %v1169
  %v1234 = vpack.c.b16 %v1170, %v1170
  %v1235 = vpack.c.b16 %v1171, %v1171
  %v1236 = vpack.c.b16 %v1172, %v1172
  %v1237 = vpack.c.b16 %v1173, %v1173
  %v1238 = vpack.c.b16 %v1174, %v1174
  %v1239 = vpack.c.b16 %v1175, %v1175
  %v1240 = vpack.c.b16 %v1176, %v1176
  %v1241 = vpack.c.b16 %v1177, %v1177
  %v1242 = vpack.c.b16 %v1178, %v1178
  %v1243 = vpack.c.b16 %v1179, %v1179
  %v1244 = vpack.c.b16 %v1180, %v1180
  %v1245 = vpack.c.b16 %v1181, %v1181
  %v1246 = vpack.c.b16 %v1182, %v1182
  %v1247 = vpack.c.b16 %v1183, %v1183
  %v1248 = vpack.c.b16 %v1184, %v1184
  %v1249 = vpack.c.b16 %v1185, %v1185
  %v1250 = vpack.c.b16 %v1186, %v1186
  %v1251 = vpack.c.b16 %v1187, %v1187
  %v1252 = vpack.c.b16 %v1188, %v1188
  %v1253 = vpack.c.b16 %v1189, %v1189
  %v1254 = vpack.c.b16 %v1190, %v1190
  %v1255 = vpack.c.b16 %v1191, %v1191
  %v1256 = vpack.c.b16 %v1192, %v1192
  %v1257 = vpack.c.b16 %v1193, %v1193
  %v1258 = vpack.c.b16 %v1194, %v1194
  %v1259 = vpack.c.b16 %v1195, %v1195
  %v1260 = vpack.c.b16 %v1196, %v1196
  %v1261 = vpack.c.b16 %v1197, %v1197
  %v1262 = vpack.c.b16 %v1198, %v1198
  %v1263 = vpack.c.b16 %v1199, %v1199
  %v1264 = vpack.c.b16 %v1200, %v1200
  %v1265 = vpack.c.b16 %v1201, %v1201
  %v1266 = vpack.c.b16 %v1202, %v1202
  %v1267 = vpack.c.b16 %v1203, %v1203
  %v1268 = vpack.c.b16 %v1204, %v1204
  %v1269 = vpack.c.b16 %v1205, %v1205
  %v1270 = vpack.c.b16 %v1206, %v1206
  %v1271 = vpack.c.b16 %v1207, %v1207
  %v1272 = vpack.c.b16 %v1208, %v1208
  %v1273 = vpack.c.b16 %v1209, %v1209
  %v1274 = vpack.c.b16 %v1210, %v1210
  %v1275 = vpack.c.b16 %v1211, %v1211
  %v1276 = vpack.c.b16 %v1212, %v1212
  %v1277 = vpack.c.b16 %v1213, %v1213
  %v1278 = vpack.c.b16 %v1214, %v1214
  %v1279 = vpack.c.b16 %v1215, %v1215
  %v1280 = vpack.c.b16 %v1216, %v1216
  %v1281 = vpack.c.b16 %v1217, %v1217
  %v1282 = vpack.c.b16 %v1218, %v1218
  %v1283 = vpack.c.b16 %v1219, %v1219
  %v1284 = vpack.c.b16 %v1220, %v1220
  %v1285 = vpack.c.b16 %v1221, %v1221
  %v1286 = vpack.c.b16 %v1222, %v1222
  %v1287 = vpack.c.b16 %v1223, %v1223
  %v1288 = vpack.c.b16 %v1224, %v1224
  %v1289 = vpack.c.b16 %v1225, %v1225
  %v1290 = vpack.c.b16 %v1226, %v1226
  %v1291 = vpack.c.b16 %v1227, %v1227
  %v1292 = vpack.c.b16 %v1228, %v1228
  %v1293 = vpack.c.b16 %v1229, %v1229
  %vm1358 = vcmask 125952
  %1359 = vst.msk [vmem:[%s3] sm:$0xf] %vm1358, %v1230
  %1360 = vst.msk [vmem:[%s3 + $0x4] sm:$0xf] %vm1358, %v1231
  %1361 = vst.msk [vmem:[%s3 + $0x8] sm:$0xf] %vm1358, %v1232
  %1362 = vst.msk [vmem:[%s3 + $0xc] sm:$0xf] %vm1358, %v1233
  %1363 = vst.msk [vmem:[%s3 + $0x10] sm:$0xf] %vm1358, %v1234
  %1364 = vst.msk [vmem:[%s3 + $0x14] sm:$0xf] %vm1358, %v1235
  %1365 = vst.msk [vmem:[%s3 + $0x18] sm:$0xf] %vm1358, %v1236
  %1366 = vst.msk [vmem:[%s3 + $0x1c] sm:$0xf] %vm1358, %v1237
  %1367 = vst.msk [vmem:[%s3 + $0x20] sm:$0xf] %vm1358, %v1238
  %1368 = vst.msk [vmem:[%s3 + $0x24] sm:$0xf] %vm1358, %v1239
  %1369 = vst.msk [vmem:[%s3 + $0x28] sm:$0xf] %vm1358, %v1240
  %1370 = vst.msk [vmem:[%s3 + $0x2c] sm:$0xf] %vm1358, %v1241
  %1371 = vst.msk [vmem:[%s3 + $0x30] sm:$0xf] %vm1358, %v1242
  %1372 = vst.msk [vmem:[%s3 + $0x34] sm:$0xf] %vm1358, %v1243
  %1373 = vst.msk [vmem:[%s3 + $0x38] sm:$0xf] %vm1358, %v1244
  %1374 = vst.msk [vmem:[%s3 + $0x3c] sm:$0xf] %vm1358, %v1245
  %1375 = vst.msk [vmem:[%s3 + $0x40] sm:$0xf] %vm1358, %v1246
  %1376 = vst.msk [vmem:[%s3 + $0x44] sm:$0xf] %vm1358, %v1247
  %1377 = vst.msk [vmem:[%s3 + $0x48] sm:$0xf] %vm1358, %v1248
  %1378 = vst.msk [vmem:[%s3 + $0x4c] sm:$0xf] %vm1358, %v1249
  %1379 = vst.msk [vmem:[%s3 + $0x50] sm:$0xf] %vm1358, %v1250
  %1380 = vst.msk [vmem:[%s3 + $0x54] sm:$0xf] %vm1358, %v1251
  %1381 = vst.msk [vmem:[%s3 + $0x58] sm:$0xf] %vm1358, %v1252
  %1382 = vst.msk [vmem:[%s3 + $0x5c] sm:$0xf] %vm1358, %v1253
  %1383 = vst.msk [vmem:[%s3 + $0x60] sm:$0xf] %vm1358, %v1254
  %1384 = vst.msk [vmem:[%s3 + $0x64] sm:$0xf] %vm1358, %v1255
  %1385 = vst.msk [vmem:[%s3 + $0x68] sm:$0xf] %vm1358, %v1256
  %1386 = vst.msk [vmem:[%s3 + $0x6c] sm:$0xf] %vm1358, %v1257
  %1387 = vst.msk [vmem:[%s3 + $0x70] sm:$0xf] %vm1358, %v1258
  %1388 = vst.msk [vmem:[%s3 + $0x74] sm:$0xf] %vm1358, %v1259
  %1389 = vst.msk [vmem:[%s3 + $0x78] sm:$0xf] %vm1358, %v1260
  %1390 = vst.msk [vmem:[%s3 + $0x7c] sm:$0xf] %vm1358, %v1261
  %1391 = vst.msk [vmem:[%s3 + $0x80] sm:$0xf] %vm1358, %v1262
  %1392 = vst.msk [vmem:[%s3 + $0x84] sm:$0xf] %vm1358, %v1263
  %1393 = vst.msk [vmem:[%s3 + $0x88] sm:$0xf] %vm1358, %v1264
  %1394 = vst.msk [vmem:[%s3 + $0x8c] sm:$0xf] %vm1358, %v1265
  %1395 = vst.msk [vmem:[%s3 + $0x90] sm:$0xf] %vm1358, %v1266
  %1396 = vst.msk [vmem:[%s3 + $0x94] sm:$0xf] %vm1358, %v1267
  %1397 = vst.msk [vmem:[%s3 + $0x98] sm:$0xf] %vm1358, %v1268
  %1398 = vst.msk [vmem:[%s3 + $0x9c] sm:$0xf] %vm1358, %v1269
  %1399 = vst.msk [vmem:[%s3 + $0xa0] sm:$0xf] %vm1358, %v1270
  %1400 = vst.msk [vmem:[%s3 + $0xa4] sm:$0xf] %vm1358, %v1271
  %1401 = vst.msk [vmem:[%s3 + $0xa8] sm:$0xf] %vm1358, %v1272
  %1402 = vst.msk [vmem:[%s3 + $0xac] sm:$0xf] %vm1358, %v1273
  %1403 = vst.msk [vmem:[%s3 + $0xb0] sm:$0xf] %vm1358, %v1274
  %1404 = vst.msk [vmem:[%s3 + $0xb4] sm:$0xf] %vm1358, %v1275
  %1405 = vst.msk [vmem:[%s3 + $0xb8] sm:$0xf] %vm1358, %v1276
  %1406 = vst.msk [vmem:[%s3 + $0xbc] sm:$0xf] %vm1358, %v1277
  %1407 = vst.msk [vmem:[%s3 + $0xc0] sm:$0xf] %vm1358, %v1278
  %1408 = vst.msk [vmem:[%s3 + $0xc4] sm:$0xf] %vm1358, %v1279
  %1409 = vst.msk [vmem:[%s3 + $0xc8] sm:$0xf] %vm1358, %v1280
  %1410 = vst.msk [vmem:[%s3 + $0xcc] sm:$0xf] %vm1358, %v1281
  %1411 = vst.msk [vmem:[%s3 + $0xd0] sm:$0xf] %vm1358, %v1282
  %1412 = vst.msk [vmem:[%s3 + $0xd4] sm:$0xf] %vm1358, %v1283
  %1413 = vst.msk [vmem:[%s3 + $0xd8] sm:$0xf] %vm1358, %v1284
  %1414 = vst.msk [vmem:[%s3 + $0xdc] sm:$0xf] %vm1358, %v1285
  %1415 = vst.msk [vmem:[%s3 + $0xe0] sm:$0xf] %vm1358, %v1286
  %1416 = vst.msk [vmem:[%s3 + $0xe4] sm:$0xf] %vm1358, %v1287
  %1417 = vst.msk [vmem:[%s3 + $0xe8] sm:$0xf] %vm1358, %v1288
  %1418 = vst.msk [vmem:[%s3 + $0xec] sm:$0xf] %vm1358, %v1289
  %1419 = vst.msk [vmem:[%s3 + $0xf0] sm:$0xf] %vm1358, %v1290
  %1420 = vst.msk [vmem:[%s3 + $0xf4] sm:$0xf] %vm1358, %v1291
  %1421 = vst.msk [vmem:[%s3 + $0xf8] sm:$0xf] %vm1358, %v1292
  %1422 = vst.msk [vmem:[%s3 + $0xfc] sm:$0xf] %vm1358, %v1293
  // Predicated region
  $region14: #{yolo_multitask_forward.5} parent=0 // pred_check
    _
  $region15: #{yolo_multitask_forward.5} parent=0 // pred_check_branch
    %1424 = sbr.rel (0) target = $region17
  $region16: #{yolo_multitask_forward.5} parent=0 // pred_region
    _
  $region17: #{yolo_multitask_forward.5} parent=0 // pred_fallthru
    _
  // Predicated region
  $region18: #{yolo_multitask_forward.5} parent=0 // pred_check
    _
  $region19: #{yolo_multitask_forward.5} parent=0 // pred_check_branch
    %1426 = sbr.rel (0) target = $region21
  $region20: #{yolo_multitask_forward.5} parent=0 // pred_region
    _
  $region21: #{yolo_multitask_forward.5} parent=0 // pred_fallthru
    _

// kernel: yolo_multitask_forward.7
$region0: #{yolo_multitask_forward.7}
  #allocation0 [shape = 'u32[]', space=smem, size = 0x4, offset = 0x4, fixed_abs, tag = 'smem constant byte address 0x4 - core index']
  #allocation1 [shape = 'u32[144,128]{1,0:T(1,128)}', space=vmem, size = 0x12000, scoped, tag = 'internal scratch']
  %s0 = inlined_call_operand.vmem [shape: bf16[64,288], index: 0, kind: input, shape index: {}]
  %s1 = inlined_call_operand.vmem [shape: bf16[288,64], index: 1, kind: input, shape index: {}]
  %s2 = inlined_call_operand.vmem [shape: f32[1,64], index: 2, kind: input, shape index: {}]
  %s3 = inlined_call_operand.vmem [shape: bf16[64,64], index: 3, kind: input, shape index: {}]
  %s4 = inlined_call_operand.vmem [shape: f32[1,64], index: 4, kind: input, shape index: {}]
  %s5 = inlined_call_operand.vmem [shape: bf16[64,64], index: 5, kind: output, shape index: {}]
  %s6 = sld [smem:[#allocation0]]
  $region30: #{yolo_multitask_forward.7} parent=0
    _
  %s8 = ssub.s32 1, %s6
  %s9 = scalar_select 0, %s8, %s6
  // Predicated region
  $region2: #{yolo_multitask_forward.7} parent=0 // pred_check
    _
  $region3: #{yolo_multitask_forward.7} parent=0 // pred_check_branch
    %11 = sbr.rel (0) target = $region5
  $region4: #{yolo_multitask_forward.7} parent=0 // pred_region
    _
  $region5: #{yolo_multitask_forward.7} parent=0 // pred_fallthru
    _
  // Predicated region
  $region6: #{yolo_multitask_forward.7} parent=0 // pred_check
    _
  $region7: #{yolo_multitask_forward.7} parent=0 // pred_check_branch
    %13 = sbr.rel (0) target = $region9
  $region8: #{yolo_multitask_forward.7} parent=0 // pred_region
    _
  $region9: #{yolo_multitask_forward.7} parent=0 // pred_fallthru
    _
  // Predicated region
  $region10: #{yolo_multitask_forward.7} parent=0 // pred_check
    _
  $region11: #{yolo_multitask_forward.7} parent=0 // pred_check_branch
    %15 = sbr.rel (0) target = $region13
  $region12: #{yolo_multitask_forward.7} parent=0 // pred_region
    _
  $region13: #{yolo_multitask_forward.7} parent=0 // pred_fallthru
    _
  // Predicated region
  $region14: #{yolo_multitask_forward.7} parent=0 // pred_check
    _
  $region15: #{yolo_multitask_forward.7} parent=0 // pred_check_branch
    %17 = sbr.rel (0) target = $region17
  $region16: #{yolo_multitask_forward.7} parent=0 // pred_region
    _
  $region17: #{yolo_multitask_forward.7} parent=0 // pred_fallthru
    _
  // Predicated region
  $region18: #{yolo_multitask_forward.7} parent=0 // pred_check
    _
  $region19: #{yolo_multitask_forward.7} parent=0 // pred_check_branch
    %19 = sbr.rel (0) target = $region21
  $region20: #{yolo_multitask_forward.7} parent=0 // pred_region
    _
  $region21: #{yolo_multitask_forward.7} parent=0 // pred_fallthru
    _
  %v21 = vld [vmem:[%s0] sm:$0xff]
  %v22 = vld [vmem:[%s0 + $0x8] sm:$0xf]
  %v23 = vld [vmem:[%s0 + $0xc] sm:$0xff]
  %v24 = vld [vmem:[%s0 + $0x14] sm:$0xf]
  %v25 = vld [vmem:[%s0 + $0x18] sm:$0xff]
  %v26 = vld [vmem:[%s0 + $0x20] sm:$0xf]
  %v27 = vld [vmem:[%s0 + $0x24] sm:$0xff]
  %v28 = vld [vmem:[%s0 + $0x2c] sm:$0xf]
  %v29 = vld [vmem:[%s0 + $0x30] sm:$0xff]
  %v30 = vld [vmem:[%s0 + $0x38] sm:$0xf]
  %v31 = vld [vmem:[%s0 + $0x3c] sm:$0xff]
  %v32 = vld [vmem:[%s0 + $0x44] sm:$0xf]
  %v33 = vld [vmem:[%s0 + $0x48] sm:$0xff]
  %v34 = vld [vmem:[%s0 + $0x50] sm:$0xf]
  %v35 = vld [vmem:[%s0 + $0x54] sm:$0xff]
  %v36 = vld [vmem:[%s0 + $0x5c] sm:$0xf]
  %v37 = vld [vmem:[%s1] sm:$0xf]
  %v38 = vld [vmem:[%s1 + $0x4] sm:$0xf]
  %v39 = vld [vmem:[%s1 + $0x8] sm:$0xf]
  %v40 = vld [vmem:[%s1 + $0xc] sm:$0xf]
  %v41 = vld [vmem:[%s1 + $0x10] sm:$0xf]
  %v42 = vld [vmem:[%s1 + $0x14] sm:$0xf]
  %v43 = vld [vmem:[%s1 + $0x18] sm:$0xf]
  %v44 = vld [vmem:[%s1 + $0x1c] sm:$0xf]
  %v45 = vld [vmem:[%s1 + $0x20] sm:$0xf]
  %v46 = vld [vmem:[%s1 + $0x24] sm:$0xf]
  %v47 = vld [vmem:[%s1 + $0x28] sm:$0xf]
  %v48 = vld [vmem:[%s1 + $0x2c] sm:$0xf]
  %v49 = vld [vmem:[%s1 + $0x30] sm:$0xf]
  %v50 = vld [vmem:[%s1 + $0x34] sm:$0xf]
  %v51 = vld [vmem:[%s1 + $0x38] sm:$0xf]
  %v52 = vld [vmem:[%s1 + $0x3c] sm:$0xf]
  %v53 = vld [vmem:[%s1 + $0x40] sm:$0xf]
  %v54 = vld [vmem:[%s1 + $0x44] sm:$0xf]
  %v55 = vld [vmem:[%s1 + $0x48] sm:$0xf]
  %v56 = vld [vmem:[%s1 + $0x4c] sm:$0xf]
  %v57 = vld [vmem:[%s1 + $0x50] sm:$0xf]
  %v58 = vld [vmem:[%s1 + $0x54] sm:$0xf]
  %v59 = vld [vmem:[%s1 + $0x58] sm:$0xf]
  %v60 = vld [vmem:[%s1 + $0x5c] sm:$0xf]
  %v61 = vld [vmem:[%s1 + $0x60] sm:$0xf]
  %v62 = vld [vmem:[%s1 + $0x64] sm:$0xf]
  %v63 = vld [vmem:[%s1 + $0x68] sm:$0xf]
  %v64 = vld [vmem:[%s1 + $0x6c] sm:$0xf]
  %v65 = vld [vmem:[%s1 + $0x70] sm:$0xf]
  %v66 = vld [vmem:[%s1 + $0x74] sm:$0xf]
  %v67 = vld [vmem:[%s1 + $0x78] sm:$0xf]
  %v68 = vld [vmem:[%s1 + $0x7c] sm:$0xf]
  %v69 = vld [vmem:[%s1 + $0x80] sm:$0xf]
  %v70 = vld [vmem:[%s1 + $0x84] sm:$0xf]
  %v71 = vld [vmem:[%s1 + $0x88] sm:$0xf]
  %v72 = vld [vmem:[%s1 + $0x8c] sm:$0xf]
  %v73 = vld [vmem:[%s2] sm:$0x1]
  %v75 = vlaneseq
  %v76 = vshrl.u32 %v75, 7
  %v77 = vsub.s32 0, %v76
  %v78 = vrot.slane %v73, %v77
  %v96 = vunpack.c.l.b16 %v21
  %v97 = vunpack.c.h.b16 %v21
  %v98 = vunpack.c.l.b16 %v22
  %v99 = vunpack.c.l.b16 %v23
  %v100 = vunpack.c.h.b16 %v23
  %v101 = vunpack.c.l.b16 %v24
  %v102 = vunpack.c.l.b16 %v25
  %v103 = vunpack.c.h.b16 %v25
  %v104 = vunpack.c.l.b16 %v26
  %v105 = vunpack.c.l.b16 %v27
  %v106 = vunpack.c.h.b16 %v27
  %v107 = vunpack.c.l.b16 %v28
  %v108 = vunpack.c.l.b16 %v29
  %v109 = vunpack.c.h.b16 %v29
  %v110 = vunpack.c.l.b16 %v30
  %v111 = vunpack.c.l.b16 %v31
  %v112 = vunpack.c.h.b16 %v31
  %v113 = vunpack.c.l.b16 %v32
  %v114 = vunpack.c.l.b16 %v33
  %v115 = vunpack.c.h.b16 %v33
  %v116 = vunpack.c.l.b16 %v34
  %v117 = vunpack.c.l.b16 %v35
  %v118 = vunpack.c.h.b16 %v35
  %v119 = vunpack.c.l.b16 %v36
  %v120 = vpack.c.b16 %v99, %v96
  %v121 = vpack.c.b16 %v100, %v97
  %v122 = vpack.c.b16 %v101, %v98
  %v123 = vpack.c.b16 %v105, %v102
  %v124 = vpack.c.b16 %v106, %v103
  %v125 = vpack.c.b16 %v107, %v104
  %v126 = vpack.c.b16 %v111, %v108
  %v127 = vpack.c.b16 %v112, %v109
  %v128 = vpack.c.b16 %v113, %v110
  %v129 = vpack.c.b16 %v117, %v114
  %v130 = vpack.c.b16 %v118, %v115
  %v131 = vpack.c.b16 %v119, %v116
  %v176 = vunpack.c.l.b16 %v37
  %v177 = vunpack.c.l.b16 %v38
  %v178 = vunpack.c.l.b16 %v39
  %v179 = vunpack.c.l.b16 %v40
  %v180 = vunpack.c.l.b16 %v41
  %v181 = vunpack.c.l.b16 %v42
  %v182 = vunpack.c.l.b16 %v43
  %v183 = vunpack.c.l.b16 %v44
  %v184 = vunpack.c.l.b16 %v45
  %v185 = vunpack.c.l.b16 %v46
  %v186 = vunpack.c.l.b16 %v47
  %v187 = vunpack.c.l.b16 %v48
  %v188 = vunpack.c.l.b16 %v49
  %v189 = vunpack.c.l.b16 %v50
  %v190 = vunpack.c.l.b16 %v51
  %v191 = vunpack.c.l.b16 %v52
  %v192 = vunpack.c.l.b16 %v53
  %v193 = vunpack.c.l.b16 %v54
  %v194 = vunpack.c.l.b16 %v55
  %v195 = vunpack.c.l.b16 %v56
  %v196 = vunpack.c.l.b16 %v57
  %v197 = vunpack.c.l.b16 %v58
  %v198 = vunpack.c.l.b16 %v59
  %v199 = vunpack.c.l.b16 %v60
  %v200 = vunpack.c.l.b16 %v61
  %v201 = vunpack.c.l.b16 %v62
  %v202 = vunpack.c.l.b16 %v63
  %v203 = vunpack.c.l.b16 %v64
  %v204 = vunpack.c.l.b16 %v65
  %v205 = vunpack.c.l.b16 %v66
  %v206 = vunpack.c.l.b16 %v67
  %v207 = vunpack.c.l.b16 %v68
  %v208 = vunpack.c.l.b16 %v69
  %v209 = vunpack.c.l.b16 %v70
  %v210 = vunpack.c.l.b16 %v71
  %v211 = vunpack.c.l.b16 %v72
  %v212 = vpack.c.b16 %v177, %v176
  %v213 = vpack.c.b16 %v179, %v178
  %v214 = vpack.c.b16 %v181, %v180
  %v215 = vpack.c.b16 %v183, %v182
  %v216 = vpack.c.b16 %v185, %v184
  %v217 = vpack.c.b16 %v187, %v186
  %v218 = vpack.c.b16 %v189, %v188
  %v219 = vpack.c.b16 %v191, %v190
  %v220 = vpack.c.b16 %v193, %v192
  %v221 = vpack.c.b16 %v195, %v194
  %v222 = vpack.c.b16 %v197, %v196
  %v223 = vpack.c.b16 %v199, %v198
  %v224 = vpack.c.b16 %v201, %v200
  %v225 = vpack.c.b16 %v203, %v202
  %v226 = vpack.c.b16 %v205, %v204
  %v227 = vpack.c.b16 %v207, %v206
  %v228 = vpack.c.b16 %v209, %v208
  %v229 = vpack.c.b16 %v211, %v210
  %vm248 = vcmask 261120
  %v250 = vsel %vm248, %v122, 0
  %v253 = vsel %vm248, %v125, 0
  %v256 = vsel %vm248, %v128, 0
  %v259 = vsel %vm248, %v131, 0
  %261 = vmatprep.subr.bf16.mxu0 0
  %262 = vmatpush1.bf16.msra.mxu0 %v212
  %263 = vmatprep.subr.bf16.mxu0 0
  %264 = vmatpush1.bf16.msra.mxu0 %v213
  %265 = vmatprep.subr.bf16.mxu0 0
  %266 = vmatpush1.bf16.msra.mxu0 %v214
  %267 = vmatprep.subr.bf16.mxu0 0
  %268 = vmatpush1.bf16.msra.mxu0 %v215
  %269 = vmatprep.subr.bf16.mxu0 0
  %270 = vmatpush1.bf16.msra.mxu0 %v216
  %271 = vmatprep.subr.bf16.mxu0 0
  %272 = vmatpush1.bf16.msra.mxu0 %v217
  %273 = vmatprep.subr.bf16.mxu0 0
  %274 = vmatpush1.bf16.msra.mxu0 %v218
  %275 = vmatprep.subr.bf16.mxu0 0
  %276 = vmatpush1.bf16.msra.mxu0 %v219
  %277 = vmatprep.subr.bf16.mxu0 0
  %278 = vmatpush1.bf16.msra.mxu0 %v220
  %279 = vmatprep.subr.bf16.mxu0 0
  %280 = vmatpush1.bf16.msra.mxu0 %v221
  %281 = vmatprep.subr.bf16.mxu0 0
  %282 = vmatpush1.bf16.msra.mxu0 %v222
  %283 = vmatprep.subr.bf16.mxu0 0
  %284 = vmatpush1.bf16.msra.mxu0 %v223
  %285 = vmatprep.subr.bf16.mxu0 0
  %286 = vmatpush1.bf16.msra.mxu0 %v224
  %287 = vmatprep.subr.bf16.mxu0 0
  %288 = vmatpush1.bf16.msra.mxu0 %v225
  %289 = vmatprep.subr.bf16.mxu0 0
  %290 = vmatpush1.bf16.msra.mxu0 %v226
  %291 = vmatprep.subr.bf16.mxu0 0
  %292 = vmatpush1.bf16.msra.mxu0 %v227
  %293 = vmatprep.mubr.bf16.mxu0 %v121
  %294 = vmatmul.mubr.bf16.gmra.mrb[0].mxu0 %v120
  %v295 = vpop.f32.mrb[0].mxu0
  %v296 = vadd.f32 %v78, %v295
  %v297 = vpop.f32.mrb[0].mxu0
  %v298 = vpop.f32.mrb[0].mxu0
  %v299 = vadd.f32 %v78, %v298
  %v300 = vpop.f32.mrb[0].mxu0
  %301 = vmatprep.mubr.bf16.mxu0 %v124
  %302 = vmatmul.mubr.bf16.gmra.mrb[0].mxu0 %v123
  %v303 = vpop.f32.mrb[0].mxu0
  %v304 = vadd.f32 %v78, %v303
  %v305 = vpop.f32.mrb[0].mxu0
  %v306 = vpop.f32.mrb[0].mxu0
  %v307 = vadd.f32 %v78, %v306
  %v308 = vpop.f32.mrb[0].mxu0
  %309 = vmatprep.mubr.bf16.mxu0 %v127
  %310 = vmatmul.mubr.bf16.gmra.mrb[0].mxu0 %v126
  %v311 = vpop.f32.mrb[0].mxu0
  %v312 = vadd.f32 %v78, %v311
  %v313 = vpop.f32.mrb[0].mxu0
  %v314 = vpop.f32.mrb[0].mxu0
  %v315 = vadd.f32 %v78, %v314
  %v316 = vpop.f32.mrb[0].mxu0
  %317 = vmatprep.mubr.bf16.mxu0 %v130
  %318 = vmatmul.mubr.bf16.gmra.mrb[0].mxu0 %v129
  %v319 = vpop.f32.mrb[0].mxu0
  %v320 = vadd.f32 %v78, %v319
  %v321 = vpop.f32.mrb[0].mxu0
  %v322 = vpop.f32.mrb[0].mxu0
  %v323 = vadd.f32 %v78, %v322
  %v324 = vpop.f32.mrb[0].mxu0
  %325 = vdwg.mxu0
  %326 = vmatprep.subr.bf16.mxu0 0
  %327 = vmatpush1.bf16.msra.mxu0 %v228
  %328 = vmatprep.subr.bf16.mxu0 0
  %329 = vmatpush1.bf16.msra.mxu0 %v229
  %330 = vmatprep.subr.bf16.mxu0 0
  %331 = vmatpush1.bf16.msra.mxu0 0
  %332 = vmatprep.subr.bf16.mxu0 0
  %333 = vmatpush1.bf16.msra.mxu0 0
  %334 = vmatprep.subr.bf16.mxu0 0
  %335 = vmatpush1.bf16.msra.mxu0 0
  %336 = vmatprep.subr.bf16.mxu0 0
  %337 = vmatpush1.bf16.msra.mxu0 0
  %338 = vmatprep.subr.bf16.mxu0 0
  %339 = vmatpush1.bf16.msra.mxu0 0
  %340 = vmatprep.subr.bf16.mxu0 0
  %341 = vmatpush1.bf16.msra.mxu0 0
  %342 = vmatprep.subr.bf16.mxu0 0
  %343 = vmatpush1.bf16.msra.mxu0 0
  %344 = vmatprep.subr.bf16.mxu0 0
  %345 = vmatpush1.bf16.msra.mxu0 0
  %346 = vmatprep.subr.bf16.mxu0 0
  %347 = vmatpush1.bf16.msra.mxu0 0
  %348 = vmatprep.subr.bf16.mxu0 0
  %349 = vmatpush1.bf16.msra.mxu0 0
  %350 = vmatprep.subr.bf16.mxu0 0
  %351 = vmatpush1.bf16.msra.mxu0 0
  %352 = vmatprep.subr.bf16.mxu0 0
  %353 = vmatpush1.bf16.msra.mxu0 0
  %354 = vmatprep.subr.bf16.mxu0 0
  %355 = vmatpush1.bf16.msra.mxu0 0
  %356 = vmatprep.subr.bf16.mxu0 0
  %357 = vmatpush1.bf16.msra.mxu0 0
  %358 = vmatprep.mubr.bf16.mxu0 0
  %359 = vmatmul.mubr.bf16.gmra.mrb[0].mxu0 %v250
  %v360 = vpop.f32.mrb[0].mxu0
  %v361 = vadd.f32 %v296, %v360
  %v362 = vpop.f32.mrb[0].mxu0
  %v363 = vpop.f32.mrb[0].mxu0
  %v364 = vadd.f32 %v299, %v363
  %v365 = vpop.f32.mrb[0].mxu0
  %366 = vmatprep.mubr.bf16.mxu0 0
  %367 = vmatmul.mubr.bf16.gmra.mrb[0].mxu0 %v253
  %v368 = vpop.f32.mrb[0].mxu0
  %v369 = vadd.f32 %v304, %v368
  %v370 = vpop.f32.mrb[0].mxu0
  %v371 = vpop.f32.mrb[0].mxu0
  %v372 = vadd.f32 %v307, %v371
  %v373 = vpop.f32.mrb[0].mxu0
  %374 = vmatprep.mubr.bf16.mxu0 0
  %375 = vmatmul.mubr.bf16.gmra.mrb[0].mxu0 %v256
  %v376 = vpop.f32.mrb[0].mxu0
  %v377 = vadd.f32 %v312, %v376
  %v378 = vpop.f32.mrb[0].mxu0
  %v379 = vpop.f32.mrb[0].mxu0
  %v380 = vadd.f32 %v315, %v379
  %v381 = vpop.f32.mrb[0].mxu0
  %382 = vmatprep.mubr.bf16.mxu0 0
  %383 = vmatmul.mubr.bf16.gmra.mrb[0].mxu0 %v259
  %v384 = vpop.f32.mrb[0].mxu0
  %v385 = vadd.f32 %v320, %v384
  %v386 = vpop.f32.mrb[0].mxu0
  %v387 = vpop.f32.mrb[0].mxu0
  %v388 = vadd.f32 %v323, %v387
  %v389 = vpop.f32.mrb[0].mxu0
  %390 = vdwg.mxu0
  %v391 = vxor.u32 %v361, 2147483648
  %v392 = vxor.u32 %v364, 2147483648
  %v393 = vxor.u32 %v369, 2147483648
  %v394 = vxor.u32 %v372, 2147483648
  %v395 = vxor.u32 %v377, 2147483648
  %v396 = vxor.u32 %v380, 2147483648
  %v397 = vxor.u32 %v385, 2147483648
  %v398 = vxor.u32 %v388, 2147483648
  %v399 = vmul.f32 %v391, 1.442695
  %v400 = vpow.pop %v399
  %v401 = vmul.f32 %v392, 1.442695
  %v402 = vpow.pop %v401
  %v403 = vmul.f32 %v393, 1.442695
  %v404 = vpow.pop %v403
  %v405 = vmul.f32 %v394, 1.442695
  %v406 = vpow.pop %v405
  %v407 = vmul.f32 %v395, 1.442695
  %v408 = vpow.pop %v407
  %v409 = vmul.f32 %v396, 1.442695
  %v410 = vpow.pop %v409
  %v411 = vmul.f32 %v397, 1.442695
  %v412 = vpow.pop %v411
  %v413 = vmul.f32 %v398, 1.442695
  %v414 = vpow.pop %v413
  %v415 = vadd.f32 %v400, 1.0
  %v416 = vadd.f32 %v402, 1.0
  %v417 = vadd.f32 %v404, 1.0
  %v418 = vadd.f32 %v406, 1.0
  %v419 = vadd.f32 %v408, 1.0
  %v420 = vadd.f32 %v410, 1.0
  %v421 = vadd.f32 %v412, 1.0
  %v422 = vadd.f32 %v414, 1.0
  %v423 = vrcp.pop %v415
  %v424 = vmul.f32 1.0, %v423
  %v425 = vrcp.pop %v416
  %v426 = vmul.f32 1.0, %v425
  %v427 = vrcp.pop %v417
  %v428 = vmul.f32 1.0, %v427
  %v429 = vrcp.pop %v418
  %v430 = vmul.f32 1.0, %v429
  %v431 = vrcp.pop %v419
  %v432 = vmul.f32 1.0, %v431
  %v433 = vrcp.pop %v420
  %v434 = vmul.f32 1.0, %v433
  %v435 = vrcp.pop %v421
  %v436 = vmul.f32 1.0, %v435
  %v437 = vrcp.pop %v422
  %v438 = vmul.f32 1.0, %v437
  %v439 = vmul.f32 %v361, %v424
  %v440 = vmul.f32 %v364, %v426
  %v441 = vmul.f32 %v369, %v428
  %v442 = vmul.f32 %v372, %v430
  %v443 = vmul.f32 %v377, %v432
  %v444 = vmul.f32 %v380, %v434
  %v445 = vmul.f32 %v385, %v436
  %v446 = vmul.f32 %v388, %v438
  %v447 = vpack.c.bf16 %v440, %v439
  %v448 = vpack.c.bf16 %v442, %v441
  %v449 = vpack.c.bf16 %v444, %v443
  %v450 = vpack.c.bf16 %v446, %v445
  %v451 = vld [vmem:[%s3] sm:$0xf]
  %v452 = vld [vmem:[%s3 + $0x4] sm:$0xf]
  %v453 = vld [vmem:[%s3 + $0x8] sm:$0xf]
  %v454 = vld [vmem:[%s3 + $0xc] sm:$0xf]
  %v455 = vld [vmem:[%s3 + $0x10] sm:$0xf]
  %v456 = vld [vmem:[%s3 + $0x14] sm:$0xf]
  %v457 = vld [vmem:[%s3 + $0x18] sm:$0xf]
  %v458 = vld [vmem:[%s3 + $0x1c] sm:$0xf]
  %v459 = vld [vmem:[%s4] sm:$0x1]
  %v461 = vlaneseq
  %v462 = vshrl.u32 %v461, 7
  %v463 = vsub.s32 0, %v462
  %v464 = vrot.slane %v459, %v463
  %v474 = vunpack.c.l.b16 %v451
  %v475 = vunpack.c.l.b16 %v452
  %v476 = vunpack.c.l.b16 %v453
  %v477 = vunpack.c.l.b16 %v454
  %v478 = vunpack.c.l.b16 %v455
  %v479 = vunpack.c.l.b16 %v456
  %v480 = vunpack.c.l.b16 %v457
  %v481 = vunpack.c.l.b16 %v458
  %v482 = vpack.c.b16 %v475, %v474
  %v483 = vpack.c.b16 %v477, %v476
  %v484 = vpack.c.b16 %v479, %v478
  %v485 = vpack.c.b16 %v481, %v480
  %vm490 = vcmask 523264
  %v492 = vsel %vm490, %v447, 0
  %v495 = vsel %vm490, %v448, 0
  %v498 = vsel %vm490, %v449, 0
  %v501 = vsel %vm490, %v450, 0
  %503 = vmatprep.subr.bf16.mxu0 0
  %504 = vmatpush1.bf16.msra.mxu0 %v482
  %505 = vmatprep.subr.bf16.mxu0 0
  %506 = vmatpush1.bf16.msra.mxu0 %v483
  %507 = vmatprep.subr.bf16.mxu0 0
  %508 = vmatpush1.bf16.msra.mxu0 %v484
  %509 = vmatprep.subr.bf16.mxu0 0
  %510 = vmatpush1.bf16.msra.mxu0 %v485
  %511 = vmatprep.subr.bf16.mxu0 0
  %512 = vmatpush1.bf16.msra.mxu0 0
  %513 = vmatprep.subr.bf16.mxu0 0
  %514 = vmatpush1.bf16.msra.mxu0 0
  %515 = vmatprep.subr.bf16.mxu0 0
  %516 = vmatpush1.bf16.msra.mxu0 0
  %517 = vmatprep.subr.bf16.mxu0 0
  %518 = vmatpush1.bf16.msra.mxu0 0
  %519 = vmatprep.subr.bf16.mxu0 0
  %520 = vmatpush1.bf16.msra.mxu0 0
  %521 = vmatprep.subr.bf16.mxu0 0
  %522 = vmatpush1.bf16.msra.mxu0 0
  %523 = vmatprep.subr.bf16.mxu0 0
  %524 = vmatpush1.bf16.msra.mxu0 0
  %525 = vmatprep.subr.bf16.mxu0 0
  %526 = vmatpush1.bf16.msra.mxu0 0
  %527 = vmatprep.subr.bf16.mxu0 0
  %528 = vmatpush1.bf16.msra.mxu0 0
  %529 = vmatprep.subr.bf16.mxu0 0
  %530 = vmatpush1.bf16.msra.mxu0 0
  %531 = vmatprep.subr.bf16.mxu0 0
  %532 = vmatpush1.bf16.msra.mxu0 0
  %533 = vmatprep.subr.bf16.mxu0 0
  %534 = vmatpush1.bf16.msra.mxu0 0
  %535 = vmatprep.mubr.bf16.mxu0 0
  %536 = vmatmul.mubr.bf16.gmra.mrb[0].mxu0 %v492
  %v537 = vpop.f32.mrb[0].mxu0
  %v538 = vadd.f32 %v464, %v537
  %v539 = vpop.f32.mrb[0].mxu0
  %v540 = vpop.f32.mrb[0].mxu0
  %v541 = vadd.f32 %v464, %v540
  %v542 = vpop.f32.mrb[0].mxu0
  %543 = vmatprep.mubr.bf16.mxu0 0
  %544 = vmatmul.mubr.bf16.gmra.mrb[0].mxu0 %v495
  %v545 = vpop.f32.mrb[0].mxu0
  %v546 = vadd.f32 %v464, %v545
  %v547 = vpop.f32.mrb[0].mxu0
  %v548 = vpop.f32.mrb[0].mxu0
  %v549 = vadd.f32 %v464, %v548
  %v550 = vpop.f32.mrb[0].mxu0
  %551 = vmatprep.mubr.bf16.mxu0 0
  %552 = vmatmul.mubr.bf16.gmra.mrb[0].mxu0 %v498
  %v553 = vpop.f32.mrb[0].mxu0
  %v554 = vadd.f32 %v464, %v553
  %v555 = vpop.f32.mrb[0].mxu0
  %v556 = vpop.f32.mrb[0].mxu0
  %v557 = vadd.f32 %v464, %v556
  %v558 = vpop.f32.mrb[0].mxu0
  %559 = vmatprep.mubr.bf16.mxu0 0
  %560 = vmatmul.mubr.bf16.gmra.mrb[0].mxu0 %v501
  %v561 = vpop.f32.mrb[0].mxu0
  %v562 = vadd.f32 %v464, %v561
  %v563 = vpop.f32.mrb[0].mxu0
  %v564 = vpop.f32.mrb[0].mxu0
  %v565 = vadd.f32 %v464, %v564
  %v566 = vpop.f32.mrb[0].mxu0
  %567 = vdwg.mxu0
  %v568 = vxor.u32 %v538, 2147483648
  %v569 = vxor.u32 %v541, 2147483648
  %v570 = vxor.u32 %v546, 2147483648
  %v571 = vxor.u32 %v549, 2147483648
  %v572 = vxor.u32 %v554, 2147483648
  %v573 = vxor.u32 %v557, 2147483648
  %v574 = vxor.u32 %v562, 2147483648
  %v575 = vxor.u32 %v565, 2147483648
  %v576 = vmul.f32 %v568, 1.442695
  %v577 = vpow.pop %v576
  %v578 = vmul.f32 %v569, 1.442695
  %v579 = vpow.pop %v578
  %v580 = vmul.f32 %v570, 1.442695
  %v581 = vpow.pop %v580
  %v582 = vmul.f32 %v571, 1.442695
  %v583 = vpow.pop %v582
  %v584 = vmul.f32 %v572, 1.442695
  %v585 = vpow.pop %v584
  %v586 = vmul.f32 %v573, 1.442695
  %v587 = vpow.pop %v586
  %v588 = vmul.f32 %v574, 1.442695
  %v589 = vpow.pop %v588
  %v590 = vmul.f32 %v575, 1.442695
  %v591 = vpow.pop %v590
  %v592 = vadd.f32 %v577, 1.0
  %v593 = vadd.f32 %v579, 1.0
  %v594 = vadd.f32 %v581, 1.0
  %v595 = vadd.f32 %v583, 1.0
  %v596 = vadd.f32 %v585, 1.0
  %v597 = vadd.f32 %v587, 1.0
  %v598 = vadd.f32 %v589, 1.0
  %v599 = vadd.f32 %v591, 1.0
  %v600 = vrcp.pop %v592
  %v601 = vmul.f32 1.0, %v600
  %v602 = vrcp.pop %v593
  %v603 = vmul.f32 1.0, %v602
  %v604 = vrcp.pop %v594
  %v605 = vmul.f32 1.0, %v604
  %v606 = vrcp.pop %v595
  %v607 = vmul.f32 1.0, %v606
  %v608 = vrcp.pop %v596
  %v609 = vmul.f32 1.0, %v608
  %v610 = vrcp.pop %v597
  %v611 = vmul.f32 1.0, %v610
  %v612 = vrcp.pop %v598
  %v613 = vmul.f32 1.0, %v612
  %v614 = vrcp.pop %v599
  %v615 = vmul.f32 1.0, %v614
  %v616 = vmul.f32 %v538, %v601
  %v617 = vmul.f32 %v541, %v603
  %v618 = vmul.f32 %v546, %v605
  %v619 = vmul.f32 %v549, %v607
  %v620 = vmul.f32 %v554, %v609
  %v621 = vmul.f32 %v557, %v611
  %v622 = vmul.f32 %v562, %v613
  %v623 = vmul.f32 %v565, %v615
  %v624 = vpack.c.bf16 %v617, %v616
  %v625 = vpack.c.bf16 %v619, %v618
  %v626 = vpack.c.bf16 %v621, %v620
  %v627 = vpack.c.bf16 %v623, %v622
  %v632 = vunpack.c.l.b16 %v624
  %v633 = vunpack.c.h.b16 %v624
  %v634 = vunpack.c.l.b16 %v625
  %v635 = vunpack.c.h.b16 %v625
  %v636 = vunpack.c.l.b16 %v626
  %v637 = vunpack.c.h.b16 %v626
  %v638 = vunpack.c.l.b16 %v627
  %v639 = vunpack.c.h.b16 %v627
  %v640 = vpack.c.b16 %v632, %v632
  %v641 = vpack.c.b16 %v633, %v633
  %v642 = vpack.c.b16 %v634, %v634
  %v643 = vpack.c.b16 %v635, %v635
  %v644 = vpack.c.b16 %v636, %v636
  %v645 = vpack.c.b16 %v637, %v637
  %v646 = vpack.c.b16 %v638, %v638
  %v647 = vpack.c.b16 %v639, %v639
  %vm656 = vcmask 519168
  %657 = vst.msk [vmem:[%s5] sm:$0xf] %vm656, %v640
  %658 = vst.msk [vmem:[%s5 + $0x4] sm:$0xf] %vm656, %v641
  %659 = vst.msk [vmem:[%s5 + $0x8] sm:$0xf] %vm656, %v642
  %660 = vst.msk [vmem:[%s5 + $0xc] sm:$0xf] %vm656, %v643
  %661 = vst.msk [vmem:[%s5 + $0x10] sm:$0xf] %vm656, %v644
  %662 = vst.msk [vmem:[%s5 + $0x14] sm:$0xf] %vm656, %v645
  %663 = vst.msk [vmem:[%s5 + $0x18] sm:$0xf] %vm656, %v646
  %664 = vst.msk [vmem:[%s5 + $0x1c] sm:$0xf] %vm656, %v647
  // Predicated region
  $region22: #{yolo_multitask_forward.7} parent=0 // pred_check
    _
  $region23: #{yolo_multitask_forward.7} parent=0 // pred_check_branch
    %666 = sbr.rel (0) target = $region25
  $region24: #{yolo_multitask_forward.7} parent=0 // pred_region
    _
  $region25: #{yolo_multitask_forward.7} parent=0 // pred_fallthru
    _
  // Predicated region
  $region26: #{yolo_multitask_forward.7} parent=0 // pred_check
    _
  $region27: #{yolo_multitask_forward.7} parent=0 // pred_check_branch
    %668 = sbr.rel (0) target = $region29
  $region28: #{yolo_multitask_forward.7} parent=0 // pred_region
    _
  $region29: #{yolo_multitask_forward.7} parent=0 // pred_fallthru
    _

// kernel: yolo_multitask_forward.8
$region0: #{yolo_multitask_forward.8}
  #allocation0 [shape = 'u32[]', space=smem, size = 0x4, offset = 0x4, fixed_abs, tag = 'smem constant byte address 0x4 - core index']
  #allocation1 [shape = 'u32[144,128]{1,0:T(1,128)}', space=vmem, size = 0x12000, scoped, tag = 'internal scratch']
  %s0 = inlined_call_operand.vmem [shape: bf16[64,576], index: 0, kind: input, shape index: {}]
  %s1 = inlined_call_operand.vmem [shape: bf16[576,64], index: 1, kind: input, shape index: {}]
  %s2 = inlined_call_operand.vmem [shape: f32[1,64], index: 2, kind: input, shape index: {}]
  %s3 = inlined_call_operand.vmem [shape: bf16[64,64], index: 3, kind: output, shape index: {}]
  %s4 = sld [smem:[#allocation0]]
  $region22: #{yolo_multitask_forward.8} parent=0
    _
  %s6 = ssub.s32 1, %s4
  %s7 = scalar_select 0, %s6, %s4
  // Predicated region
  $region2: #{yolo_multitask_forward.8} parent=0 // pred_check
    _
  $region3: #{yolo_multitask_forward.8} parent=0 // pred_check_branch
    %9 = sbr.rel (0) target = $region5
  $region4: #{yolo_multitask_forward.8} parent=0 // pred_region
    _
  $region5: #{yolo_multitask_forward.8} parent=0 // pred_fallthru
    _
  // Predicated region
  $region6: #{yolo_multitask_forward.8} parent=0 // pred_check
    _
  $region7: #{yolo_multitask_forward.8} parent=0 // pred_check_branch
    %11 = sbr.rel (0) target = $region9
  $region8: #{yolo_multitask_forward.8} parent=0 // pred_region
    _
  $region9: #{yolo_multitask_forward.8} parent=0 // pred_fallthru
    _
  // Predicated region
  $region10: #{yolo_multitask_forward.8} parent=0 // pred_check
    _
  $region11: #{yolo_multitask_forward.8} parent=0 // pred_check_branch
    %13 = sbr.rel (0) target = $region13
  $region12: #{yolo_multitask_forward.8} parent=0 // pred_region
    _
  $region13: #{yolo_multitask_forward.8} parent=0 // pred_fallthru
    _
  %v15 = vld [vmem:[%s0] sm:$0xff]
  %v16 = vld [vmem:[%s0 + $0x8] sm:$0xff]
  %v17 = vld [vmem:[%s0 + $0x10] sm:$0xf]
  %v18 = vld [vmem:[%s0 + $0x14] sm:$0xff]
  %v19 = vld [vmem:[%s0 + $0x1c] sm:$0xff]
  %v20 = vld [vmem:[%s0 + $0x24] sm:$0xf]
  %v21 = vld [vmem:[%s0 + $0x28] sm:$0xff]
  %v22 = vld [vmem:[%s0 + $0x30] sm:$0xff]
  %v23 = vld [vmem:[%s0 + $0x38] sm:$0xf]
  %v24 = vld [vmem:[%s0 + $0x3c] sm:$0xff]
  %v25 = vld [vmem:[%s0 + $0x44] sm:$0xff]
  %v26 = vld [vmem:[%s0 + $0x4c] sm:$0xf]
  %v27 = vld [vmem:[%s0 + $0x50] sm:$0xff]
  %v28 = vld [vmem:[%s0 + $0x58] sm:$0xff]
  %v29 = vld [vmem:[%s0 + $0x60] sm:$0xf]
  %v30 = vld [vmem:[%s0 + $0x64] sm:$0xff]
  %v31 = vld [vmem:[%s0 + $0x6c] sm:$0xff]
  %v32 = vld [vmem:[%s0 + $0x74] sm:$0xf]
  %v33 = vld [vmem:[%s0 + $0x78] sm:$0xff]
  %v34 = vld [vmem:[%s0 + $0x80] sm:$0xff]
  %v35 = vld [vmem:[%s0 + $0x88] sm:$0xf]
  %v36 = vld [vmem:[%s0 + $0x8c] sm:$0xff]
  %v37 = vld [vmem:[%s0 + $0x94] sm:$0xff]
  %v38 = vld [vmem:[%s0 + $0x9c] sm:$0xf]
  %v39 = vld [vmem:[%s1] sm:$0xf]
  %v40 = vld [vmem:[%s1 + $0x4] sm:$0xf]
  %v41 = vld [vmem:[%s1 + $0x8] sm:$0xf]
  %v42 = vld [vmem:[%s1 + $0xc] sm:$0xf]
  %v43 = vld [vmem:[%s1 + $0x10] sm:$0xf]
  %v44 = vld [vmem:[%s1 + $0x14] sm:$0xf]
  %v45 = vld [vmem:[%s1 + $0x18] sm:$0xf]
  %v46 = vld [vmem:[%s1 + $0x1c] sm:$0xf]
  %v47 = vld [vmem:[%s1 + $0x20] sm:$0xf]
  %v48 = vld [vmem:[%s1 + $0x24] sm:$0xf]
  %v49 = vld [vmem:[%s1 + $0x28] sm:$0xf]
  %v50 = vld [vmem:[%s1 + $0x2c] sm:$0xf]
  %v51 = vld [vmem:[%s1 + $0x30] sm:$0xf]
  %v52 = vld [vmem:[%s1 + $0x34] sm:$0xf]
  %v53 = vld [vmem:[%s1 + $0x38] sm:$0xf]
  %v54 = vld [vmem:[%s1 + $0x3c] sm:$0xf]
  %v55 = vld [vmem:[%s1 + $0x40] sm:$0xf]
  %v56 = vld [vmem:[%s1 + $0x44] sm:$0xf]
  %v57 = vld [vmem:[%s1 + $0x48] sm:$0xf]
  %v58 = vld [vmem:[%s1 + $0x4c] sm:$0xf]
  %v59 = vld [vmem:[%s1 + $0x50] sm:$0xf]
  %v60 = vld [vmem:[%s1 + $0x54] sm:$0xf]
  %v61 = vld [vmem:[%s1 + $0x58] sm:$0xf]
  %v62 = vld [vmem:[%s1 + $0x5c] sm:$0xf]
  %v63 = vld [vmem:[%s1 + $0x60] sm:$0xf]
  %v64 = vld [vmem:[%s1 + $0x64] sm:$0xf]
  %v65 = vld [vmem:[%s1 + $0x68] sm:$0xf]
  %v66 = vld [vmem:[%s1 + $0x6c] sm:$0xf]
  %v67 = vld [vmem:[%s1 + $0x70] sm:$0xf]
  %v68 = vld [vmem:[%s1 + $0x74] sm:$0xf]
  %v69 = vld [vmem:[%s1 + $0x78] sm:$0xf]
  %v70 = vld [vmem:[%s1 + $0x7c] sm:$0xf]
  %v71 = vld [vmem:[%s1 + $0x80] sm:$0xf]
  %v72 = vld [vmem:[%s1 + $0x84] sm:$0xf]
  %v73 = vld [vmem:[%s1 + $0x88] sm:$0xf]
  %v74 = vld [vmem:[%s1 + $0x8c] sm:$0xf]
  %v75 = vld [vmem:[%s1 + $0x90] sm:$0xf]
  %v76 = vld [vmem:[%s1 + $0x94] sm:$0xf]
  %v77 = vld [vmem:[%s1 + $0x98] sm:$0xf]
  %v78 = vld [vmem:[%s1 + $0x9c] sm:$0xf]
  %v79 = vld [vmem:[%s1 + $0xa0] sm:$0xf]
  %v80 = vld [vmem:[%s1 + $0xa4] sm:$0xf]
  %v81 = vld [vmem:[%s1 + $0xa8] sm:$0xf]
  %v82 = vld [vmem:[%s1 + $0xac] sm:$0xf]
  %v83 = vld [vmem:[%s1 + $0xb0] sm:$0xf]
  %v84 = vld [vmem:[%s1 + $0xb4] sm:$0xf]
  %v85 = vld [vmem:[%s1 + $0xb8] sm:$0xf]
  %v86 = vld [vmem:[%s1 + $0xbc] sm:$0xf]
  %v87 = vld [vmem:[%s1 + $0xc0] sm:$0xf]
  %v88 = vld [vmem:[%s1 + $0xc4] sm:$0xf]
  %v89 = vld [vmem:[%s1 + $0xc8] sm:$0xf]
  %v90 = vld [vmem:[%s1 + $0xcc] sm:$0xf]
  %v91 = vld [vmem:[%s1 + $0xd0] sm:$0xf]
  %v92 = vld [vmem:[%s1 + $0xd4] sm:$0xf]
  %v93 = vld [vmem:[%s1 + $0xd8] sm:$0xf]
  %v94 = vld [vmem:[%s1 + $0xdc] sm:$0xf]
  %v95 = vld [vmem:[%s1 + $0xe0] sm:$0xf]
  %v96 = vld [vmem:[%s1 + $0xe4] sm:$0xf]
  %v97 = vld [vmem:[%s1 + $0xe8] sm:$0xf]
  %v98 = vld [vmem:[%s1 + $0xec] sm:$0xf]
  %v99 = vld [vmem:[%s1 + $0xf0] sm:$0xf]
  %v100 = vld [vmem:[%s1 + $0xf4] sm:$0xf]
  %v101 = vld [vmem:[%s1 + $0xf8] sm:$0xf]
  %v102 = vld [vmem:[%s1 + $0xfc] sm:$0xf]
  %v103 = vld [vmem:[%s1 + $0x100] sm:$0xf]
  %v104 = vld [vmem:[%s1 + $0x104] sm:$0xf]
  %v105 = vld [vmem:[%s1 + $0x108] sm:$0xf]
  %v106 = vld [vmem:[%s1 + $0x10c] sm:$0xf]
  %v107 = vld [vmem:[%s1 + $0x110] sm:$0xf]
  %v108 = vld [vmem:[%s1 + $0x114] sm:$0xf]
  %v109 = vld [vmem:[%s1 + $0x118] sm:$0xf]
  %v110 = vld [vmem:[%s1 + $0x11c] sm:$0xf]
  %v111 = vld [vmem:[%s2] sm:$0x1]
  %v113 = vlaneseq
  %v114 = vshrl.u32 %v113, 7
  %v115 = vsub.s32 0, %v114
  %v116 = vrot.slane %v111, %v115
  %v142 = vunpack.c.l.b16 %v15
  %v143 = vunpack.c.h.b16 %v15
  %v144 = vunpack.c.l.b16 %v16
  %v145 = vunpack.c.h.b16 %v16
  %v146 = vunpack.c.l.b16 %v17
  %v147 = vunpack.c.l.b16 %v18
  %v148 = vunpack.c.h.b16 %v18
  %v149 = vunpack.c.l.b16 %v19
  %v150 = vunpack.c.h.b16 %v19
  %v151 = vunpack.c.l.b16 %v20
  %v152 = vunpack.c.l.b16 %v21
  %v153 = vunpack.c.h.b16 %v21
  %v154 = vunpack.c.l.b16 %v22
  %v155 = vunpack.c.h.b16 %v22
  %v156 = vunpack.c.l.b16 %v23
  %v157 = vunpack.c.l.b16 %v24
  %v158 = vunpack.c.h.b16 %v24
  %v159 = vunpack.c.l.b16 %v25
  %v160 = vunpack.c.h.b16 %v25
  %v161 = vunpack.c.l.b16 %v26
  %v162 = vunpack.c.l.b16 %v27
  %v163 = vunpack.c.h.b16 %v27
  %v164 = vunpack.c.l.b16 %v28
  %v165 = vunpack.c.h.b16 %v28
  %v166 = vunpack.c.l.b16 %v29
  %v167 = vunpack.c.l.b16 %v30
  %v168 = vunpack.c.h.b16 %v30
  %v169 = vunpack.c.l.b16 %v31
  %v170 = vunpack.c.h.b16 %v31
  %v171 = vunpack.c.l.b16 %v32
  %v172 = vunpack.c.l.b16 %v33
  %v173 = vunpack.c.h.b16 %v33
  %v174 = vunpack.c.l.b16 %v34
  %v175 = vunpack.c.h.b16 %v34
  %v176 = vunpack.c.l.b16 %v35
  %v177 = vunpack.c.l.b16 %v36
  %v178 = vunpack.c.h.b16 %v36
  %v179 = vunpack.c.l.b16 %v37
  %v180 = vunpack.c.h.b16 %v37
  %v181 = vunpack.c.l.b16 %v38
  %v182 = vpack.c.b16 %v147, %v142
  %v183 = vpack.c.b16 %v148, %v143
  %v184 = vpack.c.b16 %v149, %v144
  %v185 = vpack.c.b16 %v150, %v145
  %v186 = vpack.c.b16 %v151, %v146
  %v187 = vpack.c.b16 %v157, %v152
  %v188 = vpack.c.b16 %v158, %v153
  %v189 = vpack.c.b16 %v159, %v154
  %v190 = vpack.c.b16 %v160, %v155
  %v191 = vpack.c.b16 %v161, %v156
  %v192 = vpack.c.b16 %v167, %v162
  %v193 = vpack.c.b16 %v168, %v163
  %v194 = vpack.c.b16 %v169, %v164
  %v195 = vpack.c.b16 %v170, %v165
  %v196 = vpack.c.b16 %v171, %v166
  %v197 = vpack.c.b16 %v177, %v172
  %v198 = vpack.c.b16 %v178, %v173
  %v199 = vpack.c.b16 %v179, %v174
  %v200 = vpack.c.b16 %v180, %v175
  %v201 = vpack.c.b16 %v181, %v176
  %v290 = vunpack.c.l.b16 %v39
  %v291 = vunpack.c.l.b16 %v40
  %v292 = vunpack.c.l.b16 %v41
  %v293 = vunpack.c.l.b16 %v42
  %v294 = vunpack.c.l.b16 %v43
  %v295 = vunpack.c.l.b16 %v44
  %v296 = vunpack.c.l.b16 %v45
  %v297 = vunpack.c.l.b16 %v46
  %v298 = vunpack.c.l.b16 %v47
  %v299 = vunpack.c.l.b16 %v48
  %v300 = vunpack.c.l.b16 %v49
  %v301 = vunpack.c.l.b16 %v50
  %v302 = vunpack.c.l.b16 %v51
  %v303 = vunpack.c.l.b16 %v52
  %v304 = vunpack.c.l.b16 %v53
  %v305 = vunpack.c.l.b16 %v54
  %v306 = vunpack.c.l.b16 %v55
  %v307 = vunpack.c.l.b16 %v56
  %v308 = vunpack.c.l.b16 %v57
  %v309 = vunpack.c.l.b16 %v58
  %v310 = vunpack.c.l.b16 %v59
  %v311 = vunpack.c.l.b16 %v60
  %v312 = vunpack.c.l.b16 %v61
  %v313 = vunpack.c.l.b16 %v62
  %v314 = vunpack.c.l.b16 %v63
  %v315 = vunpack.c.l.b16 %v64
  %v316 = vunpack.c.l.b16 %v65
  %v317 = vunpack.c.l.b16 %v66
  %v318 = vunpack.c.l.b16 %v67
  %v319 = vunpack.c.l.b16 %v68
  %v320 = vunpack.c.l.b16 %v69
  %v321 = vunpack.c.l.b16 %v70
  %v322 = vunpack.c.l.b16 %v71
  %v323 = vunpack.c.l.b16 %v72
  %v324 = vunpack.c.l.b16 %v73
  %v325 = vunpack.c.l.b16 %v74
  %v326 = vunpack.c.l.b16 %v75
  %v327 = vunpack.c.l.b16 %v76
  %v328 = vunpack.c.l.b16 %v77
  %v329 = vunpack.c.l.b16 %v78
  %v330 = vunpack.c.l.b16 %v79
  %v331 = vunpack.c.l.b16 %v80
  %v332 = vunpack.c.l.b16 %v81
  %v333 = vunpack.c.l.b16 %v82
  %v334 = vunpack.c.l.b16 %v83
  %v335 = vunpack.c.l.b16 %v84
  %v336 = vunpack.c.l.b16 %v85
  %v337 = vunpack.c.l.b16 %v86
  %v338 = vunpack.c.l.b16 %v87
  %v339 = vunpack.c.l.b16 %v88
  %v340 = vunpack.c.l.b16 %v89
  %v341 = vunpack.c.l.b16 %v90
  %v342 = vunpack.c.l.b16 %v91
  %v343 = vunpack.c.l.b16 %v92
  %v344 = vunpack.c.l.b16 %v93
  %v345 = vunpack.c.l.b16 %v94
  %v346 = vunpack.c.l.b16 %v95
  %v347 = vunpack.c.l.b16 %v96
  %v348 = vunpack.c.l.b16 %v97
  %v349 = vunpack.c.l.b16 %v98
  %v350 = vunpack.c.l.b16 %v99
  %v351 = vunpack.c.l.b16 %v100
  %v352 = vunpack.c.l.b16 %v101
  %v353 = vunpack.c.l.b16 %v102
  %v354 = vunpack.c.l.b16 %v103
  %v355 = vunpack.c.l.b16 %v104
  %v356 = vunpack.c.l.b16 %v105
  %v357 = vunpack.c.l.b16 %v106
  %v358 = vunpack.c.l.b16 %v107
  %v359 = vunpack.c.l.b16 %v108
  %v360 = vunpack.c.l.b16 %v109
  %v361 = vunpack.c.l.b16 %v110
  %v362 = vpack.c.b16 %v291, %v290
  %v363 = vpack.c.b16 %v293, %v292
  %v364 = vpack.c.b16 %v295, %v294
  %v365 = vpack.c.b16 %v297, %v296
  %v366 = vpack.c.b16 %v299, %v298
  %v367 = vpack.c.b16 %v301, %v300
  %v368 = vpack.c.b16 %v303, %v302
  %v369 = vpack.c.b16 %v305, %v304
  %v370 = vpack.c.b16 %v307, %v306
  %v371 = vpack.c.b16 %v309, %v308
  %v372 = vpack.c.b16 %v311, %v310
  %v373 = vpack.c.b16 %v313, %v312
  %v374 = vpack.c.b16 %v315, %v314
  %v375 = vpack.c.b16 %v317, %v316
  %v376 = vpack.c.b16 %v319, %v318
  %v377 = vpack.c.b16 %v321, %v320
  %v378 = vpack.c.b16 %v323, %v322
  %v379 = vpack.c.b16 %v325, %v324
  %v380 = vpack.c.b16 %v327, %v326
  %v381 = vpack.c.b16 %v329, %v328
  %v382 = vpack.c.b16 %v331, %v330
  %v383 = vpack.c.b16 %v333, %v332
  %v384 = vpack.c.b16 %v335, %v334
  %v385 = vpack.c.b16 %v337, %v336
  %v386 = vpack.c.b16 %v339, %v338
  %v387 = vpack.c.b16 %v341, %v340
  %v388 = vpack.c.b16 %v343, %v342
  %v389 = vpack.c.b16 %v345, %v344
  %v390 = vpack.c.b16 %v347, %v346
  %v391 = vpack.c.b16 %v349, %v348
  %v392 = vpack.c.b16 %v351, %v350
  %v393 = vpack.c.b16 %v353, %v352
  %v394 = vpack.c.b16 %v355, %v354
  %v395 = vpack.c.b16 %v357, %v356
  %v396 = vpack.c.b16 %v359, %v358
  %v397 = vpack.c.b16 %v361, %v360
  %vm434 = vcmask 523264
  %v436 = vsel %vm434, %v186, 0
  %v439 = vsel %vm434, %v191, 0
  %v442 = vsel %vm434, %v196, 0
  %v445 = vsel %vm434, %v201, 0
  %447 = vmatprep.subr.bf16.mxu0 0
  %448 = vmatpush1.bf16.msra.mxu0 %v362
  %449 = vmatprep.subr.bf16.mxu0 0
  %450 = vmatpush1.bf16.msra.mxu0 %v363
  %451 = vmatprep.subr.bf16.mxu0 0
  %452 = vmatpush1.bf16.msra.mxu0 %v364
  %453 = vmatprep.subr.bf16.mxu0 0
  %454 = vmatpush1.bf16.msra.mxu0 %v365
  %455 = vmatprep.subr.bf16.mxu0 0
  %456 = vmatpush1.bf16.msra.mxu0 %v366
  %457 = vmatprep.subr.bf16.mxu0 0
  %458 = vmatpush1.bf16.msra.mxu0 %v367
  %459 = vmatprep.subr.bf16.mxu0 0
  %460 = vmatpush1.bf16.msra.mxu0 %v368
  %461 = vmatprep.subr.bf16.mxu0 0
  %462 = vmatpush1.bf16.msra.mxu0 %v369
  %463 = vmatprep.subr.bf16.mxu0 0
  %464 = vmatpush1.bf16.msra.mxu0 %v370
  %465 = vmatprep.subr.bf16.mxu0 0
  %466 = vmatpush1.bf16.msra.mxu0 %v371
  %467 = vmatprep.subr.bf16.mxu0 0
  %468 = vmatpush1.bf16.msra.mxu0 %v372
  %469 = vmatprep.subr.bf16.mxu0 0
  %470 = vmatpush1.bf16.msra.mxu0 %v373
  %471 = vmatprep.subr.bf16.mxu0 0
  %472 = vmatpush1.bf16.msra.mxu0 %v374
  %473 = vmatprep.subr.bf16.mxu0 0
  %474 = vmatpush1.bf16.msra.mxu0 %v375
  %475 = vmatprep.subr.bf16.mxu0 0
  %476 = vmatpush1.bf16.msra.mxu0 %v376
  %477 = vmatprep.subr.bf16.mxu0 0
  %478 = vmatpush1.bf16.msra.mxu0 %v377
  %479 = vmatprep.mubr.bf16.mxu0 %v183
  %480 = vmatmul.mubr.bf16.gmra.mrb[0].mxu0 %v182
  %v481 = vpop.f32.mrb[0].mxu0
  %v482 = vadd.f32 %v116, %v481
  %v483 = vpop.f32.mrb[0].mxu0
  %v484 = vpop.f32.mrb[0].mxu0
  %v485 = vadd.f32 %v116, %v484
  %v486 = vpop.f32.mrb[0].mxu0
  %487 = vmatprep.mubr.bf16.mxu0 %v188
  %488 = vmatmul.mubr.bf16.gmra.mrb[0].mxu0 %v187
  %v489 = vpop.f32.mrb[0].mxu0
  %v490 = vadd.f32 %v116, %v489
  %v491 = vpop.f32.mrb[0].mxu0
  %v492 = vpop.f32.mrb[0].mxu0
  %v493 = vadd.f32 %v116, %v492
  %v494 = vpop.f32.mrb[0].mxu0
  %495 = vmatprep.mubr.bf16.mxu0 %v193
  %496 = vmatmul.mubr.bf16.gmra.mrb[0].mxu0 %v192
  %v497 = vpop.f32.mrb[0].mxu0
  %v498 = vadd.f32 %v116, %v497
  %v499 = vpop.f32.mrb[0].mxu0
  %v500 = vpop.f32.mrb[0].mxu0
  %v501 = vadd.f32 %v116, %v500
  %v502 = vpop.f32.mrb[0].mxu0
  %503 = vmatprep.mubr.bf16.mxu0 %v198
  %504 = vmatmul.mubr.bf16.gmra.mrb[0].mxu0 %v197
  %v505 = vpop.f32.mrb[0].mxu0
  %v506 = vadd.f32 %v116, %v505
  %v507 = vpop.f32.mrb[0].mxu0
  %v508 = vpop.f32.mrb[0].mxu0
  %v509 = vadd.f32 %v116, %v508
  %v510 = vpop.f32.mrb[0].mxu0
  %511 = vdwg.mxu0
  %512 = vmatprep.subr.bf16.mxu0 0
  %513 = vmatpush1.bf16.msra.mxu0 %v378
  %514 = vmatprep.subr.bf16.mxu0 0
  %515 = vmatpush1.bf16.msra.mxu0 %v379
  %516 = vmatprep.subr.bf16.mxu0 0
  %517 = vmatpush1.bf16.msra.mxu0 %v380
  %518 = vmatprep.subr.bf16.mxu0 0
  %519 = vmatpush1.bf16.msra.mxu0 %v381
  %520 = vmatprep.subr.bf16.mxu0 0
  %521 = vmatpush1.bf16.msra.mxu0 %v382
  %522 = vmatprep.subr.bf16.mxu0 0
  %523 = vmatpush1.bf16.msra.mxu0 %v383
  %524 = vmatprep.subr.bf16.mxu0 0
  %525 = vmatpush1.bf16.msra.mxu0 %v384
  %526 = vmatprep.subr.bf16.mxu0 0
  %527 = vmatpush1.bf16.msra.mxu0 %v385
  %528 = vmatprep.subr.bf16.mxu0 0
  %529 = vmatpush1.bf16.msra.mxu0 %v386
  %530 = vmatprep.subr.bf16.mxu0 0
  %531 = vmatpush1.bf16.msra.mxu0 %v387
  %532 = vmatprep.subr.bf16.mxu0 0
  %533 = vmatpush1.bf16.msra.mxu0 %v388
  %534 = vmatprep.subr.bf16.mxu0 0
  %535 = vmatpush1.bf16.msra.mxu0 %v389
  %536 = vmatprep.subr.bf16.mxu0 0
  %537 = vmatpush1.bf16.msra.mxu0 %v390
  %538 = vmatprep.subr.bf16.mxu0 0
  %539 = vmatpush1.bf16.msra.mxu0 %v391
  %540 = vmatprep.subr.bf16.mxu0 0
  %541 = vmatpush1.bf16.msra.mxu0 %v392
  %542 = vmatprep.subr.bf16.mxu0 0
  %543 = vmatpush1.bf16.msra.mxu0 %v393
  %544 = vmatprep.mubr.bf16.mxu0 %v185
  %545 = vmatmul.mubr.bf16.gmra.mrb[0].mxu0 %v184
  %v546 = vpop.f32.mrb[0].mxu0
  %v547 = vadd.f32 %v482, %v546
  %v548 = vpop.f32.mrb[0].mxu0
  %v549 = vpop.f32.mrb[0].mxu0
  %v550 = vadd.f32 %v485, %v549
  %v551 = vpop.f32.mrb[0].mxu0
  %552 = vmatprep.mubr.bf16.mxu0 %v190
  %553 = vmatmul.mubr.bf16.gmra.mrb[0].mxu0 %v189
  %v554 = vpop.f32.mrb[0].mxu0
  %v555 = vadd.f32 %v490, %v554
  %v556 = vpop.f32.mrb[0].mxu0
  %v557 = vpop.f32.mrb[0].mxu0
  %v558 = vadd.f32 %v493, %v557
  %v559 = vpop.f32.mrb[0].mxu0
  %560 = vmatprep.mubr.bf16.mxu0 %v195
  %561 = vmatmul.mubr.bf16.gmra.mrb[0].mxu0 %v194
  %v562 = vpop.f32.mrb[0].mxu0
  %v563 = vadd.f32 %v498, %v562
  %v564 = vpop.f32.mrb[0].mxu0
  %v565 = vpop.f32.mrb[0].mxu0
  %v566 = vadd.f32 %v501, %v565
  %v567 = vpop.f32.mrb[0].mxu0
  %568 = vmatprep.mubr.bf16.mxu0 %v200
  %569 = vmatmul.mubr.bf16.gmra.mrb[0].mxu0 %v199
  %v570 = vpop.f32.mrb[0].mxu0
  %v571 = vadd.f32 %v506, %v570
  %v572 = vpop.f32.mrb[0].mxu0
  %v573 = vpop.f32.mrb[0].mxu0
  %v574 = vadd.f32 %v509, %v573
  %v575 = vpop.f32.mrb[0].mxu0
  %576 = vdwg.mxu0
  %577 = vmatprep.subr.bf16.mxu0 0
  %578 = vmatpush1.bf16.msra.mxu0 %v394
  %579 = vmatprep.subr.bf16.mxu0 0
  %580 = vmatpush1.bf16.msra.mxu0 %v395
  %581 = vmatprep.subr.bf16.mxu0 0
  %582 = vmatpush1.bf16.msra.mxu0 %v396
  %583 = vmatprep.subr.bf16.mxu0 0
  %584 = vmatpush1.bf16.msra.mxu0 %v397
  %585 = vmatprep.subr.bf16.mxu0 0
  %586 = vmatpush1.bf16.msra.mxu0 0
  %587 = vmatprep.subr.bf16.mxu0 0
  %588 = vmatpush1.bf16.msra.mxu0 0
  %589 = vmatprep.subr.bf16.mxu0 0
  %590 = vmatpush1.bf16.msra.mxu0 0
  %591 = vmatprep.subr.bf16.mxu0 0
  %592 = vmatpush1.bf16.msra.mxu0 0
  %593 = vmatprep.subr.bf16.mxu0 0
  %594 = vmatpush1.bf16.msra.mxu0 0
  %595 = vmatprep.subr.bf16.mxu0 0
  %596 = vmatpush1.bf16.msra.mxu0 0
  %597 = vmatprep.subr.bf16.mxu0 0
  %598 = vmatpush1.bf16.msra.mxu0 0
  %599 = vmatprep.subr.bf16.mxu0 0
  %600 = vmatpush1.bf16.msra.mxu0 0
  %601 = vmatprep.subr.bf16.mxu0 0
  %602 = vmatpush1.bf16.msra.mxu0 0
  %603 = vmatprep.subr.bf16.mxu0 0
  %604 = vmatpush1.bf16.msra.mxu0 0
  %605 = vmatprep.subr.bf16.mxu0 0
  %606 = vmatpush1.bf16.msra.mxu0 0
  %607 = vmatprep.subr.bf16.mxu0 0
  %608 = vmatpush1.bf16.msra.mxu0 0
  %609 = vmatprep.mubr.bf16.mxu0 0
  %610 = vmatmul.mubr.bf16.gmra.mrb[0].mxu0 %v436
  %v611 = vpop.f32.mrb[0].mxu0
  %v612 = vadd.f32 %v547, %v611
  %v613 = vpop.f32.mrb[0].mxu0
  %v614 = vpop.f32.mrb[0].mxu0
  %v615 = vadd.f32 %v550, %v614
  %v616 = vpop.f32.mrb[0].mxu0
  %617 = vmatprep.mubr.bf16.mxu0 0
  %618 = vmatmul.mubr.bf16.gmra.mrb[0].mxu0 %v439
  %v619 = vpop.f32.mrb[0].mxu0
  %v620 = vadd.f32 %v555, %v619
  %v621 = vpop.f32.mrb[0].mxu0
  %v622 = vpop.f32.mrb[0].mxu0
  %v623 = vadd.f32 %v558, %v622
  %v624 = vpop.f32.mrb[0].mxu0
  %625 = vmatprep.mubr.bf16.mxu0 0
  %626 = vmatmul.mubr.bf16.gmra.mrb[0].mxu0 %v442
  %v627 = vpop.f32.mrb[0].mxu0
  %v628 = vadd.f32 %v563, %v627
  %v629 = vpop.f32.mrb[0].mxu0
  %v630 = vpop.f32.mrb[0].mxu0
  %v631 = vadd.f32 %v566, %v630
  %v632 = vpop.f32.mrb[0].mxu0
  %633 = vmatprep.mubr.bf16.mxu0 0
  %634 = vmatmul.mubr.bf16.gmra.mrb[0].mxu0 %v445
  %v635 = vpop.f32.mrb[0].mxu0
  %v636 = vadd.f32 %v571, %v635
  %v637 = vpop.f32.mrb[0].mxu0
  %v638 = vpop.f32.mrb[0].mxu0
  %v639 = vadd.f32 %v574, %v638
  %v640 = vpop.f32.mrb[0].mxu0
  %641 = vdwg.mxu0
  %v642 = vxor.u32 %v612, 2147483648
  %v643 = vxor.u32 %v615, 2147483648
  %v644 = vxor.u32 %v620, 2147483648
  %v645 = vxor.u32 %v623, 2147483648
  %v646 = vxor.u32 %v628, 2147483648
  %v647 = vxor.u32 %v631, 2147483648
  %v648 = vxor.u32 %v636, 2147483648
  %v649 = vxor.u32 %v639, 2147483648
  %v650 = vmul.f32 %v642, 1.442695
  %v651 = vpow.pop %v650
  %v652 = vmul.f32 %v643, 1.442695
  %v653 = vpow.pop %v652
  %v654 = vmul.f32 %v644, 1.442695
  %v655 = vpow.pop %v654
  %v656 = vmul.f32 %v645, 1.442695
  %v657 = vpow.pop %v656
  %v658 = vmul.f32 %v646, 1.442695
  %v659 = vpow.pop %v658
  %v660 = vmul.f32 %v647, 1.442695
  %v661 = vpow.pop %v660
  %v662 = vmul.f32 %v648, 1.442695
  %v663 = vpow.pop %v662
  %v664 = vmul.f32 %v649, 1.442695
  %v665 = vpow.pop %v664
  %v666 = vadd.f32 %v651, 1.0
  %v667 = vadd.f32 %v653, 1.0
  %v668 = vadd.f32 %v655, 1.0
  %v669 = vadd.f32 %v657, 1.0
  %v670 = vadd.f32 %v659, 1.0
  %v671 = vadd.f32 %v661, 1.0
  %v672 = vadd.f32 %v663, 1.0
  %v673 = vadd.f32 %v665, 1.0
  %v674 = vrcp.pop %v666
  %v675 = vmul.f32 1.0, %v674
  %v676 = vrcp.pop %v667
  %v677 = vmul.f32 1.0, %v676
  %v678 = vrcp.pop %v668
  %v679 = vmul.f32 1.0, %v678
  %v680 = vrcp.pop %v669
  %v681 = vmul.f32 1.0, %v680
  %v682 = vrcp.pop %v670
  %v683 = vmul.f32 1.0, %v682
  %v684 = vrcp.pop %v671
  %v685 = vmul.f32 1.0, %v684
  %v686 = vrcp.pop %v672
  %v687 = vmul.f32 1.0, %v686
  %v688 = vrcp.pop %v673
  %v689 = vmul.f32 1.0, %v688
  %v690 = vmul.f32 %v612, %v675
  %v691 = vmul.f32 %v615, %v677
  %v692 = vmul.f32 %v620, %v679
  %v693 = vmul.f32 %v623, %v681
  %v694 = vmul.f32 %v628, %v683
  %v695 = vmul.f32 %v631, %v685
  %v696 = vmul.f32 %v636, %v687
  %v697 = vmul.f32 %v639, %v689
  %v698 = vpack.c.bf16 %v691, %v690
  %v699 = vpack.c.bf16 %v693, %v692
  %v700 = vpack.c.bf16 %v695, %v694
  %v701 = vpack.c.bf16 %v697, %v696
  %v706 = vunpack.c.l.b16 %v698
  %v707 = vunpack.c.h.b16 %v698
  %v708 = vunpack.c.l.b16 %v699
  %v709 = vunpack.c.h.b16 %v699
  %v710 = vunpack.c.l.b16 %v700
  %v711 = vunpack.c.h.b16 %v700
  %v712 = vunpack.c.l.b16 %v701
  %v713 = vunpack.c.h.b16 %v701
  %v714 = vpack.c.b16 %v706, %v706
  %v715 = vpack.c.b16 %v707, %v707
  %v716 = vpack.c.b16 %v708, %v708
  %v717 = vpack.c.b16 %v709, %v709
  %v718 = vpack.c.b16 %v710, %v710
  %v719 = vpack.c.b16 %v711, %v711
  %v720 = vpack.c.b16 %v712, %v712
  %v721 = vpack.c.b16 %v713, %v713
  %vm730 = vcmask 519168
  %731 = vst.msk [vmem:[%s3] sm:$0xf] %vm730, %v714
  %732 = vst.msk [vmem:[%s3 + $0x4] sm:$0xf] %vm730, %v715
  %733 = vst.msk [vmem:[%s3 + $0x8] sm:$0xf] %vm730, %v716
  %734 = vst.msk [vmem:[%s3 + $0xc] sm:$0xf] %vm730, %v717
  %735 = vst.msk [vmem:[%s3 + $0x10] sm:$0xf] %vm730, %v718
  %736 = vst.msk [vmem:[%s3 + $0x14] sm:$0xf] %vm730, %v719
  %737 = vst.msk [vmem:[%s3 + $0x18] sm:$0xf] %vm730, %v720
  %738 = vst.msk [vmem:[%s3 + $0x1c] sm:$0xf] %vm730, %v721
  // Predicated region
  $region14: #{yolo_multitask_forward.8} parent=0 // pred_check
    _
  $region15: #{yolo_multitask_forward.8} parent=0 // pred_check_branch
    %740 = sbr.rel (0) target = $region17
  $region16: #{yolo_multitask_forward.8} parent=0 // pred_region
    _
  $region17: #{yolo_multitask_forward.8} parent=0 // pred_fallthru
    _
  // Predicated region
  $region18: #{yolo_multitask_forward.8} parent=0 // pred_check
    _
  $region19: #{yolo_multitask_forward.8} parent=0 // pred_check_branch
    %742 = sbr.rel (0) target = $region21
  $region20: #{yolo_multitask_forward.8} parent=0 // pred_region
    _
  $region21: #{yolo_multitask_forward.8} parent=0 // pred_fallthru
    _

// kernel: yolo_multitask_forward.9
$region0: #{yolo_multitask_forward.9}
  #allocation0 [shape = 'u32[]', space=smem, size = 0x4, offset = 0x4, fixed_abs, tag = 'smem constant byte address 0x4 - core index']
  #allocation1 [shape = 'u32[144,128]{1,0:T(1,128)}', space=vmem, size = 0x12000, scoped, tag = 'internal scratch']
  %s0 = inlined_call_operand.vmem [shape: bf16[64,576], index: 0, kind: input, shape index: {}]
  %s1 = inlined_call_operand.vmem [shape: bf16[576,96], index: 1, kind: input, shape index: {}]
  %s2 = inlined_call_operand.vmem [shape: f32[1,96], index: 2, kind: input, shape index: {}]
  %s3 = inlined_call_operand.vmem [shape: bf16[96,128], index: 3, kind: input, shape index: {}]
  %s4 = inlined_call_operand.vmem [shape: f32[1,128], index: 4, kind: input, shape index: {}]
  %s5 = inlined_call_operand.vmem [shape: f32[64,128], index: 5, kind: output, shape index: {}]
  %s6 = sld [smem:[#allocation0]]
  $region30: #{yolo_multitask_forward.9} parent=0
    _
  %s8 = ssub.s32 1, %s6
  %s9 = scalar_select 0, %s8, %s6
  // Predicated region
  $region2: #{yolo_multitask_forward.9} parent=0 // pred_check
    _
  $region3: #{yolo_multitask_forward.9} parent=0 // pred_check_branch
    %11 = sbr.rel (0) target = $region5
  $region4: #{yolo_multitask_forward.9} parent=0 // pred_region
    _
  $region5: #{yolo_multitask_forward.9} parent=0 // pred_fallthru
    _
  // Predicated region
  $region6: #{yolo_multitask_forward.9} parent=0 // pred_check
    _
  $region7: #{yolo_multitask_forward.9} parent=0 // pred_check_branch
    %13 = sbr.rel (0) target = $region9
  $region8: #{yolo_multitask_forward.9} parent=0 // pred_region
    _
  $region9: #{yolo_multitask_forward.9} parent=0 // pred_fallthru
    _
  // Predicated region
  $region10: #{yolo_multitask_forward.9} parent=0 // pred_check
    _
  $region11: #{yolo_multitask_forward.9} parent=0 // pred_check_branch
    %15 = sbr.rel (0) target = $region13
  $region12: #{yolo_multitask_forward.9} parent=0 // pred_region
    _
  $region13: #{yolo_multitask_forward.9} parent=0 // pred_fallthru
    _
  // Predicated region
  $region14: #{yolo_multitask_forward.9} parent=0 // pred_check
    _
  $region15: #{yolo_multitask_forward.9} parent=0 // pred_check_branch
    %17 = sbr.rel (0) target = $region17
  $region16: #{yolo_multitask_forward.9} parent=0 // pred_region
    _
  $region17: #{yolo_multitask_forward.9} parent=0 // pred_fallthru
    _
  // Predicated region
  $region18: #{yolo_multitask_forward.9} parent=0 // pred_check
    _
  $region19: #{yolo_multitask_forward.9} parent=0 // pred_check_branch
    %19 = sbr.rel (0) target = $region21
  $region20: #{yolo_multitask_forward.9} parent=0 // pred_region
    _
  $region21: #{yolo_multitask_forward.9} parent=0 // pred_fallthru
    _
  %v21 = vld [vmem:[%s0] sm:$0xff]
  %v22 = vld [vmem:[%s0 + $0x8] sm:$0xff]
  %v23 = vld [vmem:[%s0 + $0x10] sm:$0xf]
  %v24 = vld [vmem:[%s0 + $0x14] sm:$0xff]
  %v25 = vld [vmem:[%s0 + $0x1c] sm:$0xff]
  %v26 = vld [vmem:[%s0 + $0x24] sm:$0xf]
  %v27 = vld [vmem:[%s0 + $0x28] sm:$0xff]
  %v28 = vld [vmem:[%s0 + $0x30] sm:$0xff]
  %v29 = vld [vmem:[%s0 + $0x38] sm:$0xf]
  %v30 = vld [vmem:[%s0 + $0x3c] sm:$0xff]
  %v31 = vld [vmem:[%s0 + $0x44] sm:$0xff]
  %v32 = vld [vmem:[%s0 + $0x4c] sm:$0xf]
  %v33 = vld [vmem:[%s0 + $0x50] sm:$0xff]
  %v34 = vld [vmem:[%s0 + $0x58] sm:$0xff]
  %v35 = vld [vmem:[%s0 + $0x60] sm:$0xf]
  %v36 = vld [vmem:[%s0 + $0x64] sm:$0xff]
  %v37 = vld [vmem:[%s0 + $0x6c] sm:$0xff]
  %v38 = vld [vmem:[%s0 + $0x74] sm:$0xf]
  %v39 = vld [vmem:[%s0 + $0x78] sm:$0xff]
  %v40 = vld [vmem:[%s0 + $0x80] sm:$0xff]
  %v41 = vld [vmem:[%s0 + $0x88] sm:$0xf]
  %v42 = vld [vmem:[%s0 + $0x8c] sm:$0xff]
  %v43 = vld [vmem:[%s0 + $0x94] sm:$0xff]
  %v44 = vld [vmem:[%s0 + $0x9c] sm:$0xf]
  %v45 = vld [vmem:[%s1] sm:$0xf]
  %v46 = vld [vmem:[%s1 + $0x4] sm:$0xf]
  %v47 = vld [vmem:[%s1 + $0x8] sm:$0xf]
  %v48 = vld [vmem:[%s1 + $0xc] sm:$0xf]
  %v49 = vld [vmem:[%s1 + $0x10] sm:$0xf]
  %v50 = vld [vmem:[%s1 + $0x14] sm:$0xf]
  %v51 = vld [vmem:[%s1 + $0x18] sm:$0xf]
  %v52 = vld [vmem:[%s1 + $0x1c] sm:$0xf]
  %v53 = vld [vmem:[%s1 + $0x20] sm:$0xf]
  %v54 = vld [vmem:[%s1 + $0x24] sm:$0xf]
  %v55 = vld [vmem:[%s1 + $0x28] sm:$0xf]
  %v56 = vld [vmem:[%s1 + $0x2c] sm:$0xf]
  %v57 = vld [vmem:[%s1 + $0x30] sm:$0xf]
  %v58 = vld [vmem:[%s1 + $0x34] sm:$0xf]
  %v59 = vld [vmem:[%s1 + $0x38] sm:$0xf]
  %v60 = vld [vmem:[%s1 + $0x3c] sm:$0xf]
  %v61 = vld [vmem:[%s1 + $0x40] sm:$0xf]
  %v62 = vld [vmem:[%s1 + $0x44] sm:$0xf]
  %v63 = vld [vmem:[%s1 + $0x48] sm:$0xf]
  %v64 = vld [vmem:[%s1 + $0x4c] sm:$0xf]
  %v65 = vld [vmem:[%s1 + $0x50] sm:$0xf]
  %v66 = vld [vmem:[%s1 + $0x54] sm:$0xf]
  %v67 = vld [vmem:[%s1 + $0x58] sm:$0xf]
  %v68 = vld [vmem:[%s1 + $0x5c] sm:$0xf]
  %v69 = vld [vmem:[%s1 + $0x60] sm:$0xf]
  %v70 = vld [vmem:[%s1 + $0x64] sm:$0xf]
  %v71 = vld [vmem:[%s1 + $0x68] sm:$0xf]
  %v72 = vld [vmem:[%s1 + $0x6c] sm:$0xf]
  %v73 = vld [vmem:[%s1 + $0x70] sm:$0xf]
  %v74 = vld [vmem:[%s1 + $0x74] sm:$0xf]
  %v75 = vld [vmem:[%s1 + $0x78] sm:$0xf]
  %v76 = vld [vmem:[%s1 + $0x7c] sm:$0xf]
  %v77 = vld [vmem:[%s1 + $0x80] sm:$0xf]
  %v78 = vld [vmem:[%s1 + $0x84] sm:$0xf]
  %v79 = vld [vmem:[%s1 + $0x88] sm:$0xf]
  %v80 = vld [vmem:[%s1 + $0x8c] sm:$0xf]
  %v81 = vld [vmem:[%s1 + $0x90] sm:$0xf]
  %v82 = vld [vmem:[%s1 + $0x94] sm:$0xf]
  %v83 = vld [vmem:[%s1 + $0x98] sm:$0xf]
  %v84 = vld [vmem:[%s1 + $0x9c] sm:$0xf]
  %v85 = vld [vmem:[%s1 + $0xa0] sm:$0xf]
  %v86 = vld [vmem:[%s1 + $0xa4] sm:$0xf]
  %v87 = vld [vmem:[%s1 + $0xa8] sm:$0xf]
  %v88 = vld [vmem:[%s1 + $0xac] sm:$0xf]
  %v89 = vld [vmem:[%s1 + $0xb0] sm:$0xf]
  %v90 = vld [vmem:[%s1 + $0xb4] sm:$0xf]
  %v91 = vld [vmem:[%s1 + $0xb8] sm:$0xf]
  %v92 = vld [vmem:[%s1 + $0xbc] sm:$0xf]
  %v93 = vld [vmem:[%s1 + $0xc0] sm:$0xf]
  %v94 = vld [vmem:[%s1 + $0xc4] sm:$0xf]
  %v95 = vld [vmem:[%s1 + $0xc8] sm:$0xf]
  %v96 = vld [vmem:[%s1 + $0xcc] sm:$0xf]
  %v97 = vld [vmem:[%s1 + $0xd0] sm:$0xf]
  %v98 = vld [vmem:[%s1 + $0xd4] sm:$0xf]
  %v99 = vld [vmem:[%s1 + $0xd8] sm:$0xf]
  %v100 = vld [vmem:[%s1 + $0xdc] sm:$0xf]
  %v101 = vld [vmem:[%s1 + $0xe0] sm:$0xf]
  %v102 = vld [vmem:[%s1 + $0xe4] sm:$0xf]
  %v103 = vld [vmem:[%s1 + $0xe8] sm:$0xf]
  %v104 = vld [vmem:[%s1 + $0xec] sm:$0xf]
  %v105 = vld [vmem:[%s1 + $0xf0] sm:$0xf]
  %v106 = vld [vmem:[%s1 + $0xf4] sm:$0xf]
  %v107 = vld [vmem:[%s1 + $0xf8] sm:$0xf]
  %v108 = vld [vmem:[%s1 + $0xfc] sm:$0xf]
  %v109 = vld [vmem:[%s1 + $0x100] sm:$0xf]
  %v110 = vld [vmem:[%s1 + $0x104] sm:$0xf]
  %v111 = vld [vmem:[%s1 + $0x108] sm:$0xf]
  %v112 = vld [vmem:[%s1 + $0x10c] sm:$0xf]
  %v113 = vld [vmem:[%s1 + $0x110] sm:$0xf]
  %v114 = vld [vmem:[%s1 + $0x114] sm:$0xf]
  %v115 = vld [vmem:[%s1 + $0x118] sm:$0xf]
  %v116 = vld [vmem:[%s1 + $0x11c] sm:$0xf]
  %v117 = vld [vmem:[%s2] sm:$0x1]
  %v119 = vlaneseq
  %v120 = vshrl.u32 %v119, 7
  %v121 = vsub.s32 0, %v120
  %v122 = vrot.slane %v117, %v121
  %v148 = vunpack.c.l.b16 %v21
  %v149 = vunpack.c.h.b16 %v21
  %v150 = vunpack.c.l.b16 %v22
  %v151 = vunpack.c.h.b16 %v22
  %v152 = vunpack.c.l.b16 %v23
  %v153 = vunpack.c.l.b16 %v24
  %v154 = vunpack.c.h.b16 %v24
  %v155 = vunpack.c.l.b16 %v25
  %v156 = vunpack.c.h.b16 %v25
  %v157 = vunpack.c.l.b16 %v26
  %v158 = vunpack.c.l.b16 %v27
  %v159 = vunpack.c.h.b16 %v27
  %v160 = vunpack.c.l.b16 %v28
  %v161 = vunpack.c.h.b16 %v28
  %v162 = vunpack.c.l.b16 %v29
  %v163 = vunpack.c.l.b16 %v30
  %v164 = vunpack.c.h.b16 %v30
  %v165 = vunpack.c.l.b16 %v31
  %v166 = vunpack.c.h.b16 %v31
  %v167 = vunpack.c.l.b16 %v32
  %v168 = vunpack.c.l.b16 %v33
  %v169 = vunpack.c.h.b16 %v33
  %v170 = vunpack.c.l.b16 %v34
  %v171 = vunpack.c.h.b16 %v34
  %v172 = vunpack.c.l.b16 %v35
  %v173 = vunpack.c.l.b16 %v36
  %v174 = vunpack.c.h.b16 %v36
  %v175 = vunpack.c.l.b16 %v37
  %v176 = vunpack.c.h.b16 %v37
  %v177 = vunpack.c.l.b16 %v38
  %v178 = vunpack.c.l.b16 %v39
  %v179 = vunpack.c.h.b16 %v39
  %v180 = vunpack.c.l.b16 %v40
  %v181 = vunpack.c.h.b16 %v40
  %v182 = vunpack.c.l.b16 %v41
  %v183 = vunpack.c.l.b16 %v42
  %v184 = vunpack.c.h.b16 %v42
  %v185 = vunpack.c.l.b16 %v43
  %v186 = vunpack.c.h.b16 %v43
  %v187 = vunpack.c.l.b16 %v44
  %v188 = vpack.c.b16 %v153, %v148
  %v189 = vpack.c.b16 %v154, %v149
  %v190 = vpack.c.b16 %v155, %v150
  %v191 = vpack.c.b16 %v156, %v151
  %v192 = vpack.c.b16 %v157, %v152
  %v193 = vpack.c.b16 %v163, %v158
  %v194 = vpack.c.b16 %v164, %v159
  %v195 = vpack.c.b16 %v165, %v160
  %v196 = vpack.c.b16 %v166, %v161
  %v197 = vpack.c.b16 %v167, %v162
  %v198 = vpack.c.b16 %v173, %v168
  %v199 = vpack.c.b16 %v174, %v169
  %v200 = vpack.c.b16 %v175, %v170
  %v201 = vpack.c.b16 %v176, %v171
  %v202 = vpack.c.b16 %v177, %v172
  %v203 = vpack.c.b16 %v183, %v178
  %v204 = vpack.c.b16 %v184, %v179
  %v205 = vpack.c.b16 %v185, %v180
  %v206 = vpack.c.b16 %v186, %v181
  %v207 = vpack.c.b16 %v187, %v182
  %v296 = vunpack.c.l.b16 %v45
  %v297 = vunpack.c.l.b16 %v46
  %v298 = vunpack.c.l.b16 %v47
  %v299 = vunpack.c.l.b16 %v48
  %v300 = vunpack.c.l.b16 %v49
  %v301 = vunpack.c.l.b16 %v50
  %v302 = vunpack.c.l.b16 %v51
  %v303 = vunpack.c.l.b16 %v52
  %v304 = vunpack.c.l.b16 %v53
  %v305 = vunpack.c.l.b16 %v54
  %v306 = vunpack.c.l.b16 %v55
  %v307 = vunpack.c.l.b16 %v56
  %v308 = vunpack.c.l.b16 %v57
  %v309 = vunpack.c.l.b16 %v58
  %v310 = vunpack.c.l.b16 %v59
  %v311 = vunpack.c.l.b16 %v60
  %v312 = vunpack.c.l.b16 %v61
  %v313 = vunpack.c.l.b16 %v62
  %v314 = vunpack.c.l.b16 %v63
  %v315 = vunpack.c.l.b16 %v64
  %v316 = vunpack.c.l.b16 %v65
  %v317 = vunpack.c.l.b16 %v66
  %v318 = vunpack.c.l.b16 %v67
  %v319 = vunpack.c.l.b16 %v68
  %v320 = vunpack.c.l.b16 %v69
  %v321 = vunpack.c.l.b16 %v70
  %v322 = vunpack.c.l.b16 %v71
  %v323 = vunpack.c.l.b16 %v72
  %v324 = vunpack.c.l.b16 %v73
  %v325 = vunpack.c.l.b16 %v74
  %v326 = vunpack.c.l.b16 %v75
  %v327 = vunpack.c.l.b16 %v76
  %v328 = vunpack.c.l.b16 %v77
  %v329 = vunpack.c.l.b16 %v78
  %v330 = vunpack.c.l.b16 %v79
  %v331 = vunpack.c.l.b16 %v80
  %v332 = vunpack.c.l.b16 %v81
  %v333 = vunpack.c.l.b16 %v82
  %v334 = vunpack.c.l.b16 %v83
  %v335 = vunpack.c.l.b16 %v84
  %v336 = vunpack.c.l.b16 %v85
  %v337 = vunpack.c.l.b16 %v86
  %v338 = vunpack.c.l.b16 %v87
  %v339 = vunpack.c.l.b16 %v88
  %v340 = vunpack.c.l.b16 %v89
  %v341 = vunpack.c.l.b16 %v90
  %v342 = vunpack.c.l.b16 %v91
  %v343 = vunpack.c.l.b16 %v92
  %v344 = vunpack.c.l.b16 %v93
  %v345 = vunpack.c.l.b16 %v94
  %v346 = vunpack.c.l.b16 %v95
  %v347 = vunpack.c.l.b16 %v96
  %v348 = vunpack.c.l.b16 %v97
  %v349 = vunpack.c.l.b16 %v98
  %v350 = vunpack.c.l.b16 %v99
  %v351 = vunpack.c.l.b16 %v100
  %v352 = vunpack.c.l.b16 %v101
  %v353 = vunpack.c.l.b16 %v102
  %v354 = vunpack.c.l.b16 %v103
  %v355 = vunpack.c.l.b16 %v104
  %v356 = vunpack.c.l.b16 %v105
  %v357 = vunpack.c.l.b16 %v106
  %v358 = vunpack.c.l.b16 %v107
  %v359 = vunpack.c.l.b16 %v108
  %v360 = vunpack.c.l.b16 %v109
  %v361 = vunpack.c.l.b16 %v110
  %v362 = vunpack.c.l.b16 %v111
  %v363 = vunpack.c.l.b16 %v112
  %v364 = vunpack.c.l.b16 %v113
  %v365 = vunpack.c.l.b16 %v114
  %v366 = vunpack.c.l.b16 %v115
  %v367 = vunpack.c.l.b16 %v116
  %v368 = vpack.c.b16 %v297, %v296
  %v369 = vpack.c.b16 %v299, %v298
  %v370 = vpack.c.b16 %v301, %v300
  %v371 = vpack.c.b16 %v303, %v302
  %v372 = vpack.c.b16 %v305, %v304
  %v373 = vpack.c.b16 %v307, %v306
  %v374 = vpack.c.b16 %v309, %v308
  %v375 = vpack.c.b16 %v311, %v310
  %v376 = vpack.c.b16 %v313, %v312
  %v377 = vpack.c.b16 %v315, %v314
  %v378 = vpack.c.b16 %v317, %v316
  %v379 = vpack.c.b16 %v319, %v318
  %v380 = vpack.c.b16 %v321, %v320
  %v381 = vpack.c.b16 %v323, %v322
  %v382 = vpack.c.b16 %v325, %v324
  %v383 = vpack.c.b16 %v327, %v326
  %v384 = vpack.c.b16 %v329, %v328
  %v385 = vpack.c.b16 %v331, %v330
  %v386 = vpack.c.b16 %v333, %v332
  %v387 = vpack.c.b16 %v335, %v334
  %v388 = vpack.c.b16 %v337, %v336
  %v389 = vpack.c.b16 %v339, %v338
  %v390 = vpack.c.b16 %v341, %v340
  %v391 = vpack.c.b16 %v343, %v342
  %v392 = vpack.c.b16 %v345, %v344
  %v393 = vpack.c.b16 %v347, %v346
  %v394 = vpack.c.b16 %v349, %v348
  %v395 = vpack.c.b16 %v351, %v350
  %v396 = vpack.c.b16 %v353, %v352
  %v397 = vpack.c.b16 %v355, %v354
  %v398 = vpack.c.b16 %v357, %v356
  %v399 = vpack.c.b16 %v359, %v358
  %v400 = vpack.c.b16 %v361, %v360
  %v401 = vpack.c.b16 %v363, %v362
  %v402 = vpack.c.b16 %v365, %v364
  %v403 = vpack.c.b16 %v367, %v366
  %vm440 = vcmask 523264
  %v442 = vsel %vm440, %v192, 0
  %v445 = vsel %vm440, %v197, 0
  %v448 = vsel %vm440, %v202, 0
  %v451 = vsel %vm440, %v207, 0
  %453 = vmatprep.subr.bf16.mxu0 0
  %454 = vmatpush1.bf16.msra.mxu0 %v368
  %455 = vmatprep.subr.bf16.mxu0 0
  %456 = vmatpush1.bf16.msra.mxu0 %v369
  %457 = vmatprep.subr.bf16.mxu0 0
  %458 = vmatpush1.bf16.msra.mxu0 %v370
  %459 = vmatprep.subr.bf16.mxu0 0
  %460 = vmatpush1.bf16.msra.mxu0 %v371
  %461 = vmatprep.subr.bf16.mxu0 0
  %462 = vmatpush1.bf16.msra.mxu0 %v372
  %463 = vmatprep.subr.bf16.mxu0 0
  %464 = vmatpush1.bf16.msra.mxu0 %v373
  %465 = vmatprep.subr.bf16.mxu0 0
  %466 = vmatpush1.bf16.msra.mxu0 %v374
  %467 = vmatprep.subr.bf16.mxu0 0
  %468 = vmatpush1.bf16.msra.mxu0 %v375
  %469 = vmatprep.subr.bf16.mxu0 0
  %470 = vmatpush1.bf16.msra.mxu0 %v376
  %471 = vmatprep.subr.bf16.mxu0 0
  %472 = vmatpush1.bf16.msra.mxu0 %v377
  %473 = vmatprep.subr.bf16.mxu0 0
  %474 = vmatpush1.bf16.msra.mxu0 %v378
  %475 = vmatprep.subr.bf16.mxu0 0
  %476 = vmatpush1.bf16.msra.mxu0 %v379
  %477 = vmatprep.subr.bf16.mxu0 0
  %478 = vmatpush1.bf16.msra.mxu0 %v380
  %479 = vmatprep.subr.bf16.mxu0 0
  %480 = vmatpush1.bf16.msra.mxu0 %v381
  %481 = vmatprep.subr.bf16.mxu0 0
  %482 = vmatpush1.bf16.msra.mxu0 %v382
  %483 = vmatprep.subr.bf16.mxu0 0
  %484 = vmatpush1.bf16.msra.mxu0 %v383
  %485 = vmatprep.mubr.bf16.mxu0 %v189
  %486 = vmatmul.mubr.bf16.gmra.mrb[0].mxu0 %v188
  %v487 = vpop.f32.mrb[0].mxu0
  %v488 = vadd.f32 %v122, %v487
  %v489 = vpop.f32.mrb[0].mxu0
  %v490 = vpop.f32.mrb[0].mxu0
  %v491 = vadd.f32 %v122, %v490
  %v492 = vpop.f32.mrb[0].mxu0
  %493 = vmatprep.mubr.bf16.mxu0 %v194
  %494 = vmatmul.mubr.bf16.gmra.mrb[0].mxu0 %v193
  %v495 = vpop.f32.mrb[0].mxu0
  %v496 = vadd.f32 %v122, %v495
  %v497 = vpop.f32.mrb[0].mxu0
  %v498 = vpop.f32.mrb[0].mxu0
  %v499 = vadd.f32 %v122, %v498
  %v500 = vpop.f32.mrb[0].mxu0
  %501 = vmatprep.mubr.bf16.mxu0 %v199
  %502 = vmatmul.mubr.bf16.gmra.mrb[0].mxu0 %v198
  %v503 = vpop.f32.mrb[0].mxu0
  %v504 = vadd.f32 %v122, %v503
  %v505 = vpop.f32.mrb[0].mxu0
  %v506 = vpop.f32.mrb[0].mxu0
  %v507 = vadd.f32 %v122, %v506
  %v508 = vpop.f32.mrb[0].mxu0
  %509 = vmatprep.mubr.bf16.mxu0 %v204
  %510 = vmatmul.mubr.bf16.gmra.mrb[0].mxu0 %v203
  %v511 = vpop.f32.mrb[0].mxu0
  %v512 = vadd.f32 %v122, %v511
  %v513 = vpop.f32.mrb[0].mxu0
  %v514 = vpop.f32.mrb[0].mxu0
  %v515 = vadd.f32 %v122, %v514
  %v516 = vpop.f32.mrb[0].mxu0
  %517 = vdwg.mxu0
  %518 = vmatprep.subr.bf16.mxu0 0
  %519 = vmatpush1.bf16.msra.mxu0 %v384
  %520 = vmatprep.subr.bf16.mxu0 0
  %521 = vmatpush1.bf16.msra.mxu0 %v385
  %522 = vmatprep.subr.bf16.mxu0 0
  %523 = vmatpush1.bf16.msra.mxu0 %v386
  %524 = vmatprep.subr.bf16.mxu0 0
  %525 = vmatpush1.bf16.msra.mxu0 %v387
  %526 = vmatprep.subr.bf16.mxu0 0
  %527 = vmatpush1.bf16.msra.mxu0 %v388
  %528 = vmatprep.subr.bf16.mxu0 0
  %529 = vmatpush1.bf16.msra.mxu0 %v389
  %530 = vmatprep.subr.bf16.mxu0 0
  %531 = vmatpush1.bf16.msra.mxu0 %v390
  %532 = vmatprep.subr.bf16.mxu0 0
  %533 = vmatpush1.bf16.msra.mxu0 %v391
  %534 = vmatprep.subr.bf16.mxu0 0
  %535 = vmatpush1.bf16.msra.mxu0 %v392
  %536 = vmatprep.subr.bf16.mxu0 0
  %537 = vmatpush1.bf16.msra.mxu0 %v393
  %538 = vmatprep.subr.bf16.mxu0 0
  %539 = vmatpush1.bf16.msra.mxu0 %v394
  %540 = vmatprep.subr.bf16.mxu0 0
  %541 = vmatpush1.bf16.msra.mxu0 %v395
  %542 = vmatprep.subr.bf16.mxu0 0
  %543 = vmatpush1.bf16.msra.mxu0 %v396
  %544 = vmatprep.subr.bf16.mxu0 0
  %545 = vmatpush1.bf16.msra.mxu0 %v397
  %546 = vmatprep.subr.bf16.mxu0 0
  %547 = vmatpush1.bf16.msra.mxu0 %v398
  %548 = vmatprep.subr.bf16.mxu0 0
  %549 = vmatpush1.bf16.msra.mxu0 %v399
  %550 = vmatprep.mubr.bf16.mxu0 %v191
  %551 = vmatmul.mubr.bf16.gmra.mrb[0].mxu0 %v190
  %v552 = vpop.f32.mrb[0].mxu0
  %v553 = vadd.f32 %v488, %v552
  %v554 = vpop.f32.mrb[0].mxu0
  %v555 = vpop.f32.mrb[0].mxu0
  %v556 = vadd.f32 %v491, %v555
  %v557 = vpop.f32.mrb[0].mxu0
  %558 = vmatprep.mubr.bf16.mxu0 %v196
  %559 = vmatmul.mubr.bf16.gmra.mrb[0].mxu0 %v195
  %v560 = vpop.f32.mrb[0].mxu0
  %v561 = vadd.f32 %v496, %v560
  %v562 = vpop.f32.mrb[0].mxu0
  %v563 = vpop.f32.mrb[0].mxu0
  %v564 = vadd.f32 %v499, %v563
  %v565 = vpop.f32.mrb[0].mxu0
  %566 = vmatprep.mubr.bf16.mxu0 %v201
  %567 = vmatmul.mubr.bf16.gmra.mrb[0].mxu0 %v200
  %v568 = vpop.f32.mrb[0].mxu0
  %v569 = vadd.f32 %v504, %v568
  %v570 = vpop.f32.mrb[0].mxu0
  %v571 = vpop.f32.mrb[0].mxu0
  %v572 = vadd.f32 %v507, %v571
  %v573 = vpop.f32.mrb[0].mxu0
  %574 = vmatprep.mubr.bf16.mxu0 %v206
  %575 = vmatmul.mubr.bf16.gmra.mrb[0].mxu0 %v205
  %v576 = vpop.f32.mrb[0].mxu0
  %v577 = vadd.f32 %v512, %v576
  %v578 = vpop.f32.mrb[0].mxu0
  %v579 = vpop.f32.mrb[0].mxu0
  %v580 = vadd.f32 %v515, %v579
  %v581 = vpop.f32.mrb[0].mxu0
  %582 = vdwg.mxu0
  %583 = vmatprep.subr.bf16.mxu0 0
  %584 = vmatpush1.bf16.msra.mxu0 %v400
  %585 = vmatprep.subr.bf16.mxu0 0
  %586 = vmatpush1.bf16.msra.mxu0 %v401
  %587 = vmatprep.subr.bf16.mxu0 0
  %588 = vmatpush1.bf16.msra.mxu0 %v402
  %589 = vmatprep.subr.bf16.mxu0 0
  %590 = vmatpush1.bf16.msra.mxu0 %v403
  %591 = vmatprep.subr.bf16.mxu0 0
  %592 = vmatpush1.bf16.msra.mxu0 0
  %593 = vmatprep.subr.bf16.mxu0 0
  %594 = vmatpush1.bf16.msra.mxu0 0
  %595 = vmatprep.subr.bf16.mxu0 0
  %596 = vmatpush1.bf16.msra.mxu0 0
  %597 = vmatprep.subr.bf16.mxu0 0
  %598 = vmatpush1.bf16.msra.mxu0 0
  %599 = vmatprep.subr.bf16.mxu0 0
  %600 = vmatpush1.bf16.msra.mxu0 0
  %601 = vmatprep.subr.bf16.mxu0 0
  %602 = vmatpush1.bf16.msra.mxu0 0
  %603 = vmatprep.subr.bf16.mxu0 0
  %604 = vmatpush1.bf16.msra.mxu0 0
  %605 = vmatprep.subr.bf16.mxu0 0
  %606 = vmatpush1.bf16.msra.mxu0 0
  %607 = vmatprep.subr.bf16.mxu0 0
  %608 = vmatpush1.bf16.msra.mxu0 0
  %609 = vmatprep.subr.bf16.mxu0 0
  %610 = vmatpush1.bf16.msra.mxu0 0
  %611 = vmatprep.subr.bf16.mxu0 0
  %612 = vmatpush1.bf16.msra.mxu0 0
  %613 = vmatprep.subr.bf16.mxu0 0
  %614 = vmatpush1.bf16.msra.mxu0 0
  %615 = vmatprep.mubr.bf16.mxu0 0
  %616 = vmatmul.mubr.bf16.gmra.mrb[0].mxu0 %v442
  %v617 = vpop.f32.mrb[0].mxu0
  %v618 = vadd.f32 %v553, %v617
  %v619 = vpop.f32.mrb[0].mxu0
  %v620 = vpop.f32.mrb[0].mxu0
  %v621 = vadd.f32 %v556, %v620
  %v622 = vpop.f32.mrb[0].mxu0
  %623 = vmatprep.mubr.bf16.mxu0 0
  %624 = vmatmul.mubr.bf16.gmra.mrb[0].mxu0 %v445
  %v625 = vpop.f32.mrb[0].mxu0
  %v626 = vadd.f32 %v561, %v625
  %v627 = vpop.f32.mrb[0].mxu0
  %v628 = vpop.f32.mrb[0].mxu0
  %v629 = vadd.f32 %v564, %v628
  %v630 = vpop.f32.mrb[0].mxu0
  %631 = vmatprep.mubr.bf16.mxu0 0
  %632 = vmatmul.mubr.bf16.gmra.mrb[0].mxu0 %v448
  %v633 = vpop.f32.mrb[0].mxu0
  %v634 = vadd.f32 %v569, %v633
  %v635 = vpop.f32.mrb[0].mxu0
  %v636 = vpop.f32.mrb[0].mxu0
  %v637 = vadd.f32 %v572, %v636
  %v638 = vpop.f32.mrb[0].mxu0
  %639 = vmatprep.mubr.bf16.mxu0 0
  %640 = vmatmul.mubr.bf16.gmra.mrb[0].mxu0 %v451
  %v641 = vpop.f32.mrb[0].mxu0
  %v642 = vadd.f32 %v577, %v641
  %v643 = vpop.f32.mrb[0].mxu0
  %v644 = vpop.f32.mrb[0].mxu0
  %v645 = vadd.f32 %v580, %v644
  %v646 = vpop.f32.mrb[0].mxu0
  %647 = vdwg.mxu0
  %v648 = vxor.u32 %v618, 2147483648
  %v649 = vxor.u32 %v621, 2147483648
  %v650 = vxor.u32 %v626, 2147483648
  %v651 = vxor.u32 %v629, 2147483648
  %v652 = vxor.u32 %v634, 2147483648
  %v653 = vxor.u32 %v637, 2147483648
  %v654 = vxor.u32 %v642, 2147483648
  %v655 = vxor.u32 %v645, 2147483648
  %v656 = vmul.f32 %v648, 1.442695
  %v657 = vpow.pop %v656
  %v658 = vmul.f32 %v649, 1.442695
  %v659 = vpow.pop %v658
  %v660 = vmul.f32 %v650, 1.442695
  %v661 = vpow.pop %v660
  %v662 = vmul.f32 %v651, 1.442695
  %v663 = vpow.pop %v662
  %v664 = vmul.f32 %v652, 1.442695
  %v665 = vpow.pop %v664
  %v666 = vmul.f32 %v653, 1.442695
  %v667 = vpow.pop %v666
  %v668 = vmul.f32 %v654, 1.442695
  %v669 = vpow.pop %v668
  %v670 = vmul.f32 %v655, 1.442695
  %v671 = vpow.pop %v670
  %v672 = vadd.f32 %v657, 1.0
  %v673 = vadd.f32 %v659, 1.0
  %v674 = vadd.f32 %v661, 1.0
  %v675 = vadd.f32 %v663, 1.0
  %v676 = vadd.f32 %v665, 1.0
  %v677 = vadd.f32 %v667, 1.0
  %v678 = vadd.f32 %v669, 1.0
  %v679 = vadd.f32 %v671, 1.0
  %v680 = vrcp.pop %v672
  %v681 = vmul.f32 1.0, %v680
  %v682 = vrcp.pop %v673
  %v683 = vmul.f32 1.0, %v682
  %v684 = vrcp.pop %v674
  %v685 = vmul.f32 1.0, %v684
  %v686 = vrcp.pop %v675
  %v687 = vmul.f32 1.0, %v686
  %v688 = vrcp.pop %v676
  %v689 = vmul.f32 1.0, %v688
  %v690 = vrcp.pop %v677
  %v691 = vmul.f32 1.0, %v690
  %v692 = vrcp.pop %v678
  %v693 = vmul.f32 1.0, %v692
  %v694 = vrcp.pop %v679
  %v695 = vmul.f32 1.0, %v694
  %v696 = vmul.f32 %v618, %v681
  %v697 = vmul.f32 %v621, %v683
  %v698 = vmul.f32 %v626, %v685
  %v699 = vmul.f32 %v629, %v687
  %v700 = vmul.f32 %v634, %v689
  %v701 = vmul.f32 %v637, %v691
  %v702 = vmul.f32 %v642, %v693
  %v703 = vmul.f32 %v645, %v695
  %v704 = vpack.c.bf16 %v697, %v696
  %v705 = vpack.c.bf16 %v699, %v698
  %v706 = vpack.c.bf16 %v701, %v700
  %v707 = vpack.c.bf16 %v703, %v702
  %v708 = vld [vmem:[%s3] sm:$0xf]
  %v709 = vld [vmem:[%s3 + $0x4] sm:$0xf]
  %v710 = vld [vmem:[%s3 + $0x8] sm:$0xf]
  %v711 = vld [vmem:[%s3 + $0xc] sm:$0xf]
  %v712 = vld [vmem:[%s3 + $0x10] sm:$0xf]
  %v713 = vld [vmem:[%s3 + $0x14] sm:$0xf]
  %v714 = vld [vmem:[%s3 + $0x18] sm:$0xf]
  %v715 = vld [vmem:[%s3 + $0x1c] sm:$0xf]
  %v716 = vld [vmem:[%s3 + $0x20] sm:$0xf]
  %v717 = vld [vmem:[%s3 + $0x24] sm:$0xf]
  %v718 = vld [vmem:[%s3 + $0x28] sm:$0xf]
  %v719 = vld [vmem:[%s3 + $0x2c] sm:$0xf]
  %v720 = vld [vmem:[%s4] sm:$0x1]
  %v722 = vlaneseq
  %v723 = vshrl.u32 %v722, 7
  %v724 = vsub.s32 0, %v723
  %v725 = vrot.slane %v720, %v724
  %v739 = vunpack.c.l.b16 %v708
  %v740 = vunpack.c.l.b16 %v709
  %v741 = vunpack.c.l.b16 %v710
  %v742 = vunpack.c.l.b16 %v711
  %v743 = vunpack.c.l.b16 %v712
  %v744 = vunpack.c.l.b16 %v713
  %v745 = vunpack.c.l.b16 %v714
  %v746 = vunpack.c.l.b16 %v715
  %v747 = vunpack.c.l.b16 %v716
  %v748 = vunpack.c.l.b16 %v717
  %v749 = vunpack.c.l.b16 %v718
  %v750 = vunpack.c.l.b16 %v719
  %v751 = vpack.c.b16 %v740, %v739
  %v752 = vpack.c.b16 %v742, %v741
  %v753 = vpack.c.b16 %v744, %v743
  %v754 = vpack.c.b16 %v746, %v745
  %v755 = vpack.c.b16 %v748, %v747
  %v756 = vpack.c.b16 %v750, %v749
  %vm763 = vcmask 785408
  %v765 = vsel %vm763, %v704, 0
  %v768 = vsel %vm763, %v705, 0
  %v771 = vsel %vm763, %v706, 0
  %v774 = vsel %vm763, %v707, 0
  %776 = vmatprep.subr.bf16.mxu0 0
  %777 = vmatpush1.bf16.msra.mxu0 %v751
  %778 = vmatprep.subr.bf16.mxu0 0
  %779 = vmatpush1.bf16.msra.mxu0 %v752
  %780 = vmatprep.subr.bf16.mxu0 0
  %781 = vmatpush1.bf16.msra.mxu0 %v753
  %782 = vmatprep.subr.bf16.mxu0 0
  %783 = vmatpush1.bf16.msra.mxu0 %v754
  %784 = vmatprep.subr.bf16.mxu0 0
  %785 = vmatpush1.bf16.msra.mxu0 %v755
  %786 = vmatprep.subr.bf16.mxu0 0
  %787 = vmatpush1.bf16.msra.mxu0 %v756
  %788 = vmatprep.subr.bf16.mxu0 0
  %789 = vmatpush1.bf16.msra.mxu0 0
  %790 = vmatprep.subr.bf16.mxu0 0
  %791 = vmatpush1.bf16.msra.mxu0 0
  %792 = vmatprep.subr.bf16.mxu0 0
  %793 = vmatpush1.bf16.msra.mxu0 0
  %794 = vmatprep.subr.bf16.mxu0 0
  %795 = vmatpush1.bf16.msra.mxu0 0
  %796 = vmatprep.subr.bf16.mxu0 0
  %797 = vmatpush1.bf16.msra.mxu0 0
  %798 = vmatprep.subr.bf16.mxu0 0
  %799 = vmatpush1.bf16.msra.mxu0 0
  %800 = vmatprep.subr.bf16.mxu0 0
  %801 = vmatpush1.bf16.msra.mxu0 0
  %802 = vmatprep.subr.bf16.mxu0 0
  %803 = vmatpush1.bf16.msra.mxu0 0
  %804 = vmatprep.subr.bf16.mxu0 0
  %805 = vmatpush1.bf16.msra.mxu0 0
  %806 = vmatprep.subr.bf16.mxu0 0
  %807 = vmatpush1.bf16.msra.mxu0 0
  %808 = vmatprep.mubr.bf16.mxu0 0
  %809 = vmatmul.mubr.bf16.gmra.mrb[0].mxu0 %v765
  %v810 = vpop.f32.mrb[0].mxu0
  %v811 = vadd.f32 %v725, %v810
  %v812 = vpop.f32.mrb[0].mxu0
  %v813 = vpop.f32.mrb[0].mxu0
  %v814 = vadd.f32 %v725, %v813
  %v815 = vpop.f32.mrb[0].mxu0
  %816 = vmatprep.mubr.bf16.mxu0 0
  %817 = vmatmul.mubr.bf16.gmra.mrb[0].mxu0 %v768
  %v818 = vpop.f32.mrb[0].mxu0
  %v819 = vadd.f32 %v725, %v818
  %v820 = vpop.f32.mrb[0].mxu0
  %v821 = vpop.f32.mrb[0].mxu0
  %v822 = vadd.f32 %v725, %v821
  %v823 = vpop.f32.mrb[0].mxu0
  %824 = vmatprep.mubr.bf16.mxu0 0
  %825 = vmatmul.mubr.bf16.gmra.mrb[0].mxu0 %v771
  %v826 = vpop.f32.mrb[0].mxu0
  %v827 = vadd.f32 %v725, %v826
  %v828 = vpop.f32.mrb[0].mxu0
  %v829 = vpop.f32.mrb[0].mxu0
  %v830 = vadd.f32 %v725, %v829
  %v831 = vpop.f32.mrb[0].mxu0
  %832 = vmatprep.mubr.bf16.mxu0 0
  %833 = vmatmul.mubr.bf16.gmra.mrb[0].mxu0 %v774
  %v834 = vpop.f32.mrb[0].mxu0
  %v835 = vadd.f32 %v725, %v834
  %v836 = vpop.f32.mrb[0].mxu0
  %v837 = vpop.f32.mrb[0].mxu0
  %v838 = vadd.f32 %v725, %v837
  %v839 = vpop.f32.mrb[0].mxu0
  %840 = vdwg.mxu0
  %841 = vst [vmem:[%s5] sm:$0xff] %v811
  %842 = vst [vmem:[%s5 + $0x8] sm:$0xff] %v814
  %843 = vst [vmem:[%s5 + $0x10] sm:$0xff] %v819
  %844 = vst [vmem:[%s5 + $0x18] sm:$0xff] %v822
  %845 = vst [vmem:[%s5 + $0x20] sm:$0xff] %v827
  %846 = vst [vmem:[%s5 + $0x28] sm:$0xff] %v830
  %847 = vst [vmem:[%s5 + $0x30] sm:$0xff] %v835
  %848 = vst [vmem:[%s5 + $0x38] sm:$0xff] %v838
  // Predicated region
  $region22: #{yolo_multitask_forward.9} parent=0 // pred_check
    _
  $region23: #{yolo_multitask_forward.9} parent=0 // pred_check_branch
    %850 = sbr.rel (0) target = $region25
  $region24: #{yolo_multitask_forward.9} parent=0 // pred_region
    _
  $region25: #{yolo_multitask_forward.9} parent=0 // pred_fallthru
    _
  // Predicated region
  $region26: #{yolo_multitask_forward.9} parent=0 // pred_check
    _
  $region27: #{yolo_multitask_forward.9} parent=0 // pred_check_branch
    %852 = sbr.rel (0) target = $region29
  $region28: #{yolo_multitask_forward.9} parent=0 // pred_region
    _
  $region29: #{yolo_multitask_forward.9} parent=0 // pred_fallthru
    _

</llo_original>
